<compile_context>
chip_gen: v7x
topology: tpu7x:2x2x1
jax: 0.10.0
libtpu: 0.0.40
codegen_flags: <defaults>
</compile_context>

<pallas_src>
import math
from functools import partial

import jax
import jax.numpy as jnp
import numpy as np
from jax import lax
from jax.experimental import pallas as pl
from jax.experimental.pallas import tpu as pltpu


# -----------------------------------------------------------------------------
# generation-aware sizing
# -----------------------------------------------------------------------------
def _vmem_capacity_bytes():
    try:
        info = pltpu.get_tpu_info()
        cap = int(getattr(info, "vmem_capacity_bytes", 0) or 0)
        if cap > 0:
            return cap
    except Exception:
        pass
    return 64 << 20  # conservative default (v7x per-core VMEM)


_VMEM_CAP = _vmem_capacity_bytes()
# v7x (64 MiB): leave headroom for Mosaic internal scratch; v5e/v6e (128 MiB):
# use most of it so the matmul tiles can grow (fewer re-reads of x / W).
_VMEM_LIMIT = (40 << 20) if _VMEM_CAP <= (64 << 20) else (96 << 20)


def _pick_tile(dim, target, align, min_steps=1):
    """Largest multiple of `align` dividing `dim`, <= target (leaving at least
    `min_steps` grid steps when possible); falls back to the full dim."""
    if min_steps > 1 and dim >= 2 * align:
        target = min(target, max(align, dim // min_steps))
    if dim <= target:
        return dim
    t = (target // align) * align
    while t >= align:
        if dim % t == 0:
            return t
        t -= align
    return dim


def _largest_divisor_leq(n, cap):
    cap = int(max(1, min(n, cap)))
    for d in range(cap, 0, -1):
        if n % d == 0:
            return d
    return 1


def _linear_tiles(M, Cin, Cout, compute_dtype):
    big_vmem = _VMEM_CAP > (64 << 20)
    # bf16 packs two rows per sublane -> 16-aligned M tiles avoid relayouts.
    m_align = 16 if np.dtype(compute_dtype) == np.dtype(jnp.bfloat16) else 8
    tm = _pick_tile(M, 1024 if big_vmem else 512, m_align, min_steps=2)
    tn = _pick_tile(Cout, 512 if big_vmem else 256, 128)
    tk = _pick_tile(Cin, 512, 128)
    return tm, tn, tk


def _weight_spec(tk, tn, k_steps):
    # 3-deep buffering of the streamed weight panel hides DMA latency on the
    # 128 MiB / low-HBM-BW parts (v5e/v6e); keep the default double buffer on
    # v7x (64 MiB) and for short K loops.
    if _VMEM_CAP > (64 << 20) and k_steps >= 3:
        return pl.BlockSpec((tk, tn), lambda i, j, k: (k, j),
                            pipeline_mode=pl.Buffered(3))
    return pl.BlockSpec((tk, tn), lambda i, j, k: (k, j))


# -----------------------------------------------------------------------------
# Pallas kernels
# -----------------------------------------------------------------------------
def _qkv_linear_kernel(x_ref, wq_ref, wk_ref, wv_ref, bq_ref, bk_ref, bv_ref,
                       q_ref, k_ref, v_ref, acc_q, acc_k, acc_v):
    kk = pl.program_id(2)

    @pl.when(kk == 0)
    def _():
        acc_q[...] = jnp.zeros_like(acc_q)
        acc_k[...] = jnp.zeros_like(acc_k)
        acc_v[...] = jnp.zeros_like(acc_v)

    x = x_ref[...].astype(wq_ref.dtype)        # cast in VMEM, hidden under MXU
    acc_q[...] += jnp.dot(x, wq_ref[...], preferred_element_type=jnp.float32)
    acc_k[...] += jnp.dot(x, wk_ref[...], preferred_element_type=jnp.float32)
    acc_v[...] += jnp.dot(x, wv_ref[...], preferred_element_type=jnp.float32)

    @pl.when(kk == pl.num_programs(2) - 1)
    def _():
        q_ref[...] = (acc_q[...] + bq_ref[...]).astype(q_ref.dtype)
        k_ref[...] = (acc_k[...] + bk_ref[...]).astype(k_ref.dtype)
        v_ref[...] = (acc_v[...] + bv_ref[...]).astype(v_ref.dtype)


def _linear_kernel(x_ref, w_ref, b_ref, o_ref, acc_ref):
    kk = pl.program_id(2)

    @pl.when(kk == 0)
    def _():
        acc_ref[...] = jnp.zeros_like(acc_ref)

    acc_ref[...] += jnp.dot(x_ref[...].astype(w_ref.dtype), w_ref[...],
                            preferred_element_type=jnp.float32)

    @pl.when(kk == pl.num_programs(2) - 1)
    def _():
        o_ref[...] = (acc_ref[...] + b_ref[...]).astype(o_ref.dtype)


def _attn_kernel(q_ref, k_ref, v_ref, o_ref, *, head, groups):
    # Blocks hold `groups` independent token groups, ALL heads packed in the
    # channel (lane) dim.  1/sqrt(c_h) is already folded into q (pack time).
    c = q_ref.shape[-1]
    c_h = c // head
    q = q_ref[...].reshape(groups, -1, c)
    k = k_ref[...].reshape(groups, -1, c)
    v = v_ref[...].reshape(groups, -1, c)
    L = q.shape[1]

    def softmax_rows(s):
        s = s - jnp.max(s, axis=-1, keepdims=True)
        e = jnp.exp(s)
        # approx reciprocal lives in the EUP slot (free); ~1e-3 rel. error, fine
        # for inference parity with the PyTorch module.
        return e * pl.reciprocal(jnp.sum(e, axis=-1, keepdims=True), approx=True)

    # TODO(synk): dropout(p=0.1) on the attention probabilities omitted
    #             (eval/inference semantics).
    # TODO(synk): KV-tiled flash-style online softmax for large L (mode 't' at
    #             real sequence lengths) instead of full (L, L) scores.
    if c_h % 128 == 0:
        # Production head dims: one batched dot over (group, head) keeps the
        # MXU K-dim >= 128 and avoids per-head lane slicing / concat.
        q4 = q.reshape(groups, L, head, c_h)
        k4 = k.reshape(groups, L, head, c_h)
        v4 = v.reshape(groups, L, head, c_h)
        s = lax.dot_general(q4, k4, (((3,), (3,)), ((0, 2), (0, 2))),
                            preferred_element_type=jnp.float32)     # (g,h,L,L)
        p = softmax_rows(s)
        o4 = lax.dot_general(p.astype(v4.dtype), v4,
                             (((3,), (1,)), ((0, 1), (0, 2))),
                             preferred_element_type=jnp.float32)    # (g,h,L,d)
        out = o4.transpose(0, 2, 1, 3).reshape(groups, L, c)
    else:
        outs = []
        for hd in range(head):                  # small static unrolled loop
            lo = hd * c_h
            qh = q[:, :, lo:lo + c_h]
            kh = k[:, :, lo:lo + c_h]
            vh = v[:, :, lo:lo + c_h]
            s = lax.dot_general(qh, kh, (((2,), (2,)), ((0,), (0,))),
                                preferred_element_type=jnp.float32)
            p = softmax_rows(s)
            outs.append(lax.dot_general(p.astype(vh.dtype), vh,
                                        (((2,), (1,)), ((0,), (0,))),
                                        preferred_element_type=jnp.float32))
        out = jnp.concatenate(outs, axis=-1)    # lane-dense (g, L, C)

    o_ref[...] = out.reshape(o_ref.shape).astype(o_ref.dtype)


# -----------------------------------------------------------------------------
# Pallas wrappers
# -----------------------------------------------------------------------------
def pallas_qkv_linear(x2d, wq, wk, wv, bq, bk, bv, out_dtype):
    """(q, k, v) = x2d @ {wq,wk,wv} + {bq,bk,bv}; x streamed once, 3 outputs."""
    M, Cin = x2d.shape
    Cout = wq.shape[1]
    tm, tn, tk = _linear_tiles(M, Cin, Cout, wq.dtype)
    grid = (M // tm, Cout // tn, Cin // tk)

    x_spec = pl.BlockSpec((tm, tk), lambda i, j, k: (i, k))
    w_spec = _weight_spec(tk, tn, grid[2])
    b_spec = pl.BlockSpec((1, tn), lambda i, j, k: (0, j))
    o_spec = pl.BlockSpec((tm, tn), lambda i, j, k: (i, j))
    o_sds = jax.ShapeDtypeStruct((M, Cout), out_dtype)

    return pl.pallas_call(
        _qkv_linear_kernel,
        out_shape=(o_sds, o_sds, o_sds),
        grid_spec=pltpu.PrefetchScalarGridSpec(
            num_scalar_prefetch=0,
            grid=grid,
            in_specs=[x_spec, w_spec, w_spec, w_spec, b_spec, b_spec, b_spec],
            out_specs=[o_spec, o_spec, o_spec],
            scratch_shapes=[pltpu.VMEM((tm, tn), jnp.float32)] * 3,
        ),
        compiler_params=pltpu.CompilerParams(
            dimension_semantics=("parallel", "parallel", "arbitrary"),
            vmem_limit_bytes=_VMEM_LIMIT,
        ),
    )(x2d, wq, wk, wv, bq, bk, bv)


def pallas_linear(x2d, w, b2, out_dtype):
    """y = x2d @ w + b2 ; w pre-packed as (Cin, Cout), b2 as (1, Cout) f32."""
    M, Cin = x2d.shape
    Cout = w.shape[1]
    tm, tn, tk = _linear_tiles(M, Cin, Cout, w.dtype)
    grid = (M // tm, Cout // tn, Cin // tk)

    return pl.pallas_call(
        _linear_kernel,
        out_shape=jax.ShapeDtypeStruct((M, Cout), out_dtype),
        grid_spec=pltpu.PrefetchScalarGridSpec(
            num_scalar_prefetch=0,
            grid=grid,
            in_specs=[pl.BlockSpec((tm, tk), lambda i, j, k: (i, k)),
                      _weight_spec(tk, tn, grid[2]),
                      pl.BlockSpec((1, tn), lambda i, j, k: (0, j))],
            out_specs=pl.BlockSpec((tm, tn), lambda i, j, k: (i, j)),
            scratch_shapes=[pltpu.VMEM((tm, tn), jnp.float32)],
        ),
        compiler_params=pltpu.CompilerParams(
            dimension_semantics=("parallel", "parallel", "arbitrary"),
            vmem_limit_bytes=_VMEM_LIMIT,
        ),
    )(x2d, w, b2)


def _attention_gblk(G, L, C, dtype):
    it = np.dtype(dtype).itemsize
    per_group = (2 * 4 * L * C * it        # q/k/v/o blocks, double buffered
                 + 3 * L * L * 4           # f32 scores / exp / probs (live head)
                 + 2 * L * C * 4)          # f32 per-head outputs + headroom
    gblk = max(1, int(0.7 * _VMEM_LIMIT) // max(per_group, 1))
    if G >= 2:
        gblk = min(gblk, G // 2)           # >= 2 grid steps: keep v7x's 2 TCs busy
    return _largest_divisor_leq(G, gblk)


def pallas_grouped_attention(q, k, v, head):
    """q, k, v: (G, L, C) with heads packed in C; per-(group, head) attention."""
    G, L, C = q.shape
    gblk = _attention_gblk(G, L, C, q.dtype)
    spec = pl.BlockSpec((gblk, L, C), lambda i: (i, 0, 0))
    return pl.pallas_call(
        partial(_attn_kernel, head=head, groups=gblk),
        out_shape=jax.ShapeDtypeStruct((G, L, C), q.dtype),
        grid_spec=pltpu.PrefetchScalarGridSpec(
            num_scalar_prefetch=0,
            grid=(G // gblk,),
            in_specs=[spec, spec, spec],
            out_specs=spec,
        ),
        compiler_params=pltpu.CompilerParams(
            dimension_semantics=("parallel",),
            vmem_limit_bytes=_VMEM_LIMIT,
        ),
    )(q, k, v)


def pallas_quadrant_attention(q, k, v, head, *, b, t, h, w):
    """mode 't' fast path: the (frame, quadrant) regrouping is expressed purely
    in the BlockSpec index_map on a free (bt, h, 2, w/2, c) view -> no HBM
    relayout of q/k/v nor of the attention output."""
    bt, n, c = q.shape
    h2, w2 = h // 2, w // 2
    view = lambda z: z.reshape(bt, h, 2, w2, c)
    spec = pl.BlockSpec((t, h2, 1, w2, c),
                        lambda bi, qh, qw: (bi, qh, qw, 0, 0))
    out = pl.pallas_call(
        partial(_attn_kernel, head=head, groups=1),
        out_shape=jax.ShapeDtypeStruct((bt, h, 2, w2, c), q.dtype),
        grid_spec=pltpu.PrefetchScalarGridSpec(
            num_scalar_prefetch=0,
            grid=(b, 2, 2),
            in_specs=[spec, spec, spec],
            out_specs=spec,
        ),
        compiler_params=pltpu.CompilerParams(
            dimension_semantics=("parallel", "parallel", "parallel"),
            vmem_limit_bytes=_VMEM_LIMIT,
        ),
    )(view(q), view(k), view(v))
    return out.reshape(bt, n, c)


def _quadrant_attention_fallback(q, k, v, head, *, b, t, h, w):
    """mode 't' fallback (w//2 not 8-aligned): XLA relayout + grouped kernel."""
    bt, n, c = q.shape
    h2, w2 = h // 2, w // 2
    G, L = b * 4, t * h2 * w2

    def split(z):
        z = z.reshape(b, t, 2, h2, 2, w2, c)
        z = z.transpose(0, 2, 4, 1, 3, 5, 6)       # channel (lane) dim untouched
        return z.reshape(G, L, c)

    att = pallas_grouped_attention(split(q), split(k), split(v), head)
    att = att.reshape(b, 2, 2, t, h2, w2, c).transpose(0, 3, 1, 4, 2, 5, 6)
    return att.reshape(bt, n, c)


# -----------------------------------------------------------------------------
# parameter packing (hoisted out of the hot path)
# -----------------------------------------------------------------------------
def pack_mha_params(params, head, compute_dtype=jnp.float32):
    """Pre-transpose weights once; fold 1/sqrt(c_h) into wq/bq (in f32, before
    any bf16 cast); biases kept in f32.  Use compute_dtype=jnp.bfloat16 on
    v6e/v7x to feed the 256x256 MXU (f32 accumulation kept in-kernel)."""
    wq, wk, wv, wo = (jnp.asarray(params[k], jnp.float32)
                      for k in ("wq", "wk", "wv", "wo"))
    bq, bk, bv, bo = (jnp.asarray(params[k], jnp.float32)
                      for k in ("bq", "bk", "bv", "bo"))
    d_model = wq.shape[0]
    scale = 1.0 / math.sqrt(d_model // head)
    return {
        "w_q": (wq.T * scale).astype(compute_dtype),   # (Cin, Cout), scaled
        "w_k": wk.T.astype(compute_dtype),
        "w_v": wv.T.astype(compute_dtype),
        "w_out": wo.T.astype(compute_dtype),
        "b_q": (bq * scale).reshape(1, -1),            # f32
        "b_k": bk.reshape(1, -1),
        "b_v": bv.reshape(1, -1),
        "b_out": bo.reshape(1, -1),
    }


# -----------------------------------------------------------------------------
# MultiHeadedAttention forward (Pallas)
# -----------------------------------------------------------------------------
@partial(jax.jit, static_argnames=("t", "mode", "head", "h", "w"))
def multi_headed_attention(x, packed, *, t, mode, head, h, w):
    bt, n, c = x.shape
    b = bt // t
    assert c % head == 0
    orig_dtype = x.dtype
    cdt = packed["w_q"].dtype

    # QKV projection: one kernel, x streamed once, three outputs (no jnp.split,
    # no wrapper-side cast -- the x tile is cast to cdt inside the kernel).
    x2 = x.reshape(bt * n, c)
    q2, k2, v2 = pallas_qkv_linear(
        x2, packed["w_q"], packed["w_k"], packed["w_v"],
        packed["b_q"], packed["b_k"], packed["b_v"], out_dtype=cdt)
    query = q2.reshape(bt, n, c)
    key = k2.reshape(bt, n, c)
    value = v2.reshape(bt, n, c)

    if mode == "s":
        # groups are the (b, t) frames; heads stay packed in the channel dim.
        att = pallas_grouped_attention(query, key, value, head)
    elif mode == "t":
        assert n == h * w and h % 2 == 0 and w % 2 == 0
        if (w // 2) % 8 == 0:
            att = pallas_quadrant_attention(query, key, value, head,
                                            b=b, t=t, h=h, w=w)
        else:
            att = _quadrant_attention_fallback(query, key, value, head,
                                               b=b, t=t, h=h, w=w)
    else:
        raise ValueError(f"unknown mode {mode!r}")

    out = pallas_linear(att.reshape(bt * n, c), packed["w_out"], packed["b_out"],
                        out_dtype=orig_dtype)
    return out.reshape(bt, n, c)


# -----------------------------------------------------------------------------
# Pure-numpy reference (mirrors the PyTorch forward, dropout in eval mode)
# -----------------------------------------------------------------------------
def reference_mha(x, t, params, *, mode, head, h, w):
    x = np.asarray(x, dtype=np.float32)
    bt, n, c = x.shape
    b = bt // t
    c_h = c // head

    def lin(z2, wname, bname):
        return z2 @ np.asarray(params[wname]).T + np.asarray(params[bname])

    x2 = x.reshape(bt * n, c)
    key = lin(x2, "wk", "bk").reshape(bt, n, c)
    query = lin(x2, "wq", "bq").reshape(bt, n, c)
    value = lin(x2, "wv", "bv").reshape(bt, n, c)

    def attention(q, k, v):
        s = q @ np.swapaxes(k, -2, -1) / math.sqrt(q.shape[-1])
        s = s - s.max(-1, keepdims=True)
        p = np.exp(s)
        p = p / p.sum(-1, keepdims=True)
        return p @ v

    if mode == "s":
        def split(z):
            return z.reshape(b, t, n, head, c_h).transpose(0, 1, 3, 2, 4)

        att = attention(split(query), split(key), split(value))
        att = att.transpose(0, 1, 3, 2, 4).reshape(bt, n, c)
    else:
        def split(z):
            z = z.reshape(b, t, 2, h // 2, 2, w // 2, head, c_h)
            z = z.transpose(0, 2, 4, 6, 1, 3, 5, 7)
            return z.reshape(b, 4, head, -1, c_h)

        att = attention(split(query), split(key), split(value))
        att = att.reshape(b, 2, 2, head, t, h // 2, w // 2, c_h)
        att = att.transpose(0, 4, 1, 5, 2, 6, 3, 7).reshape(bt, n, c)

    out = lin(att.reshape(bt * n, c), "wo", "bo").reshape(bt, n, c)
    return out


# -----------------------------------------------------------------------------
# Main
# -----------------------------------------------------------------------------
if __name__ == "__main__":
    d_model, head = 32, 4
    b, t = 2, 2
    bt = b * t

    root = jax.random.PRNGKey(0)
    keys = jax.random.split(root, 10)
    init = lambda k, shape, scale=0.02: (
        scale * jax.random.normal(k, shape, dtype=jnp.float32)
    )
    params = {
        "wq": init(keys[0], (d_model, d_model)), "bq": init(keys[1], (d_model,)),
        "wk": init(keys[2], (d_model, d_model)), "bk": init(keys[3], (d_model,)),
        "wv": init(keys[4], (d_model, d_model)), "bv": init(keys[5], (d_model,)),
        "wo": init(keys[6], (d_model, d_model)), "bo": init(keys[7], (d_model,)),
    }

    packed_f32 = pack_mha_params(params, head, jnp.float32)
    packed_bf16 = pack_mha_params(params, head, jnp.bfloat16)

    # (h, w) = (4, 16): w//2 = 8 -> zero-relayout BlockSpec path for mode 't'.
    # (h, w) = (4, 4):  w//2 = 2 -> wrapper-relayout fallback path for mode 't'.
    configs = (((4, 16), keys[8]), ((4, 4), keys[9]))

    # f32 path (tight tolerance)
    for (h, w), xkey in configs:
        n = h * w
        x = jax.random.normal(xkey, (bt, n, d_model), dtype=jnp.float32)
        for mode in ("s", "t"):
            out = multi_headed_attention(x, packed_f32, t=t, mode=mode,
                                         head=head, h=h, w=w)
            out = jax.block_until_ready(out)
            ref = reference_mha(np.asarray(x), t, params, mode=mode,
                                head=head, h=h, w=w)
            np.testing.assert_allclose(np.asarray(out), ref, rtol=3e-3, atol=3e-4)

    # bf16 MXU-operand path (recommended on v6e/v7x); f32 accumulation.
    h, w = 4, 16
    x = jax.random.normal(keys[8], (bt, h * w, d_model), dtype=jnp.float32)
    for mode in ("s", "t"):
        out = multi_headed_attention(x, packed_bf16, t=t, mode=mode,
                                     head=head, h=h, w=w)
        out = jax.block_until_ready(out)
        ref = reference_mha(np.asarray(x), t, params, mode=mode,
                            head=head, h=h, w=w)
        np.testing.assert_allclose(np.asarray(out), ref, rtol=6e-2, atol=5e-3)

    print("KERNEL_OK")
</pallas_src>

<mosaic_0001>
module attributes {stable_mosaic.version = 11 : i64} {
  func.func @_linear_kernel(%arg0: i32, %arg1: i32, %arg2: i32, %arg3: memref<128x32xf32, #tpu.memory_space<vmem>>, %arg4: memref<32x32xf32, #tpu.memory_space<vmem>>, %arg5: memref<1x32xf32, #tpu.memory_space<vmem>>, %arg6: memref<128x32xf32, #tpu.memory_space<vmem>>, %arg7: memref<128x32xf32, #tpu.memory_space<vmem>>) attributes {dimension_semantics = [#tpu.dimension_semantics<parallel>, #tpu.dimension_semantics<parallel>, #tpu.dimension_semantics<arbitrary>], iteration_bounds = array<i64: 2, 1, 1>, scalar_prefetch = 0 : i64, scratch_operands = 1 : i64, tpu.core_type = #tpu.core_type<tc>, window_params = [{transform_indices = @transform_0, window_bounds = array<i64: 128, 32>}, {transform_indices = @transform_1, window_bounds = array<i64: 32, 32>}, {transform_indices = @transform_2, window_bounds = array<i64: 1, 32>}, {transform_indices = @transform_3, window_bounds = array<i64: 128, 32>}]} {
    %c0_i32 = arith.constant 0 : i32
    %0 = arith.cmpi eq, %arg2, %c0_i32 : i32
    %1 = arith.extui %0 : i1 to i32
    %c0_i32_0 = arith.constant 0 : i32
    %2 = arith.cmpi ne, %1, %c0_i32_0 : i32
    scf.if %2 {
      %cst_10 = arith.constant 0.000000e+00 : f32
      %12 = vector.broadcast %cst_10 : f32 to vector<128x32xf32>
      %c0_11 = arith.constant 0 : index
      %c0_12 = arith.constant 0 : index
      %13 = vector.load %arg7[%c0_11, %c0_12] : memref<128x32xf32, #tpu.memory_space<vmem>>, vector<128x32xf32>
      tpu.vector_store %arg7[%c0_11, %c0_12], %12 {strides = array<i32>} : memref<128x32xf32, #tpu.memory_space<vmem>>, vector<128x32xf32>,
    } else {
    }
    %c0 = arith.constant 0 : index
    %c0_1 = arith.constant 0 : index
    %3 = vector.load %arg7[%c0, %c0_1] : memref<128x32xf32, #tpu.memory_space<vmem>>, vector<128x32xf32>
    %c0_2 = arith.constant 0 : index
    %c0_3 = arith.constant 0 : index
    %4 = vector.load %arg3[%c0_2, %c0_3] : memref<128x32xf32, #tpu.memory_space<vmem>>, vector<128x32xf32>
    %c0_4 = arith.constant 0 : index
    %c0_5 = arith.constant 0 : index
    %5 = vector.load %arg4[%c0_4, %c0_5] : memref<32x32xf32, #tpu.memory_space<vmem>>, vector<32x32xf32>
    %cst = arith.constant dense<0.000000e+00> : vector<128x32xf32>
    %6 = tpu.matmul %4, %5, %cst {dimension_numbers = #tpu.dot_dimension_numbers<[1], [0], [0], [1], [0, 0, 1, 1], [], []>} : vector<128x32xf32>, vector<32x32xf32>, vector<128x32xf32> -> vector<128x32xf32>
    %7 = arith.addf %3, %6 : vector<128x32xf32>
    %c0_6 = arith.constant 0 : index
    %c0_7 = arith.constant 0 : index
    %8 = vector.load %arg7[%c0_6, %c0_7] : memref<128x32xf32, #tpu.memory_space<vmem>>, vector<128x32xf32>
    tpu.vector_store %arg7[%c0_6, %c0_7], %7 {strides = array<i32>} : memref<128x32xf32, #tpu.memory_space<vmem>>, vector<128x32xf32>,
    %c0_i32_8 = arith.constant 0 : i32
    %9 = arith.cmpi eq, %arg2, %c0_i32_8 : i32
    %10 = arith.extui %9 : i1 to i32
    %c0_i32_9 = arith.constant 0 : i32
    %11 = arith.cmpi ne, %10, %c0_i32_9 : i32
    scf.if %11 {
      %c0_10 = arith.constant 0 : index
      %c0_11 = arith.constant 0 : index
      %12 = vector.load %arg7[%c0_10, %c0_11] : memref<128x32xf32, #tpu.memory_space<vmem>>, vector<128x32xf32>
      %c0_12 = arith.constant 0 : index
      %c0_13 = arith.constant 0 : index
      %13 = vector.load %arg5[%c0_12, %c0_13] : memref<1x32xf32, #tpu.memory_space<vmem>>, vector<1x32xf32>
      %14 = vector.broadcast %13 : vector<1x32xf32> to vector<128x32xf32>
      %15 = arith.addf %12, %14 : vector<128x32xf32>
      %c0_14 = arith.constant 0 : index
      %c0_15 = arith.constant 0 : index
      %16 = vector.load %arg6[%c0_14, %c0_15] : memref<128x32xf32, #tpu.memory_space<vmem>>, vector<128x32xf32>
      tpu.vector_store %arg6[%c0_14, %c0_15], %15 {strides = array<i32>} : memref<128x32xf32, #tpu.memory_space<vmem>>, vector<128x32xf32>,
    } else {
    }
    return
  }
  func.func @transform_0(%arg0: i32, %arg1: i32, %arg2: i32) -> (i32, i32) {
    %c0_i32 = arith.constant 0 : i32
    return %arg0, %arg2 : i32, i32
  }
  func.func @transform_1(%arg0: i32, %arg1: i32, %arg2: i32) -> (i32, i32) {
    %c0_i32 = arith.constant 0 : i32
    return %arg2, %arg1 : i32, i32
  }
  func.func @transform_2(%arg0: i32, %arg1: i32, %arg2: i32) -> (i32, i32) {
    %c0_i32 = arith.constant 0 : i32
    %c0_i32_0 = arith.constant 0 : i32
    return %c0_i32, %arg1 : i32, i32
  }
  func.func @transform_3(%arg0: i32, %arg1: i32, %arg2: i32) -> (i32, i32) {
    %c0_i32 = arith.constant 0 : i32
    return %arg0, %arg1 : i32, i32
  }
}

module attributes {stable_mosaic.version = 11 : i64} {
  func.func @_attn_kernel(%arg0: i32, %arg1: memref<2x64x32xf32, #tpu.memory_space<vmem>>, %arg2: memref<2x64x32xf32, #tpu.memory_space<vmem>>, %arg3: memref<2x64x32xf32, #tpu.memory_space<vmem>>, %arg4: memref<2x64x32xf32, #tpu.memory_space<vmem>>) attributes {dimension_semantics = [#tpu.dimension_semantics<parallel>], iteration_bounds = array<i64: 2>, scalar_prefetch = 0 : i64, scratch_operands = 0 : i64, tpu.core_type = #tpu.core_type<tc>, window_params = [{transform_indices = @transform_0, window_bounds = array<i64: 2, 64, 32>}, {transform_indices = @transform_1, window_bounds = array<i64: 2, 64, 32>}, {transform_indices = @transform_2, window_bounds = array<i64: 2, 64, 32>}, {transform_indices = @transform_3, window_bounds = array<i64: 2, 64, 32>}]} {
    %c0 = arith.constant 0 : index
    %c0_0 = arith.constant 0 : index
    %c0_1 = arith.constant 0 : index
    %0 = vector.load %arg1[%c0, %c0_0, %c0_1] : memref<2x64x32xf32, #tpu.memory_space<vmem>>, vector<2x64x32xf32>
    %c0_2 = arith.constant 0 : index
    %c0_3 = arith.constant 0 : index
    %c0_4 = arith.constant 0 : index
    %1 = vector.load %arg2[%c0_2, %c0_3, %c0_4] : memref<2x64x32xf32, #tpu.memory_space<vmem>>, vector<2x64x32xf32>
    %c0_5 = arith.constant 0 : index
    %c0_6 = arith.constant 0 : index
    %c0_7 = arith.constant 0 : index
    %2 = vector.load %arg3[%c0_5, %c0_6, %c0_7] : memref<2x64x32xf32, #tpu.memory_space<vmem>>, vector<2x64x32xf32>
    %3 = vector.extract_strided_slice %0 {offsets = [0, 0, 0], sizes = [2, 64, 8], strides = [1, 1, 1]} : vector<2x64x32xf32> to vector<2x64x8xf32>
    %4 = vector.extract_strided_slice %1 {offsets = [0, 0, 0], sizes = [2, 64, 8], strides = [1, 1, 1]} : vector<2x64x32xf32> to vector<2x64x8xf32>
    %5 = vector.extract_strided_slice %2 {offsets = [0, 0, 0], sizes = [2, 64, 8], strides = [1, 1, 1]} : vector<2x64x32xf32> to vector<2x64x8xf32>
    %cst = arith.constant dense<0.000000e+00> : vector<2x64x64xf32>
    %6 = tpu.matmul %3, %4, %cst {dimension_numbers = #tpu.dot_dimension_numbers<[2], [2], [1], [1], [0, 0, 0, 1, 1, 1], [0], [0]>} : vector<2x64x8xf32>, vector<2x64x8xf32>, vector<2x64x64xf32> -> vector<2x64x64xf32>
    %cst_8 = arith.constant dense<0xFF800000> : vector<2x64xf32>
    %7 = vector.multi_reduction <maximumf>, %6, %cst_8 [2] : vector<2x64x64xf32> to vector<2x64xf32>
    %8 = vector.shape_cast %7 : vector<2x64xf32> to vector<2x64x1xf32>
    %9 = vector.broadcast %8 : vector<2x64x1xf32> to vector<2x64x64xf32>
    %10 = arith.subf %6, %9 : vector<2x64x64xf32>
    %11 = math.exp %10 : vector<2x64x64xf32>
    %cst_9 = arith.constant dense<0.000000e+00> : vector<2x64xf32>
    %12 = vector.multi_reduction <add>, %11, %cst_9 [2] : vector<2x64x64xf32> to vector<2x64xf32>
    %13 = vector.shape_cast %12 : vector<2x64xf32> to vector<2x64x1xf32>
    %14 = tpu.reciprocal %13 {approx = true} : vector<2x64x1xf32> -> vector<2x64x1xf32>
    %15 = vector.broadcast %14 : vector<2x64x1xf32> to vector<2x64x64xf32>
    %16 = arith.mulf %11, %15 : vector<2x64x64xf32>
    %cst_10 = arith.constant dense<0.000000e+00> : vector<2x64x8xf32>
    %17 = tpu.matmul %16, %5, %cst_10 {dimension_numbers = #tpu.dot_dimension_numbers<[2], [1], [1], [2], [0, 0, 0, 1, 1, 2], [0], [0]>} : vector<2x64x64xf32>, vector<2x64x8xf32>, vector<2x64x8xf32> -> vector<2x64x8xf32>
    %18 = vector.extract_strided_slice %0 {offsets = [0, 0, 8], sizes = [2, 64, 8], strides = [1, 1, 1]} : vector<2x64x32xf32> to vector<2x64x8xf32>
    %19 = vector.extract_strided_slice %1 {offsets = [0, 0, 8], sizes = [2, 64, 8], strides = [1, 1, 1]} : vector<2x64x32xf32> to vector<2x64x8xf32>
    %20 = vector.extract_strided_slice %2 {offsets = [0, 0, 8], sizes = [2, 64, 8], strides = [1, 1, 1]} : vector<2x64x32xf32> to vector<2x64x8xf32>
    %cst_11 = arith.constant dense<0.000000e+00> : vector<2x64x64xf32>
    %21 = tpu.matmul %18, %19, %cst_11 {dimension_numbers = #tpu.dot_dimension_numbers<[2], [2], [1], [1], [0, 0, 0, 1, 1, 1], [0], [0]>} : vector<2x64x8xf32>, vector<2x64x8xf32>, vector<2x64x64xf32> -> vector<2x64x64xf32>
    %cst_12 = arith.constant dense<0xFF800000> : vector<2x64xf32>
    %22 = vector.multi_reduction <maximumf>, %21, %cst_12 [2] : vector<2x64x64xf32> to vector<2x64xf32>
    %23 = vector.shape_cast %22 : vector<2x64xf32> to vector<2x64x1xf32>
    %24 = vector.broadcast %23 : vector<2x64x1xf32> to vector<2x64x64xf32>
    %25 = arith.subf %21, %24 : vector<2x64x64xf32>
    %26 = math.exp %25 : vector<2x64x64xf32>
    %cst_13 = arith.constant dense<0.000000e+00> : vector<2x64xf32>
    %27 = vector.multi_reduction <add>, %26, %cst_13 [2] : vector<2x64x64xf32> to vector<2x64xf32>
    %28 = vector.shape_cast %27 : vector<2x64xf32> to vector<2x64x1xf32>
    %29 = tpu.reciprocal %28 {approx = true} : vector<2x64x1xf32> -> vector<2x64x1xf32>
    %30 = vector.broadcast %29 : vector<2x64x1xf32> to vector<2x64x64xf32>
    %31 = arith.mulf %26, %30 : vector<2x64x64xf32>
    %cst_14 = arith.constant dense<0.000000e+00> : vector<2x64x8xf32>
    %32 = tpu.matmul %31, %20, %cst_14 {dimension_numbers = #tpu.dot_dimension_numbers<[2], [1], [1], [2], [0, 0, 0, 1, 1, 2], [0], [0]>} : vector<2x64x64xf32>, vector<2x64x8xf32>, vector<2x64x8xf32> -> vector<2x64x8xf32>
    %33 = vector.extract_strided_slice %0 {offsets = [0, 0, 16], sizes = [2, 64, 8], strides = [1, 1, 1]} : vector<2x64x32xf32> to vector<2x64x8xf32>
    %34 = vector.extract_strided_slice %1 {offsets = [0, 0, 16], sizes = [2, 64, 8], strides = [1, 1, 1]} : vector<2x64x32xf32> to vector<2x64x8xf32>
    %35 = vector.extract_strided_slice %2 {offsets = [0, 0, 16], sizes = [2, 64, 8], strides = [1, 1, 1]} : vector<2x64x32xf32> to vector<2x64x8xf32>
    %cst_15 = arith.constant dense<0.000000e+00> : vector<2x64x64xf32>
    %36 = tpu.matmul %33, %34, %cst_15 {dimension_numbers = #tpu.dot_dimension_numbers<[2], [2], [1], [1], [0, 0, 0, 1, 1, 1], [0], [0]>} : vector<2x64x8xf32>, vector<2x64x8xf32>, vector<2x64x64xf32> -> vector<2x64x64xf32>
    %cst_16 = arith.constant dense<0xFF800000> : vector<2x64xf32>
    %37 = vector.multi_reduction <maximumf>, %36, %cst_16 [2] : vector<2x64x64xf32> to vector<2x64xf32>
    %38 = vector.shape_cast %37 : vector<2x64xf32> to vector<2x64x1xf32>
    %39 = vector.broadcast %38 : vector<2x64x1xf32> to vector<2x64x64xf32>
    %40 = arith.subf %36, %39 : vector<2x64x64xf32>
    %41 = math.exp %40 : vector<2x64x64xf32>
    %cst_17 = arith.constant dense<0.000000e+00> : vector<2x64xf32>
    %42 = vector.multi_reduction <add>, %41, %cst_17 [2] : vector<2x64x64xf32> to vector<2x64xf32>
    %43 = vector.shape_cast %42 : vector<2x64xf32> to vector<2x64x1xf32>
    %44 = tpu.reciprocal %43 {approx = true} : vector<2x64x1xf32> -> vector<2x64x1xf32>
    %45 = vector.broadcast %44 : vector<2x64x1xf32> to vector<2x64x64xf32>
    %46 = arith.mulf %41, %45 : vector<2x64x64xf32>
    %cst_18 = arith.constant dense<0.000000e+00> : vector<2x64x8xf32>
    %47 = tpu.matmul %46, %35, %cst_18 {dimension_numbers = #tpu.dot_dimension_numbers<[2], [1], [1], [2], [0, 0, 0, 1, 1, 2], [0], [0]>} : vector<2x64x64xf32>, vector<2x64x8xf32>, vector<2x64x8xf32> -> vector<2x64x8xf32>
    %48 = vector.extract_strided_slice %0 {offsets = [0, 0, 24], sizes = [2, 64, 8], strides = [1, 1, 1]} : vector<2x64x32xf32> to vector<2x64x8xf32>
    %49 = vector.extract_strided_slice %1 {offsets = [0, 0, 24], sizes = [2, 64, 8], strides = [1, 1, 1]} : vector<2x64x32xf32> to vector<2x64x8xf32>
    %50 = vector.extract_strided_slice %2 {offsets = [0, 0, 24], sizes = [2, 64, 8], strides = [1, 1, 1]} : vector<2x64x32xf32> to vector<2x64x8xf32>
    %cst_19 = arith.constant dense<0.000000e+00> : vector<2x64x64xf32>
    %51 = tpu.matmul %48, %49, %cst_19 {dimension_numbers = #tpu.dot_dimension_numbers<[2], [2], [1], [1], [0, 0, 0, 1, 1, 1], [0], [0]>} : vector<2x64x8xf32>, vector<2x64x8xf32>, vector<2x64x64xf32> -> vector<2x64x64xf32>
    %cst_20 = arith.constant dense<0xFF800000> : vector<2x64xf32>
    %52 = vector.multi_reduction <maximumf>, %51, %cst_20 [2] : vector<2x64x64xf32> to vector<2x64xf32>
    %53 = vector.shape_cast %52 : vector<2x64xf32> to vector<2x64x1xf32>
    %54 = vector.broadcast %53 : vector<2x64x1xf32> to vector<2x64x64xf32>
    %55 = arith.subf %51, %54 : vector<2x64x64xf32>
    %56 = math.exp %55 : vector<2x64x64xf32>
    %cst_21 = arith.constant dense<0.000000e+00> : vector<2x64xf32>
    %57 = vector.multi_reduction <add>, %56, %cst_21 [2] : vector<2x64x64xf32> to vector<2x64xf32>
    %58 = vector.shape_cast %57 : vector<2x64xf32> to vector<2x64x1xf32>
    %59 = tpu.reciprocal %58 {approx = true} : vector<2x64x1xf32> -> vector<2x64x1xf32>
    %60 = vector.broadcast %59 : vector<2x64x1xf32> to vector<2x64x64xf32>
    %61 = arith.mulf %56, %60 : vector<2x64x64xf32>
    %cst_22 = arith.constant dense<0.000000e+00> : vector<2x64x8xf32>
    %62 = tpu.matmul %61, %50, %cst_22 {dimension_numbers = #tpu.dot_dimension_numbers<[2], [1], [1], [2], [0, 0, 0, 1, 1, 2], [0], [0]>} : vector<2x64x64xf32>, vector<2x64x8xf32>, vector<2x64x8xf32> -> vector<2x64x8xf32>
    %63 = tpu.concatenate %17, %32, %47, %62 in 2 : vector<2x64x8xf32>, vector<2x64x8xf32>, vector<2x64x8xf32>, vector<2x64x8xf32> -> vector<2x64x32xf32>
    %c0_23 = arith.constant 0 : index
    %c0_24 = arith.constant 0 : index
    %c0_25 = arith.constant 0 : index
    %64 = vector.load %arg4[%c0_23, %c0_24, %c0_25] : memref<2x64x32xf32, #tpu.memory_space<vmem>>, vector<2x64x32xf32>
    tpu.vector_store %arg4[%c0_23, %c0_24, %c0_25], %63 {strides = array<i32>} : memref<2x64x32xf32, #tpu.memory_space<vmem>>, vector<2x64x32xf32>,
    return
  }
  func.func @transform_0(%arg0: i32) -> (i32, i32, i32) {
    %c0_i32 = arith.constant 0 : i32
    %c0_i32_0 = arith.constant 0 : i32
    %c0_i32_1 = arith.constant 0 : i32
    return %arg0, %c0_i32, %c0_i32_0 : i32, i32, i32
  }
  func.func @transform_1(%arg0: i32) -> (i32, i32, i32) {
    %c0_i32 = arith.constant 0 : i32
    %c0_i32_0 = arith.constant 0 : i32
    %c0_i32_1 = arith.constant 0 : i32
    return %arg0, %c0_i32, %c0_i32_0 : i32, i32, i32
  }
  func.func @transform_2(%arg0: i32) -> (i32, i32, i32) {
    %c0_i32 = arith.constant 0 : i32
    %c0_i32_0 = arith.constant 0 : i32
    %c0_i32_1 = arith.constant 0 : i32
    return %arg0, %c0_i32, %c0_i32_0 : i32, i32, i32
  }
  func.func @transform_3(%arg0: i32) -> (i32, i32, i32) {
    %c0_i32 = arith.constant 0 : i32
    %c0_i32_0 = arith.constant 0 : i32
    %c0_i32_1 = arith.constant 0 : i32
    return %arg0, %c0_i32, %c0_i32_0 : i32, i32, i32
  }
}

module attributes {stable_mosaic.version = 11 : i64} {
  func.func @_qkv_linear_kernel(%arg0: i32, %arg1: i32, %arg2: i32, %arg3: memref<128x32xf32, #tpu.memory_space<vmem>>, %arg4: memref<32x32xf32, #tpu.memory_space<vmem>>, %arg5: memref<32x32xf32, #tpu.memory_space<vmem>>, %arg6: memref<32x32xf32, #tpu.memory_space<vmem>>, %arg7: memref<1x32xf32, #tpu.memory_space<vmem>>, %arg8: memref<1x32xf32, #tpu.memory_space<vmem>>, %arg9: memref<1x32xf32, #tpu.memory_space<vmem>>, %arg10: memref<128x32xf32, #tpu.memory_space<vmem>>, %arg11: memref<128x32xf32, #tpu.memory_space<vmem>>, %arg12: memref<128x32xf32, #tpu.memory_space<vmem>>, %arg13: memref<128x32xf32, #tpu.memory_space<vmem>>, %arg14: memref<128x32xf32, #tpu.memory_space<vmem>>, %arg15: memref<128x32xf32, #tpu.memory_space<vmem>>) attributes {dimension_semantics = [#tpu.dimension_semantics<parallel>, #tpu.dimension_semantics<parallel>, #tpu.dimension_semantics<arbitrary>], iteration_bounds = array<i64: 2, 1, 1>, scalar_prefetch = 0 : i64, scratch_operands = 3 : i64, tpu.core_type = #tpu.core_type<tc>, window_params = [{transform_indices = @transform_0, window_bounds = array<i64: 128, 32>}, {transform_indices = @transform_1, window_bounds = array<i64: 32, 32>}, {transform_indices = @transform_2, window_bounds = array<i64: 32, 32>}, {transform_indices = @transform_3, window_bounds = array<i64: 32, 32>}, {transform_indices = @transform_4, window_bounds = array<i64: 1, 32>}, {transform_indices = @transform_5, window_bounds = array<i64: 1, 32>}, {transform_indices = @transform_6, window_bounds = array<i64: 1, 32>}, {transform_indices = @transform_7, window_bounds = array<i64: 128, 32>}, {transform_indices = @transform_8, window_bounds = array<i64: 128, 32>}, {transform_indices = @transform_9, window_bounds = array<i64: 128, 32>}]} {
    %c0_i32 = arith.constant 0 : i32
    %0 = arith.cmpi eq, %arg2, %c0_i32 : i32
    %1 = arith.extui %0 : i1 to i32
    %c0_i32_0 = arith.constant 0 : i32
    %2 = arith.cmpi ne, %1, %c0_i32_0 : i32
    scf.if %2 {
      %cst_24 = arith.constant 0.000000e+00 : f32
      %22 = vector.broadcast %cst_24 : f32 to vector<128x32xf32>
      %c0_25 = arith.constant 0 : index
      %c0_26 = arith.constant 0 : index
      %23 = vector.load %arg13[%c0_25, %c0_26] : memref<128x32xf32, #tpu.memory_space<vmem>>, vector<128x32xf32>
      tpu.vector_store %arg13[%c0_25, %c0_26], %22 {strides = array<i32>} : memref<128x32xf32, #tpu.memory_space<vmem>>, vector<128x32xf32>,
      %cst_27 = arith.constant 0.000000e+00 : f32
      %24 = vector.broadcast %cst_27 : f32 to vector<128x32xf32>
      %c0_28 = arith.constant 0 : index
      %c0_29 = arith.constant 0 : index
      %25 = vector.load %arg14[%c0_28, %c0_29] : memref<128x32xf32, #tpu.memory_space<vmem>>, vector<128x32xf32>
      tpu.vector_store %arg14[%c0_28, %c0_29], %24 {strides = array<i32>} : memref<128x32xf32, #tpu.memory_space<vmem>>, vector<128x32xf32>,
      %cst_30 = arith.constant 0.000000e+00 : f32
      %26 = vector.broadcast %cst_30 : f32 to vector<128x32xf32>
      %c0_31 = arith.constant 0 : index
      %c0_32 = arith.constant 0 : index
      %27 = vector.load %arg15[%c0_31, %c0_32] : memref<128x32xf32, #tpu.memory_space<vmem>>, vector<128x32xf32>
      tpu.vector_store %arg15[%c0_31, %c0_32], %26 {strides = array<i32>} : memref<128x32xf32, #tpu.memory_space<vmem>>, vector<128x32xf32>,
    } else {
    }
    %c0 = arith.constant 0 : index
    %c0_1 = arith.constant 0 : index
    %3 = vector.load %arg3[%c0, %c0_1] : memref<128x32xf32, #tpu.memory_space<vmem>>, vector<128x32xf32>
    %c0_2 = arith.constant 0 : index
    %c0_3 = arith.constant 0 : index
    %4 = vector.load %arg13[%c0_2, %c0_3] : memref<128x32xf32, #tpu.memory_space<vmem>>, vector<128x32xf32>
    %c0_4 = arith.constant 0 : index
    %c0_5 = arith.constant 0 : index
    %5 = vector.load %arg4[%c0_4, %c0_5] : memref<32x32xf32, #tpu.memory_space<vmem>>, vector<32x32xf32>
    %cst = arith.constant dense<0.000000e+00> : vector<128x32xf32>
    %6 = tpu.matmul %3, %5, %cst {dimension_numbers = #tpu.dot_dimension_numbers<[1], [0], [0], [1], [0, 0, 1, 1], [], []>} : vector<128x32xf32>, vector<32x32xf32>, vector<128x32xf32> -> vector<128x32xf32>
    %7 = arith.addf %4, %6 : vector<128x32xf32>
    %c0_6 = arith.constant 0 : index
    %c0_7 = arith.constant 0 : index
    %8 = vector.load %arg13[%c0_6, %c0_7] : memref<128x32xf32, #tpu.memory_space<vmem>>, vector<128x32xf32>
    tpu.vector_store %arg13[%c0_6, %c0_7], %7 {strides = array<i32>} : memref<128x32xf32, #tpu.memory_space<vmem>>, vector<128x32xf32>,
    %c0_8 = arith.constant 0 : index
    %c0_9 = arith.constant 0 : index
    %9 = vector.load %arg14[%c0_8, %c0_9] : memref<128x32xf32, #tpu.memory_space<vmem>>, vector<128x32xf32>
    %c0_10 = arith.constant 0 : index
    %c0_11 = arith.constant 0 : index
    %10 = vector.load %arg5[%c0_10, %c0_11] : memref<32x32xf32, #tpu.memory_space<vmem>>, vector<32x32xf32>
    %cst_12 = arith.constant dense<0.000000e+00> : vector<128x32xf32>
    %11 = tpu.matmul %3, %10, %cst_12 {dimension_numbers = #tpu.dot_dimension_numbers<[1], [0], [0], [1], [0, 0, 1, 1], [], []>} : vector<128x32xf32>, vector<32x32xf32>, vector<128x32xf32> -> vector<128x32xf32>
    %12 = arith.addf %9, %11 : vector<128x32xf32>
    %c0_13 = arith.constant 0 : index
    %c0_14 = arith.constant 0 : index
    %13 = vector.load %arg14[%c0_13, %c0_14] : memref<128x32xf32, #tpu.memory_space<vmem>>, vector<128x32xf32>
    tpu.vector_store %arg14[%c0_13, %c0_14], %12 {strides = array<i32>} : memref<128x32xf32, #tpu.memory_space<vmem>>, vector<128x32xf32>,
    %c0_15 = arith.constant 0 : index
    %c0_16 = arith.constant 0 : index
    %14 = vector.load %arg15[%c0_15, %c0_16] : memref<128x32xf32, #tpu.memory_space<vmem>>, vector<128x32xf32>
    %c0_17 = arith.constant 0 : index
    %c0_18 = arith.constant 0 : index
    %15 = vector.load %arg6[%c0_17, %c0_18] : memref<32x32xf32, #tpu.memory_space<vmem>>, vector<32x32xf32>
    %cst_19 = arith.constant dense<0.000000e+00> : vector<128x32xf32>
    %16 = tpu.matmul %3, %15, %cst_19 {dimension_numbers = #tpu.dot_dimension_numbers<[1], [0], [0], [1], [0, 0, 1, 1], [], []>} : vector<128x32xf32>, vector<32x32xf32>, vector<128x32xf32> -> vector<128x32xf32>
    %17 = arith.addf %14, %16 : vector<128x32xf32>
    %c0_20 = arith.constant 0 : index
    %c0_21 = arith.constant 0 : index
    %18 = vector.load %arg15[%c0_20, %c0_21] : memref<128x32xf32, #tpu.memory_space<vmem>>, vector<128x32xf32>
    tpu.vector_store %arg15[%c0_20, %c0_21], %17 {strides = array<i32>} : memref<128x32xf32, #tpu.memory_space<vmem>>, vector<128x32xf32>,
    %c0_i32_22 = arith.constant 0 : i32
    %19 = arith.cmpi eq, %arg2, %c0_i32_22 : i32
    %20 = arith.extui %19 : i1 to i32
    %c0_i32_23 = arith.constant 0 : i32
    %21 = arith.cmpi ne, %20, %c0_i32_23 : i32
    scf.if %21 {
      %c0_24 = arith.constant 0 : index
      %c0_25 = arith.constant 0 : index
      %22 = vector.load %arg13[%c0_24, %c0_25] : memref<128x32xf32, #tpu.memory_space<vmem>>, vector<128x32xf32>
      %c0_26 = arith.constant 0 : index
      %c0_27 = arith.constant 0 : index
      %23 = vector.load %arg7[%c0_26, %c0_27] : memref<1x32xf32, #tpu.memory_space<vmem>>, vector<1x32xf32>
      %24 = vector.broadcast %23 : vector<1x32xf32> to vector<128x32xf32>
      %25 = arith.addf %22, %24 : vector<128x32xf32>
      %c0_28 = arith.constant 0 : index
      %c0_29 = arith.constant 0 : index
      %26 = vector.load %arg10[%c0_28, %c0_29] : memref<128x32xf32, #tpu.memory_space<vmem>>, vector<128x32xf32>
      tpu.vector_store %arg10[%c0_28, %c0_29], %25 {strides = array<i32>} : memref<128x32xf32, #tpu.memory_space<vmem>>, vector<128x32xf32>,
      %c0_30 = arith.constant 0 : index
      %c0_31 = arith.constant 0 : index
      %27 = vector.load %arg14[%c0_30, %c0_31] : memref<128x32xf32, #tpu.memory_space<vmem>>, vector<128x32xf32>
      %c0_32 = arith.constant 0 : index
      %c0_33 = arith.constant 0 : index
      %28 = vector.load %arg8[%c0_32, %c0_33] : memref<1x32xf32, #tpu.memory_space<vmem>>, vector<1x32xf32>
      %29 = vector.broadcast %28 : vector<1x32xf32> to vector<128x32xf32>
      %30 = arith.addf %27, %29 : vector<128x32xf32>
      %c0_34 = arith.constant 0 : index
      %c0_35 = arith.constant 0 : index
      %31 = vector.load %arg11[%c0_34, %c0_35] : memref<128x32xf32, #tpu.memory_space<vmem>>, vector<128x32xf32>
      tpu.vector_store %arg11[%c0_34, %c0_35], %30 {strides = array<i32>} : memref<128x32xf32, #tpu.memory_space<vmem>>, vector<128x32xf32>,
      %c0_36 = arith.constant 0 : index
      %c0_37 = arith.constant 0 : index
      %32 = vector.load %arg15[%c0_36, %c0_37] : memref<128x32xf32, #tpu.memory_space<vmem>>, vector<128x32xf32>
      %c0_38 = arith.constant 0 : index
      %c0_39 = arith.constant 0 : index
      %33 = vector.load %arg9[%c0_38, %c0_39] : memref<1x32xf32, #tpu.memory_space<vmem>>, vector<1x32xf32>
      %34 = vector.broadcast %33 : vector<1x32xf32> to vector<128x32xf32>
      %35 = arith.addf %32, %34 : vector<128x32xf32>
      %c0_40 = arith.constant 0 : index
      %c0_41 = arith.constant 0 : index
      %36 = vector.load %arg12[%c0_40, %c0_41] : memref<128x32xf32, #tpu.memory_space<vmem>>, vector<128x32xf32>
      tpu.vector_store %arg12[%c0_40, %c0_41], %35 {strides = array<i32>} : memref<128x32xf32, #tpu.memory_space<vmem>>, vector<128x32xf32>,
    } else {
    }
    return
  }
  func.func @transform_0(%arg0: i32, %arg1: i32, %arg2: i32) -> (i32, i32) {
    %c0_i32 = arith.constant 0 : i32
    return %arg0, %arg2 : i32, i32
  }
  func.func @transform_1(%arg0: i32, %arg1: i32, %arg2: i32) -> (i32, i32) {
    %c0_i32 = arith.constant 0 : i32
    return %arg2, %arg1 : i32, i32
  }
  func.func @transform_2(%arg0: i32, %arg1: i32, %arg2: i32) -> (i32, i32) {
    %c0_i32 = arith.constant 0 : i32
    return %arg2, %arg1 : i32, i32
  }
  func.func @transform_3(%arg0: i32, %arg1: i32, %arg2: i32) -> (i32, i32) {
    %c0_i32 = arith.constant 0 : i32
    return %arg2, %arg1 : i32, i32
  }
  func.func @transform_4(%arg0: i32, %arg1: i32, %arg2: i32) -> (i32, i32) {
    %c0_i32 = arith.constant 0 : i32
    %c0_i32_0 = arith.constant 0 : i32
    return %c0_i32, %arg1 : i32, i32
  }
  func.func @transform_5(%arg0: i32, %arg1: i32, %arg2: i32) -> (i32, i32) {
    %c0_i32 = arith.constant 0 : i32
    %c0_i32_0 = arith.constant 0 : i32
    return %c0_i32, %arg1 : i32, i32
  }
  func.func @transform_6(%arg0: i32, %arg1: i32, %arg2: i32) -> (i32, i32) {
    %c0_i32 = arith.constant 0 : i32
    %c0_i32_0 = arith.constant 0 : i32
    return %c0_i32, %arg1 : i32, i32
  }
  func.func @transform_7(%arg0: i32, %arg1: i32, %arg2: i32) -> (i32, i32) {
    %c0_i32 = arith.constant 0 : i32
    return %arg0, %arg1 : i32, i32
  }
  func.func @transform_8(%arg0: i32, %arg1: i32, %arg2: i32) -> (i32, i32) {
    %c0_i32 = arith.constant 0 : i32
    return %arg0, %arg1 : i32, i32
  }
  func.func @transform_9(%arg0: i32, %arg1: i32, %arg2: i32) -> (i32, i32) {
    %c0_i32 = arith.constant 0 : i32
    return %arg0, %arg1 : i32, i32
  }
}

</mosaic_0001>

<llo_original>
// kernel: multi_headed_attention.5
$region0: #{multi_headed_attention.5}
  #allocation0 [shape = 'u32[]', space=smem, size = 0x4, offset = 0x4, fixed_abs, tag = 'smem constant byte address 0x4 - core index']
  #allocation1 [shape = 'u32[144,128]{1,0:T(1,128)}', space=vmem, size = 0x12000, scoped, tag = 'internal scratch']
  #allocation2 [shape = 'f32[128,32]{1,0:T(8,128)}', space=vmem, size = 0x10000, scoped, tag = 'scratch operand']
  %s0 = inlined_call_operand.vmem [shape: f32[256,32], index: 0, kind: input, shape index: {}]
  %s1 = inlined_call_operand.vmem [shape: f32[32,32], index: 1, kind: input, shape index: {}]
  %s2 = inlined_call_operand.vmem [shape: f32[1,32], index: 2, kind: input, shape index: {}]
  %s3 = inlined_call_operand.vmem [shape: f32[256,32], index: 3, kind: output, shape index: {}]
  %s4 = sld [smem:[#allocation0]]
  $region53: #{multi_headed_attention.5} parent=0
    _
  %s6 = ssub.s32 1, %s4
  %s7 = scalar_select 0, %s6, %s4
  loop: start=0, step=1, limit=4
  $region2: #{multi_headed_attention.5} parent=0 // loop_pre_header
    _
  $region3: #{multi_headed_attention.5} parent=0 // loop_header
    %s9 = sphi 0, %s13
    %p10 = scmp.ge.s32.totalorder %s9, 4
    %s16 = sphi 0, %s35
    %s17 = sphi 0, %s31
    %s18 = sphi 0, %s27
    %s19 = sphi 0, %s16
    %s20 = sphi 0, %s17
    %s21 = sphi 0, %s18
    %s22 = sphi 0, %s19
    %s23 = sphi 0, %s20
    %s24 = sphi 0, %s21
    %s40 = sphi 0, %s42
    %s43 = sphi 0, %s40
    %s44 = sphi 0, %s43
    %s60 = sphi 0, %s44
    %s68 = sphi 0, %s70
    %s71 = sphi 0, %s68
    %s72 = sphi 0, %s71
    %s88 = sphi 0, %s72
    %s94 = sphi 0, %s96
    %s97 = sphi 0, %s94
    %s98 = sphi 0, %s97
    %s114 = sphi 0, %s98
    %s122 = sphi 0, %s124
    %s125 = sphi 0, %s122
    %s126 = sphi 0, %s125
    %s142 = sphi 0, %s126
  $region4: #{multi_headed_attention.5} parent=0 // loop_header_branch
    %12 = sbr.rel (%p10) target = $region8
  $region5: #{multi_headed_attention.5} parent=0 // loop_body
    %s14 = ssub.s32 %s9, 1
    %s15 = ssub.s32 %s9, 2
    %s25 = sadd.s32 1, %s18
    %p26 = scmp.ge.s32.totalorder %s25, 1
    %s27 = scalar_select %p26, 0, %s25
    %s28 = sadd.s32 1, %s17
    %s29 = scalar_select %p26, %s28, %s17
    %p30 = scmp.ge.s32.totalorder %s29, 1
    %s31 = scalar_select %p30, 0, %s29
    %s32 = sadd.s32 1, %s16
    %s33 = scalar_select %p30, %s32, %s16
    %p34 = scmp.ge.s32.totalorder %s33, 2
    %s35 = scalar_select %p34, 0, %s33
    %s36 = ssub.s32 %s16, %s35
    %s37 = ssub.s32 %s18, %s27
    %s38 = sor.u32 %s36, %s37
    %p39 = scmp.eq.s32.totalorder %s38, 0
    %s41 = sadd.s32 %s40, 1
    %s42 = scalar_select %p39, %s40, %s41
    %p45 = pneg %p39
    %p46 = scmp.eq.s32.totalorder %s9, 1
    %p47 = por %p45, %p46
    %p48 = scmp.ne.s32.totalorder %s40, %s43
    %p49 = scmp.eq.s32.totalorder %s9, 0
    %p50 = por %p48, %p49
    %p51 = scmp.ne.s32.totalorder %s40, %s43
    %p52 = scmp.eq.s32.totalorder %s14, 1
    %p53 = por %p51, %p52
    %p54 = scmp.ne.s32.totalorder %s43, %s44
    %p55 = scmp.eq.s32.totalorder %s14, 0
    %p56 = por %p54, %p55
    %p57 = scmp.ne.s32.totalorder %s43, %s44
    %p58 = scmp.eq.s32.totalorder %s15, 1
    %p59 = por %p57, %p58
    %p61 = scmp.ne.s32.totalorder %s44, %s60
    %p62 = scmp.eq.s32.totalorder %s15, 0
    %p63 = por %p61, %p62
    %s64 = ssub.s32 %s18, %s27
    %s65 = ssub.s32 %s17, %s31
    %s66 = sor.u32 %s64, %s65
    %p67 = scmp.eq.s32.totalorder %s66, 0
    %s69 = sadd.s32 %s68, 1
    %s70 = scalar_select %p67, %s68, %s69
    %p73 = pneg %p67
    %p74 = scmp.eq.s32.totalorder %s9, 1
    %p75 = por %p73, %p74
    %p76 = scmp.ne.s32.totalorder %s68, %s71
    %p77 = scmp.eq.s32.totalorder %s9, 0
    %p78 = por %p76, %p77
    %p79 = scmp.ne.s32.totalorder %s68, %s71
    %p80 = scmp.eq.s32.totalorder %s14, 1
    %p81 = por %p79, %p80
    %p82 = scmp.ne.s32.totalorder %s71, %s72
    %p83 = scmp.eq.s32.totalorder %s14, 0
    %p84 = por %p82, %p83
    %p85 = scmp.ne.s32.totalorder %s71, %s72
    %p86 = scmp.eq.s32.totalorder %s15, 1
    %p87 = por %p85, %p86
    %p89 = scmp.ne.s32.totalorder %s72, %s88
    %p90 = scmp.eq.s32.totalorder %s15, 0
    %p91 = por %p89, %p90
    %s92 = ssub.s32 %s17, %s31
    %p93 = scmp.eq.s32.totalorder %s92, 0
    %s95 = sadd.s32 %s94, 1
    %s96 = scalar_select %p93, %s94, %s95
    %p99 = pneg %p93
    %p100 = scmp.eq.s32.totalorder %s9, 1
    %p101 = por %p99, %p100
    %p102 = scmp.ne.s32.totalorder %s94, %s97
    %p103 = scmp.eq.s32.totalorder %s9, 0
    %p104 = por %p102, %p103
    %p105 = scmp.ne.s32.totalorder %s94, %s97
    %p106 = scmp.eq.s32.totalorder %s14, 1
    %p107 = por %p105, %p106
    %p108 = scmp.ne.s32.totalorder %s97, %s98
    %p109 = scmp.eq.s32.totalorder %s14, 0
    %p110 = por %p108, %p109
    %p111 = scmp.ne.s32.totalorder %s97, %s98
    %p112 = scmp.eq.s32.totalorder %s15, 1
    %p113 = por %p111, %p112
    %p115 = scmp.ne.s32.totalorder %s98, %s114
    %p116 = scmp.eq.s32.totalorder %s15, 0
    %p117 = por %p115, %p116
    %s118 = ssub.s32 %s16, %s35
    %s119 = ssub.s32 %s17, %s31
    %s120 = sor.u32 %s118, %s119
    %p121 = scmp.eq.s32.totalorder %s120, 0
    %s123 = sadd.s32 %s122, 1
    %s124 = scalar_select %p121, %s122, %s123
    %p127 = pneg %p121
    %p128 = scmp.eq.s32.totalorder %s9, 1
    %p129 = por %p127, %p128
    %p130 = scmp.ne.s32.totalorder %s122, %s125
    %p131 = scmp.eq.s32.totalorder %s9, 0
    %p132 = por %p130, %p131
    %p133 = scmp.ne.s32.totalorder %s122, %s125
    %p134 = scmp.eq.s32.totalorder %s14, 1
    %p135 = por %p133, %p134
    %p136 = scmp.ne.s32.totalorder %s125, %s126
    %p137 = scmp.eq.s32.totalorder %s14, 0
    %p138 = por %p136, %p137
    %p139 = scmp.ne.s32.totalorder %s125, %s126
    %p140 = scmp.eq.s32.totalorder %s15, 1
    %p141 = por %p139, %p140
    %p143 = scmp.ne.s32.totalorder %s126, %s142
    %p144 = scmp.eq.s32.totalorder %s15, 0
    %p145 = por %p143, %p144
    %p146 = scmp.le.s32.totalorder 1, %s9
    %p147 = scmp.lt.s32.totalorder %s9, 3
    %p148 = pnand %p146, %p147
    %p149 = pneg %p148
    // Predicated region
    $region9: #{multi_headed_attention.5} parent=5 // pred_check
      _
    $region10: #{multi_headed_attention.5} parent=5 // pred_check_branch
      %151 = sbr.rel (%p148) target = $region12
    $region11: #{multi_headed_attention.5} parent=5 // pred_region
      %s152 = ssub.s32 %s9, 1
      // Predicated region
      $region13: #{multi_headed_attention.5} parent=11 // pred_check
        %p153 = pneg %p84
      $region14: #{multi_headed_attention.5} parent=11 // pred_check_branch
        %155 = sbr.rel (%p153) target = $region16
      $region15: #{multi_headed_attention.5} parent=11 // pred_region
        %s156 = smul.u32 4, %s21
        %p157 = scmp.lt.s32.totalorder %s156, 3
        %s158 = scalar_select %p157, %s156, 3
        %p159 = scmp.lt.s32.totalorder %s20, 0
        %s160 = scalar_select %p159, %s20, 0
        %s161 = sadd.s32 %s160, %s158
        %s162 = smul.addr %s161, 8
        %s163 = scalar_lea.vmem %s1, %s162
        %s164 = smul.u32 4, %s21
      $region16: #{multi_headed_attention.5} parent=11 // pred_fallthru
        _
      // Predicated region
      $region17: #{multi_headed_attention.5} parent=11 // pred_check
        %p165 = pneg %p110
      $region18: #{multi_headed_attention.5} parent=11 // pred_check_branch
        %167 = sbr.rel (%p165) target = $region20
      $region19: #{multi_headed_attention.5} parent=11 // pred_region
        %p168 = scmp.lt.s32.totalorder %s20, 0
        %s169 = scalar_select %p168, %s20, 0
        %s170 = scalar_lea.vmem %s2, %s169
      $region20: #{multi_headed_attention.5} parent=11 // pred_fallthru
        _
    $region12: #{multi_headed_attention.5} parent=5 // pred_fallthru
      _
    %p171 = scmp.lt.s32.totalorder %s9, 2
    // Predicated region
    $region21: #{multi_headed_attention.5} parent=5 // pred_check
      %p172 = pneg %p171
    $region22: #{multi_headed_attention.5} parent=5 // pred_check_branch
      %174 = sbr.rel (%p172) target = $region24
    $region23: #{multi_headed_attention.5} parent=5 // pred_region
      // Predicated region
      $region25: #{multi_headed_attention.5} parent=23 // pred_check
        %p175 = pneg %p50
      $region26: #{multi_headed_attention.5} parent=23 // pred_check_branch
        %177 = sbr.rel (%p175) target = $region28
      $region27: #{multi_headed_attention.5} parent=23 // pred_region
        %s178 = smul.u32 16, %s16
        %p179 = scmp.lt.s32.totalorder %s178, 31
        %s180 = scalar_select %p179, %s178, 31
        %p181 = scmp.lt.s32.totalorder %s18, 0
        %s182 = scalar_select %p181, %s18, 0
        %s183 = sadd.s32 %s182, %s180
        %s184 = smul.addr %s183, 8
        %s185 = scalar_lea.vmem %s0, %s184
        %s186 = smul.u32 16, %s16
      $region28: #{multi_headed_attention.5} parent=23 // pred_fallthru
        _
    $region24: #{multi_headed_attention.5} parent=5 // pred_fallthru
      _
    %p187 = scmp.le.s32.totalorder 1, %s9
    %p188 = scmp.lt.s32.totalorder %s9, 3
    %p189 = pnand %p187, %p188
    %p190 = pneg %p189
    // Predicated region
    $region29: #{multi_headed_attention.5} parent=5 // pred_check
      _
    $region30: #{multi_headed_attention.5} parent=5 // pred_check_branch
      %192 = sbr.rel (%p189) target = $region32
    $region31: #{multi_headed_attention.5} parent=5 // pred_region
      %s193 = ssub.s32 %s9, 1
      %s194 = smul.u32 16, %s19
      %p195 = scmp.lt.s32.totalorder %s194, 31
      %s196 = scalar_select %p195, %s194, 31
      %p197 = scmp.lt.s32.totalorder %s21, 0
      %s198 = scalar_select %p197, %s21, 0
      %s199 = sadd.s32 %s198, %s196
      %s200 = smul.addr %s199, 8
      %s201 = scalar_lea.vmem %s0, %s200
      %p202 = pneg %p56
      %p203 = pneg %p53
      %s204 = smul.u32 4, %s21
      %p205 = scmp.lt.s32.totalorder %s204, 3
      %s206 = scalar_select %p205, %s204, 3
      %p207 = scmp.lt.s32.totalorder %s20, 0
      %s208 = scalar_select %p207, %s20, 0
      %s209 = sadd.s32 %s208, %s206
      %s210 = smul.addr %s209, 8
      %s211 = scalar_lea.vmem %s1, %s210
      %p212 = pneg %p84
      %p213 = pneg %p81
      %p214 = scmp.lt.s32.totalorder %s20, 0
      %s215 = scalar_select %p214, %s20, 0
      %s216 = scalar_lea.vmem %s2, %s215
      %p217 = pneg %p110
      %p218 = pneg %p107
      %p219 = pneg %p138
      %p220 = pneg %p135
      %s221 = smul.u32 16, %s19
      %p222 = scmp.lt.s32.totalorder %s221, 31
      %s223 = scalar_select %p222, %s221, 31
      %p224 = scmp.lt.s32.totalorder %s20, 0
      %s225 = scalar_select %p224, %s20, 0
      %s226 = sadd.s32 %s225, %s223
      %s227 = smul.addr %s226, 8
      %s228 = scalar_lea.vmem %s3, %s227
      %s229 = smul.u32 16, %s19
      %p230 = scmp.lt.s32.totalorder %s229, 31
      %s231 = scalar_select %p230, %s229, 31
      %p232 = scmp.lt.s32.totalorder %s21, 0
      %s233 = scalar_select %p232, %s21, 0
      %s234 = sadd.s32 %s233, %s231
      %s235 = smul.addr %s234, 8
      %s236 = scalar_lea.vmem %s0, %s235
      %s237 = smul.u32 16, %s19
      %s238 = smul.u32 4, %s21
      %p239 = scmp.lt.s32.totalorder %s238, 3
      %s240 = scalar_select %p239, %s238, 3
      %p241 = scmp.lt.s32.totalorder %s20, 0
      %s242 = scalar_select %p241, %s20, 0
      %s243 = sadd.s32 %s242, %s240
      %s244 = smul.addr %s243, 8
      %s245 = scalar_lea.vmem %s1, %s244
      %s246 = smul.u32 4, %s21
      %p247 = scmp.lt.s32.totalorder %s20, 0
      %s248 = scalar_select %p247, %s20, 0
      %s249 = scalar_lea.vmem %s2, %s248
      %s250 = smul.u32 16, %s19
      %p251 = scmp.lt.s32.totalorder %s250, 31
      %s252 = scalar_select %p251, %s250, 31
      %p253 = scmp.lt.s32.totalorder %s20, 0
      %s254 = scalar_select %p253, %s20, 0
      %s255 = sadd.s32 %s254, %s252
      %s256 = smul.addr %s255, 8
      %s257 = scalar_lea.vmem %s3, %s256
      %s258 = smul.u32 16, %s19
      %p259 = scmp.eq.s32.totalorder %s21, 0
      // Predicated region
      $region33: #{multi_headed_attention.5} parent=31 // pred_check
        %p260 = pneg %p259
      $region34: #{multi_headed_attention.5} parent=31 // pred_check_branch
        %262 = sbr.rel (%p260) target = $region36
      $region35: #{multi_headed_attention.5} parent=31 // pred_region
        %vm263 = vcmask 261120
        %264 = vst.msk [vmem:[#allocation2] sm:$0xff] %vm263, 0.0
        %265 = vst.msk [vmem:[#allocation2 + $0x8] sm:$0xff] %vm263, 0.0
        %266 = vst.msk [vmem:[#allocation2 + $0x10] sm:$0xff] %vm263, 0.0
        %267 = vst.msk [vmem:[#allocation2 + $0x18] sm:$0xff] %vm263, 0.0
        %268 = vst.msk [vmem:[#allocation2 + $0x20] sm:$0xff] %vm263, 0.0
        %269 = vst.msk [vmem:[#allocation2 + $0x28] sm:$0xff] %vm263, 0.0
        %270 = vst.msk [vmem:[#allocation2 + $0x30] sm:$0xff] %vm263, 0.0
        %271 = vst.msk [vmem:[#allocation2 + $0x38] sm:$0xff] %vm263, 0.0
        %272 = vst.msk [vmem:[#allocation2 + $0x40] sm:$0xff] %vm263, 0.0
        %273 = vst.msk [vmem:[#allocation2 + $0x48] sm:$0xff] %vm263, 0.0
        %274 = vst.msk [vmem:[#allocation2 + $0x50] sm:$0xff] %vm263, 0.0
        %275 = vst.msk [vmem:[#allocation2 + $0x58] sm:$0xff] %vm263, 0.0
        %276 = vst.msk [vmem:[#allocation2 + $0x60] sm:$0xff] %vm263, 0.0
        %277 = vst.msk [vmem:[#allocation2 + $0x68] sm:$0xff] %vm263, 0.0
        %278 = vst.msk [vmem:[#allocation2 + $0x70] sm:$0xff] %vm263, 0.0
        %279 = vst.msk [vmem:[#allocation2 + $0x78] sm:$0xff] %vm263, 0.0
      $region36: #{multi_headed_attention.5} parent=31 // pred_fallthru
        _
      %v280 = vld [vmem:[#allocation2] sm:$0xff]
      %v281 = vld [vmem:[#allocation2 + $0x8] sm:$0xff]
      %v282 = vld [vmem:[#allocation2 + $0x10] sm:$0xff]
      %v283 = vld [vmem:[#allocation2 + $0x18] sm:$0xff]
      %v284 = vld [vmem:[#allocation2 + $0x20] sm:$0xff]
      %v285 = vld [vmem:[#allocation2 + $0x28] sm:$0xff]
      %v286 = vld [vmem:[#allocation2 + $0x30] sm:$0xff]
      %v287 = vld [vmem:[#allocation2 + $0x38] sm:$0xff]
      %v288 = vld [vmem:[#allocation2 + $0x40] sm:$0xff]
      %v289 = vld [vmem:[#allocation2 + $0x48] sm:$0xff]
      %v290 = vld [vmem:[#allocation2 + $0x50] sm:$0xff]
      %v291 = vld [vmem:[#allocation2 + $0x58] sm:$0xff]
      %v292 = vld [vmem:[#allocation2 + $0x60] sm:$0xff]
      %v293 = vld [vmem:[#allocation2 + $0x68] sm:$0xff]
      %v294 = vld [vmem:[#allocation2 + $0x70] sm:$0xff]
      %v295 = vld [vmem:[#allocation2 + $0x78] sm:$0xff]
      %v296 = vld [vmem:[%s236] sm:$0xff]
      %v297 = vld [vmem:[%s236 + $0x8] sm:$0xff]
      %v298 = vld [vmem:[%s236 + $0x10] sm:$0xff]
      %v299 = vld [vmem:[%s236 + $0x18] sm:$0xff]
      %v300 = vld [vmem:[%s236 + $0x20] sm:$0xff]
      %v301 = vld [vmem:[%s236 + $0x28] sm:$0xff]
      %v302 = vld [vmem:[%s236 + $0x30] sm:$0xff]
      %v303 = vld [vmem:[%s236 + $0x38] sm:$0xff]
      %v304 = vld [vmem:[%s236 + $0x40] sm:$0xff]
      %v305 = vld [vmem:[%s236 + $0x48] sm:$0xff]
      %v306 = vld [vmem:[%s236 + $0x50] sm:$0xff]
      %v307 = vld [vmem:[%s236 + $0x58] sm:$0xff]
      %v308 = vld [vmem:[%s236 + $0x60] sm:$0xff]
      %v309 = vld [vmem:[%s236 + $0x68] sm:$0xff]
      %v310 = vld [vmem:[%s236 + $0x70] sm:$0xff]
      %v311 = vld [vmem:[%s236 + $0x78] sm:$0xff]
      %v312 = vld [vmem:[%s245] sm:$0xff]
      %v313 = vld [vmem:[%s245 + $0x8] sm:$0xff]
      %v314 = vld [vmem:[%s245 + $0x10] sm:$0xff]
      %v315 = vld [vmem:[%s245 + $0x18] sm:$0xff]
      %vm316 = vcmask 261120
      %v318 = vsel %vm316, %v296, 0
      %v321 = vsel %vm316, %v297, 0
      %v324 = vsel %vm316, %v298, 0
      %v327 = vsel %vm316, %v299, 0
      %v330 = vsel %vm316, %v300, 0
      %v333 = vsel %vm316, %v301, 0
      %v336 = vsel %vm316, %v302, 0
      %v339 = vsel %vm316, %v303, 0
      %v342 = vsel %vm316, %v304, 0
      %v345 = vsel %vm316, %v305, 0
      %v348 = vsel %vm316, %v306, 0
      %v351 = vsel %vm316, %v307, 0
      %v354 = vsel %vm316, %v308, 0
      %v357 = vsel %vm316, %v309, 0
      %v360 = vsel %vm316, %v310, 0
      %v363 = vsel %vm316, %v311, 0
      %365 = vmatprep.subr.mxu0 0.0
      %366 = vmatpush1.msra.mxu0 %v312
      %367 = vmatprep.subr.mxu0 0.0
      %368 = vmatpush1.msra.mxu0 %v313
      %369 = vmatprep.subr.mxu0 0.0
      %370 = vmatpush1.msra.mxu0 %v314
      %371 = vmatprep.subr.mxu0 0.0
      %372 = vmatpush1.msra.mxu0 %v315
      %373 = vmatprep.subr.mxu0 0.0
      %374 = vmatpush1.msra.mxu0 0.0
      %375 = vmatprep.subr.mxu0 0.0
      %376 = vmatpush1.msra.mxu0 0.0
      %377 = vmatprep.subr.mxu0 0.0
      %378 = vmatpush1.msra.mxu0 0.0
      %379 = vmatprep.subr.mxu0 0.0
      %380 = vmatpush1.msra.mxu0 0.0
      %381 = vmatprep.subr.mxu0 0.0
      %382 = vmatpush1.msra.mxu0 0.0
      %383 = vmatprep.subr.mxu0 0.0
      %384 = vmatpush1.msra.mxu0 0.0
      %385 = vmatprep.subr.mxu0 0.0
      %386 = vmatpush1.msra.mxu0 0.0
      %387 = vmatprep.subr.mxu0 0.0
      %388 = vmatpush1.msra.mxu0 0.0
      %389 = vmatprep.subr.mxu0 0.0
      %390 = vmatpush1.msra.mxu0 0.0
      %391 = vmatprep.subr.mxu0 0.0
      %392 = vmatpush1.msra.mxu0 0.0
      %393 = vmatprep.subr.mxu0 0.0
      %394 = vmatpush1.msra.mxu0 0.0
      %395 = vmatprep.subr.mxu0 0.0
      %396 = vmatpush1.msra.mxu0 0.0
      %397 = vmatprep.subr.mxu0 0.0
      %398 = vmatpush1.msra.mxu0 0.0
      %399 = vmatprep.subr.mxu0 0.0
      %400 = vmatpush1.msra.mxu0 0.0
      %401 = vmatprep.subr.mxu0 0.0
      %402 = vmatpush1.msra.mxu0 0.0
      %403 = vmatprep.subr.mxu0 0.0
      %404 = vmatpush1.msra.mxu0 0.0
      %405 = vmatprep.subr.mxu0 0.0
      %406 = vmatpush1.msra.mxu0 0.0
      %407 = vmatprep.subr.mxu0 0.0
      %408 = vmatpush1.msra.mxu0 0.0
      %409 = vmatprep.subr.mxu0 0.0
      %410 = vmatpush1.msra.mxu0 0.0
      %411 = vmatprep.subr.mxu0 0.0
      %412 = vmatpush1.msra.mxu0 0.0
      %413 = vmatprep.subr.mxu0 0.0
      %414 = vmatpush1.msra.mxu0 0.0
      %415 = vmatprep.subr.mxu0 0.0
      %416 = vmatpush1.msra.mxu0 0.0
      %417 = vmatprep.subr.mxu0 0.0
      %418 = vmatpush1.msra.mxu0 0.0
      %419 = vmatprep.subr.mxu0 0.0
      %420 = vmatpush1.msra.mxu0 0.0
      %421 = vmatprep.subr.mxu0 0.0
      %422 = vmatpush1.msra.mxu0 0.0
      %423 = vmatprep.subr.mxu0 0.0
      %424 = vmatpush1.msra.mxu0 0.0
      %425 = vmatprep.subr.mxu0 0.0
      %426 = vmatpush1.msra.mxu0 0.0
      %427 = vmatprep.subr.mxu0 0.0
      %428 = vmatpush1.msra.mxu0 0.0
      %429 = vmatprep.mubr.f32.mxu0 0.0
      %430 = vmatmul.mubr.f32.gmra.mrb[0].mxu0 %v318
      %v431 = vpop.f32.mrb[0].mxu0
      %v432 = vadd.f32 0.0, %v431
      %v433 = vpop.f32.mrb[0].mxu0
      %434 = vmatprep.mubr.f32.mxu0 0.0
      %435 = vmatmul.mubr.f32.gmra.mrb[0].mxu0 %v321
      %v436 = vpop.f32.mrb[0].mxu0
      %v437 = vadd.f32 0.0, %v436
      %v438 = vpop.f32.mrb[0].mxu0
      %439 = vmatprep.mubr.f32.mxu0 0.0
      %440 = vmatmul.mubr.f32.gmra.mrb[0].mxu0 %v324
      %v441 = vpop.f32.mrb[0].mxu0
      %v442 = vadd.f32 0.0, %v441
      %v443 = vpop.f32.mrb[0].mxu0
      %444 = vmatprep.mubr.f32.mxu0 0.0
      %445 = vmatmul.mubr.f32.gmra.mrb[0].mxu0 %v327
      %v446 = vpop.f32.mrb[0].mxu0
      %v447 = vadd.f32 0.0, %v446
      %v448 = vpop.f32.mrb[0].mxu0
      %449 = vmatprep.mubr.f32.mxu0 0.0
      %450 = vmatmul.mubr.f32.gmra.mrb[0].mxu0 %v330
      %v451 = vpop.f32.mrb[0].mxu0
      %v452 = vadd.f32 0.0, %v451
      %v453 = vpop.f32.mrb[0].mxu0
      %454 = vmatprep.mubr.f32.mxu0 0.0
      %455 = vmatmul.mubr.f32.gmra.mrb[0].mxu0 %v333
      %v456 = vpop.f32.mrb[0].mxu0
      %v457 = vadd.f32 0.0, %v456
      %v458 = vpop.f32.mrb[0].mxu0
      %459 = vmatprep.mubr.f32.mxu0 0.0
      %460 = vmatmul.mubr.f32.gmra.mrb[0].mxu0 %v336
      %v461 = vpop.f32.mrb[0].mxu0
      %v462 = vadd.f32 0.0, %v461
      %v463 = vpop.f32.mrb[0].mxu0
      %464 = vmatprep.mubr.f32.mxu0 0.0
      %465 = vmatmul.mubr.f32.gmra.mrb[0].mxu0 %v339
      %v466 = vpop.f32.mrb[0].mxu0
      %v467 = vadd.f32 0.0, %v466
      %v468 = vpop.f32.mrb[0].mxu0
      %469 = vmatprep.mubr.f32.mxu0 0.0
      %470 = vmatmul.mubr.f32.gmra.mrb[0].mxu0 %v342
      %v471 = vpop.f32.mrb[0].mxu0
      %v472 = vadd.f32 0.0, %v471
      %v473 = vpop.f32.mrb[0].mxu0
      %474 = vmatprep.mubr.f32.mxu0 0.0
      %475 = vmatmul.mubr.f32.gmra.mrb[0].mxu0 %v345
      %v476 = vpop.f32.mrb[0].mxu0
      %v477 = vadd.f32 0.0, %v476
      %v478 = vpop.f32.mrb[0].mxu0
      %479 = vmatprep.mubr.f32.mxu0 0.0
      %480 = vmatmul.mubr.f32.gmra.mrb[0].mxu0 %v348
      %v481 = vpop.f32.mrb[0].mxu0
      %v482 = vadd.f32 0.0, %v481
      %v483 = vpop.f32.mrb[0].mxu0
      %484 = vmatprep.mubr.f32.mxu0 0.0
      %485 = vmatmul.mubr.f32.gmra.mrb[0].mxu0 %v351
      %v486 = vpop.f32.mrb[0].mxu0
      %v487 = vadd.f32 0.0, %v486
      %v488 = vpop.f32.mrb[0].mxu0
      %489 = vmatprep.mubr.f32.mxu0 0.0
      %490 = vmatmul.mubr.f32.gmra.mrb[0].mxu0 %v354
      %v491 = vpop.f32.mrb[0].mxu0
      %v492 = vadd.f32 0.0, %v491
      %v493 = vpop.f32.mrb[0].mxu0
      %494 = vmatprep.mubr.f32.mxu0 0.0
      %495 = vmatmul.mubr.f32.gmra.mrb[0].mxu0 %v357
      %v496 = vpop.f32.mrb[0].mxu0
      %v497 = vadd.f32 0.0, %v496
      %v498 = vpop.f32.mrb[0].mxu0
      %499 = vmatprep.mubr.f32.mxu0 0.0
      %500 = vmatmul.mubr.f32.gmra.mrb[0].mxu0 %v360
      %v501 = vpop.f32.mrb[0].mxu0
      %v502 = vadd.f32 0.0, %v501
      %v503 = vpop.f32.mrb[0].mxu0
      %504 = vmatprep.mubr.f32.mxu0 0.0
      %505 = vmatmul.mubr.f32.gmra.mrb[0].mxu0 %v363
      %v506 = vpop.f32.mrb[0].mxu0
      %v507 = vadd.f32 0.0, %v506
      %v508 = vpop.f32.mrb[0].mxu0
      %509 = vdwg.mxu0
      %v510 = vadd.f32 %v280, %v432
      %v511 = vadd.f32 %v281, %v437
      %v512 = vadd.f32 %v282, %v442
      %v513 = vadd.f32 %v283, %v447
      %v514 = vadd.f32 %v284, %v452
      %v515 = vadd.f32 %v285, %v457
      %v516 = vadd.f32 %v286, %v462
      %v517 = vadd.f32 %v287, %v467
      %v518 = vadd.f32 %v288, %v472
      %v519 = vadd.f32 %v289, %v477
      %v520 = vadd.f32 %v290, %v482
      %v521 = vadd.f32 %v291, %v487
      %v522 = vadd.f32 %v292, %v492
      %v523 = vadd.f32 %v293, %v497
      %v524 = vadd.f32 %v294, %v502
      %v525 = vadd.f32 %v295, %v507
      %526 = vst.msk [vmem:[#allocation2] sm:$0xff] %vm316, %v510
      %527 = vst.msk [vmem:[#allocation2 + $0x8] sm:$0xff] %vm316, %v511
      %528 = vst.msk [vmem:[#allocation2 + $0x10] sm:$0xff] %vm316, %v512
      %529 = vst.msk [vmem:[#allocation2 + $0x18] sm:$0xff] %vm316, %v513
      %530 = vst.msk [vmem:[#allocation2 + $0x20] sm:$0xff] %vm316, %v514
      %531 = vst.msk [vmem:[#allocation2 + $0x28] sm:$0xff] %vm316, %v515
      %532 = vst.msk [vmem:[#allocation2 + $0x30] sm:$0xff] %vm316, %v516
      %533 = vst.msk [vmem:[#allocation2 + $0x38] sm:$0xff] %vm316, %v517
      %534 = vst.msk [vmem:[#allocation2 + $0x40] sm:$0xff] %vm316, %v518
      %535 = vst.msk [vmem:[#allocation2 + $0x48] sm:$0xff] %vm316, %v519
      %536 = vst.msk [vmem:[#allocation2 + $0x50] sm:$0xff] %vm316, %v520
      %537 = vst.msk [vmem:[#allocation2 + $0x58] sm:$0xff] %vm316, %v521
      %538 = vst.msk [vmem:[#allocation2 + $0x60] sm:$0xff] %vm316, %v522
      %539 = vst.msk [vmem:[#allocation2 + $0x68] sm:$0xff] %vm316, %v523
      %540 = vst.msk [vmem:[#allocation2 + $0x70] sm:$0xff] %vm316, %v524
      %541 = vst.msk [vmem:[#allocation2 + $0x78] sm:$0xff] %vm316, %v525
      // Predicated region
      $region37: #{multi_headed_attention.5} parent=31 // pred_check
        %p542 = pneg %p259
      $region38: #{multi_headed_attention.5} parent=31 // pred_check_branch
        %544 = sbr.rel (%p542) target = $region40
      $region39: #{multi_headed_attention.5} parent=31 // pred_region
        %v545 = vld [vmem:[#allocation2] sm:$0xff]
        %v546 = vld [vmem:[#allocation2 + $0x8] sm:$0xff]
        %v547 = vld [vmem:[#allocation2 + $0x10] sm:$0xff]
        %v548 = vld [vmem:[#allocation2 + $0x18] sm:$0xff]
        %v549 = vld [vmem:[#allocation2 + $0x20] sm:$0xff]
        %v550 = vld [vmem:[#allocation2 + $0x28] sm:$0xff]
        %v551 = vld [vmem:[#allocation2 + $0x30] sm:$0xff]
        %v552 = vld [vmem:[#allocation2 + $0x38] sm:$0xff]
        %v553 = vld [vmem:[#allocation2 + $0x40] sm:$0xff]
        %v554 = vld [vmem:[#allocation2 + $0x48] sm:$0xff]
        %v555 = vld [vmem:[#allocation2 + $0x50] sm:$0xff]
        %v556 = vld [vmem:[#allocation2 + $0x58] sm:$0xff]
        %v557 = vld [vmem:[#allocation2 + $0x60] sm:$0xff]
        %v558 = vld [vmem:[#allocation2 + $0x68] sm:$0xff]
        %v559 = vld [vmem:[#allocation2 + $0x70] sm:$0xff]
        %v560 = vld [vmem:[#allocation2 + $0x78] sm:$0xff]
        %v561 = vld [vmem:[%s249] sm:$0x1]
        %v563 = vlaneseq
        %v564 = vshrl.u32 %v563, 7
        %v565 = vsub.s32 0, %v564
        %v566 = vrot.slane %v561, %v565
        %v568 = vadd.f32 %v545, %v566
        %v569 = vadd.f32 %v546, %v566
        %v570 = vadd.f32 %v547, %v566
        %v571 = vadd.f32 %v548, %v566
        %v572 = vadd.f32 %v549, %v566
        %v573 = vadd.f32 %v550, %v566
        %v574 = vadd.f32 %v551, %v566
        %v575 = vadd.f32 %v552, %v566
        %v576 = vadd.f32 %v553, %v566
        %v577 = vadd.f32 %v554, %v566
        %v578 = vadd.f32 %v555, %v566
        %v579 = vadd.f32 %v556, %v566
        %v580 = vadd.f32 %v557, %v566
        %v581 = vadd.f32 %v558, %v566
        %v582 = vadd.f32 %v559, %v566
        %v583 = vadd.f32 %v560, %v566
        %584 = vst.msk [vmem:[%s257] sm:$0xff] %vm316, %v568
        %585 = vst.msk [vmem:[%s257 + $0x8] sm:$0xff] %vm316, %v569
        %586 = vst.msk [vmem:[%s257 + $0x10] sm:$0xff] %vm316, %v570
        %587 = vst.msk [vmem:[%s257 + $0x18] sm:$0xff] %vm316, %v571
        %588 = vst.msk [vmem:[%s257 + $0x20] sm:$0xff] %vm316, %v572
        %589 = vst.msk [vmem:[%s257 + $0x28] sm:$0xff] %vm316, %v573
        %590 = vst.msk [vmem:[%s257 + $0x30] sm:$0xff] %vm316, %v574
        %591 = vst.msk [vmem:[%s257 + $0x38] sm:$0xff] %vm316, %v575
        %592 = vst.msk [vmem:[%s257 + $0x40] sm:$0xff] %vm316, %v576
        %593 = vst.msk [vmem:[%s257 + $0x48] sm:$0xff] %vm316, %v577
        %594 = vst.msk [vmem:[%s257 + $0x50] sm:$0xff] %vm316, %v578
        %595 = vst.msk [vmem:[%s257 + $0x58] sm:$0xff] %vm316, %v579
        %596 = vst.msk [vmem:[%s257 + $0x60] sm:$0xff] %vm316, %v580
        %597 = vst.msk [vmem:[%s257 + $0x68] sm:$0xff] %vm316, %v581
        %598 = vst.msk [vmem:[%s257 + $0x70] sm:$0xff] %vm316, %v582
        %599 = vst.msk [vmem:[%s257 + $0x78] sm:$0xff] %vm316, %v583
      $region40: #{multi_headed_attention.5} parent=31 // pred_fallthru
        _
      %s600 = smul.u32 16, %s19
      %p601 = scmp.lt.s32.totalorder %s600, 31
      %s602 = scalar_select %p601, %s600, 31
      %p603 = scmp.lt.s32.totalorder %s20, 0
      %s604 = scalar_select %p603, %s20, 0
      %s605 = sadd.s32 %s604, %s602
      %s606 = smul.addr %s605, 8
      %s607 = scalar_lea.vmem %s3, %s606
      // Predicated region
      $region41: #{multi_headed_attention.5} parent=31 // pred_check
        %p608 = pneg %p135
      $region42: #{multi_headed_attention.5} parent=31 // pred_check_branch
        %610 = sbr.rel (%p608) target = $region44
      $region43: #{multi_headed_attention.5} parent=31 // pred_region
        %s611 = smul.u32 16, %s19
      $region44: #{multi_headed_attention.5} parent=31 // pred_fallthru
        _
    $region32: #{multi_headed_attention.5} parent=5 // pred_fallthru
      _
    %p612 = scmp.le.s32.totalorder 2, %s9
    // Predicated region
    $region45: #{multi_headed_attention.5} parent=5 // pred_check
      %p613 = pneg %p612
    $region46: #{multi_headed_attention.5} parent=5 // pred_check_branch
      %615 = sbr.rel (%p613) target = $region48
    $region47: #{multi_headed_attention.5} parent=5 // pred_region
      %s616 = ssub.s32 %s9, 2
      // Predicated region
      $region49: #{multi_headed_attention.5} parent=47 // pred_check
        %p617 = pneg %p141
      $region50: #{multi_headed_attention.5} parent=47 // pred_check_branch
        %619 = sbr.rel (%p617) target = $region52
      $region51: #{multi_headed_attention.5} parent=47 // pred_region
        %s620 = smul.u32 16, %s22
        %p621 = scmp.lt.s32.totalorder %s620, 31
        %s622 = scalar_select %p621, %s620, 31
        %p623 = scmp.lt.s32.totalorder %s23, 0
        %s624 = scalar_select %p623, %s23, 0
        %s625 = sadd.s32 %s624, %s622
        %s626 = smul.addr %s625, 8
        %s627 = scalar_lea.vmem %s3, %s626
      $region52: #{multi_headed_attention.5} parent=47 // pred_fallthru
        _
    $region48: #{multi_headed_attention.5} parent=5 // pred_fallthru
      _
  $region6: #{multi_headed_attention.5} parent=0 // loop_footer
    %s13 = sadd.s32 1, %s9
  $region7: #{multi_headed_attention.5} parent=0 // loop_footer_branch
    %8 = sbr.rel target = $region3
  $region8: #{multi_headed_attention.5} parent=0 // loop_exit
    _

// kernel: multi_headed_attention.3
$region0: #{multi_headed_attention.3}
  #allocation0 [shape = 'u32[]', space=smem, size = 0x4, offset = 0x4, fixed_abs, tag = 'smem constant byte address 0x4 - core index']
  #allocation1 [shape = 'u32[144,128]{1,0:T(1,128)}', space=vmem, size = 0x12000, scoped, tag = 'internal scratch']
  #allocation2 [shape = 'f32[128,32]{1,0:T(8,128)}', space=vmem, size = 0x10000, scoped, tag = 'scratch operand']
  #allocation3 [shape = 'f32[128,32]{1,0:T(8,128)}', space=vmem, size = 0x10000, scoped, tag = 'scratch operand']
  #allocation4 [shape = 'f32[128,32]{1,0:T(8,128)}', space=vmem, size = 0x10000, scoped, tag = 'scratch operand']
  %s0 = inlined_call_operand.vmem [shape: f32[256,32], index: 0, kind: input, shape index: {}]
  %s1 = inlined_call_operand.vmem [shape: f32[32,32], index: 1, kind: input, shape index: {}]
  %s2 = inlined_call_operand.vmem [shape: f32[32,32], index: 2, kind: input, shape index: {}]
  %s3 = inlined_call_operand.vmem [shape: f32[32,32], index: 3, kind: input, shape index: {}]
  %s4 = inlined_call_operand.vmem [shape: f32[1,32], index: 4, kind: input, shape index: {}]
  %s5 = inlined_call_operand.vmem [shape: f32[1,32], index: 5, kind: input, shape index: {}]
  %s6 = inlined_call_operand.vmem [shape: f32[1,32], index: 6, kind: input, shape index: {}]
  %s7 = inlined_call_operand.vmem [shape: f32[256,32], index: 7, kind: output, shape index: {0}]
  %s8 = inlined_call_operand.vmem [shape: f32[256,32], index: 8, kind: output, shape index: {1}]
  %s9 = inlined_call_operand.vmem [shape: f32[256,32], index: 9, kind: output, shape index: {2}]
  %10 = xla_tuple %s7, %s8, %s9
  %s11 = sld [smem:[#allocation0]]
  $region85: #{multi_headed_attention.3} parent=0
    _
  %s13 = ssub.s32 1, %s11
  %s14 = scalar_select 0, %s13, %s11
  loop: start=0, step=1, limit=4
  $region2: #{multi_headed_attention.3} parent=0 // loop_pre_header
    _
  $region3: #{multi_headed_attention.3} parent=0 // loop_header
    %s16 = sphi 0, %s20
    %p17 = scmp.ge.s32.totalorder %s16, 4
    %s23 = sphi 0, %s42
    %s24 = sphi 0, %s38
    %s25 = sphi 0, %s34
    %s26 = sphi 0, %s23
    %s27 = sphi 0, %s24
    %s28 = sphi 0, %s25
    %s29 = sphi 0, %s26
    %s30 = sphi 0, %s27
    %s31 = sphi 0, %s28
    %s47 = sphi 0, %s49
    %s50 = sphi 0, %s47
    %s51 = sphi 0, %s50
    %s67 = sphi 0, %s51
    %s75 = sphi 0, %s77
    %s78 = sphi 0, %s75
    %s79 = sphi 0, %s78
    %s95 = sphi 0, %s79
    %s103 = sphi 0, %s105
    %s106 = sphi 0, %s103
    %s107 = sphi 0, %s106
    %s123 = sphi 0, %s107
    %s131 = sphi 0, %s133
    %s134 = sphi 0, %s131
    %s135 = sphi 0, %s134
    %s151 = sphi 0, %s135
    %s157 = sphi 0, %s159
    %s160 = sphi 0, %s157
    %s161 = sphi 0, %s160
    %s177 = sphi 0, %s161
    %s183 = sphi 0, %s185
    %s186 = sphi 0, %s183
    %s187 = sphi 0, %s186
    %s203 = sphi 0, %s187
    %s209 = sphi 0, %s211
    %s212 = sphi 0, %s209
    %s213 = sphi 0, %s212
    %s229 = sphi 0, %s213
    %s237 = sphi 0, %s239
    %s240 = sphi 0, %s237
    %s241 = sphi 0, %s240
    %s257 = sphi 0, %s241
    %s265 = sphi 0, %s267
    %s268 = sphi 0, %s265
    %s269 = sphi 0, %s268
    %s285 = sphi 0, %s269
    %s293 = sphi 0, %s295
    %s296 = sphi 0, %s293
    %s297 = sphi 0, %s296
    %s313 = sphi 0, %s297
  $region4: #{multi_headed_attention.3} parent=0 // loop_header_branch
    %19 = sbr.rel (%p17) target = $region8
  $region5: #{multi_headed_attention.3} parent=0 // loop_body
    %s21 = ssub.s32 %s16, 1
    %s22 = ssub.s32 %s16, 2
    %s32 = sadd.s32 1, %s25
    %p33 = scmp.ge.s32.totalorder %s32, 1
    %s34 = scalar_select %p33, 0, %s32
    %s35 = sadd.s32 1, %s24
    %s36 = scalar_select %p33, %s35, %s24
    %p37 = scmp.ge.s32.totalorder %s36, 1
    %s38 = scalar_select %p37, 0, %s36
    %s39 = sadd.s32 1, %s23
    %s40 = scalar_select %p37, %s39, %s23
    %p41 = scmp.ge.s32.totalorder %s40, 2
    %s42 = scalar_select %p41, 0, %s40
    %s43 = ssub.s32 %s23, %s42
    %s44 = ssub.s32 %s25, %s34
    %s45 = sor.u32 %s43, %s44
    %p46 = scmp.eq.s32.totalorder %s45, 0
    %s48 = sadd.s32 %s47, 1
    %s49 = scalar_select %p46, %s47, %s48
    %p52 = pneg %p46
    %p53 = scmp.eq.s32.totalorder %s16, 1
    %p54 = por %p52, %p53
    %p55 = scmp.ne.s32.totalorder %s47, %s50
    %p56 = scmp.eq.s32.totalorder %s16, 0
    %p57 = por %p55, %p56
    %p58 = scmp.ne.s32.totalorder %s47, %s50
    %p59 = scmp.eq.s32.totalorder %s21, 1
    %p60 = por %p58, %p59
    %p61 = scmp.ne.s32.totalorder %s50, %s51
    %p62 = scmp.eq.s32.totalorder %s21, 0
    %p63 = por %p61, %p62
    %p64 = scmp.ne.s32.totalorder %s50, %s51
    %p65 = scmp.eq.s32.totalorder %s22, 1
    %p66 = por %p64, %p65
    %p68 = scmp.ne.s32.totalorder %s51, %s67
    %p69 = scmp.eq.s32.totalorder %s22, 0
    %p70 = por %p68, %p69
    %s71 = ssub.s32 %s25, %s34
    %s72 = ssub.s32 %s24, %s38
    %s73 = sor.u32 %s71, %s72
    %p74 = scmp.eq.s32.totalorder %s73, 0
    %s76 = sadd.s32 %s75, 1
    %s77 = scalar_select %p74, %s75, %s76
    %p80 = pneg %p74
    %p81 = scmp.eq.s32.totalorder %s16, 1
    %p82 = por %p80, %p81
    %p83 = scmp.ne.s32.totalorder %s75, %s78
    %p84 = scmp.eq.s32.totalorder %s16, 0
    %p85 = por %p83, %p84
    %p86 = scmp.ne.s32.totalorder %s75, %s78
    %p87 = scmp.eq.s32.totalorder %s21, 1
    %p88 = por %p86, %p87
    %p89 = scmp.ne.s32.totalorder %s78, %s79
    %p90 = scmp.eq.s32.totalorder %s21, 0
    %p91 = por %p89, %p90
    %p92 = scmp.ne.s32.totalorder %s78, %s79
    %p93 = scmp.eq.s32.totalorder %s22, 1
    %p94 = por %p92, %p93
    %p96 = scmp.ne.s32.totalorder %s79, %s95
    %p97 = scmp.eq.s32.totalorder %s22, 0
    %p98 = por %p96, %p97
    %s99 = ssub.s32 %s25, %s34
    %s100 = ssub.s32 %s24, %s38
    %s101 = sor.u32 %s99, %s100
    %p102 = scmp.eq.s32.totalorder %s101, 0
    %s104 = sadd.s32 %s103, 1
    %s105 = scalar_select %p102, %s103, %s104
    %p108 = pneg %p102
    %p109 = scmp.eq.s32.totalorder %s16, 1
    %p110 = por %p108, %p109
    %p111 = scmp.ne.s32.totalorder %s103, %s106
    %p112 = scmp.eq.s32.totalorder %s16, 0
    %p113 = por %p111, %p112
    %p114 = scmp.ne.s32.totalorder %s103, %s106
    %p115 = scmp.eq.s32.totalorder %s21, 1
    %p116 = por %p114, %p115
    %p117 = scmp.ne.s32.totalorder %s106, %s107
    %p118 = scmp.eq.s32.totalorder %s21, 0
    %p119 = por %p117, %p118
    %p120 = scmp.ne.s32.totalorder %s106, %s107
    %p121 = scmp.eq.s32.totalorder %s22, 1
    %p122 = por %p120, %p121
    %p124 = scmp.ne.s32.totalorder %s107, %s123
    %p125 = scmp.eq.s32.totalorder %s22, 0
    %p126 = por %p124, %p125
    %s127 = ssub.s32 %s25, %s34
    %s128 = ssub.s32 %s24, %s38
    %s129 = sor.u32 %s127, %s128
    %p130 = scmp.eq.s32.totalorder %s129, 0
    %s132 = sadd.s32 %s131, 1
    %s133 = scalar_select %p130, %s131, %s132
    %p136 = pneg %p130
    %p137 = scmp.eq.s32.totalorder %s16, 1
    %p138 = por %p136, %p137
    %p139 = scmp.ne.s32.totalorder %s131, %s134
    %p140 = scmp.eq.s32.totalorder %s16, 0
    %p141 = por %p139, %p140
    %p142 = scmp.ne.s32.totalorder %s131, %s134
    %p143 = scmp.eq.s32.totalorder %s21, 1
    %p144 = por %p142, %p143
    %p145 = scmp.ne.s32.totalorder %s134, %s135
    %p146 = scmp.eq.s32.totalorder %s21, 0
    %p147 = por %p145, %p146
    %p148 = scmp.ne.s32.totalorder %s134, %s135
    %p149 = scmp.eq.s32.totalorder %s22, 1
    %p150 = por %p148, %p149
    %p152 = scmp.ne.s32.totalorder %s135, %s151
    %p153 = scmp.eq.s32.totalorder %s22, 0
    %p154 = por %p152, %p153
    %s155 = ssub.s32 %s24, %s38
    %p156 = scmp.eq.s32.totalorder %s155, 0
    %s158 = sadd.s32 %s157, 1
    %s159 = scalar_select %p156, %s157, %s158
    %p162 = pneg %p156
    %p163 = scmp.eq.s32.totalorder %s16, 1
    %p164 = por %p162, %p163
    %p165 = scmp.ne.s32.totalorder %s157, %s160
    %p166 = scmp.eq.s32.totalorder %s16, 0
    %p167 = por %p165, %p166
    %p168 = scmp.ne.s32.totalorder %s157, %s160
    %p169 = scmp.eq.s32.totalorder %s21, 1
    %p170 = por %p168, %p169
    %p171 = scmp.ne.s32.totalorder %s160, %s161
    %p172 = scmp.eq.s32.totalorder %s21, 0
    %p173 = por %p171, %p172
    %p174 = scmp.ne.s32.totalorder %s160, %s161
    %p175 = scmp.eq.s32.totalorder %s22, 1
    %p176 = por %p174, %p175
    %p178 = scmp.ne.s32.totalorder %s161, %s177
    %p179 = scmp.eq.s32.totalorder %s22, 0
    %p180 = por %p178, %p179
    %s181 = ssub.s32 %s24, %s38
    %p182 = scmp.eq.s32.totalorder %s181, 0
    %s184 = sadd.s32 %s183, 1
    %s185 = scalar_select %p182, %s183, %s184
    %p188 = pneg %p182
    %p189 = scmp.eq.s32.totalorder %s16, 1
    %p190 = por %p188, %p189
    %p191 = scmp.ne.s32.totalorder %s183, %s186
    %p192 = scmp.eq.s32.totalorder %s16, 0
    %p193 = por %p191, %p192
    %p194 = scmp.ne.s32.totalorder %s183, %s186
    %p195 = scmp.eq.s32.totalorder %s21, 1
    %p196 = por %p194, %p195
    %p197 = scmp.ne.s32.totalorder %s186, %s187
    %p198 = scmp.eq.s32.totalorder %s21, 0
    %p199 = por %p197, %p198
    %p200 = scmp.ne.s32.totalorder %s186, %s187
    %p201 = scmp.eq.s32.totalorder %s22, 1
    %p202 = por %p200, %p201
    %p204 = scmp.ne.s32.totalorder %s187, %s203
    %p205 = scmp.eq.s32.totalorder %s22, 0
    %p206 = por %p204, %p205
    %s207 = ssub.s32 %s24, %s38
    %p208 = scmp.eq.s32.totalorder %s207, 0
    %s210 = sadd.s32 %s209, 1
    %s211 = scalar_select %p208, %s209, %s210
    %p214 = pneg %p208
    %p215 = scmp.eq.s32.totalorder %s16, 1
    %p216 = por %p214, %p215
    %p217 = scmp.ne.s32.totalorder %s209, %s212
    %p218 = scmp.eq.s32.totalorder %s16, 0
    %p219 = por %p217, %p218
    %p220 = scmp.ne.s32.totalorder %s209, %s212
    %p221 = scmp.eq.s32.totalorder %s21, 1
    %p222 = por %p220, %p221
    %p223 = scmp.ne.s32.totalorder %s212, %s213
    %p224 = scmp.eq.s32.totalorder %s21, 0
    %p225 = por %p223, %p224
    %p226 = scmp.ne.s32.totalorder %s212, %s213
    %p227 = scmp.eq.s32.totalorder %s22, 1
    %p228 = por %p226, %p227
    %p230 = scmp.ne.s32.totalorder %s213, %s229
    %p231 = scmp.eq.s32.totalorder %s22, 0
    %p232 = por %p230, %p231
    %s233 = ssub.s32 %s23, %s42
    %s234 = ssub.s32 %s24, %s38
    %s235 = sor.u32 %s233, %s234
    %p236 = scmp.eq.s32.totalorder %s235, 0
    %s238 = sadd.s32 %s237, 1
    %s239 = scalar_select %p236, %s237, %s238
    %p242 = pneg %p236
    %p243 = scmp.eq.s32.totalorder %s16, 1
    %p244 = por %p242, %p243
    %p245 = scmp.ne.s32.totalorder %s237, %s240
    %p246 = scmp.eq.s32.totalorder %s16, 0
    %p247 = por %p245, %p246
    %p248 = scmp.ne.s32.totalorder %s237, %s240
    %p249 = scmp.eq.s32.totalorder %s21, 1
    %p250 = por %p248, %p249
    %p251 = scmp.ne.s32.totalorder %s240, %s241
    %p252 = scmp.eq.s32.totalorder %s21, 0
    %p253 = por %p251, %p252
    %p254 = scmp.ne.s32.totalorder %s240, %s241
    %p255 = scmp.eq.s32.totalorder %s22, 1
    %p256 = por %p254, %p255
    %p258 = scmp.ne.s32.totalorder %s241, %s257
    %p259 = scmp.eq.s32.totalorder %s22, 0
    %p260 = por %p258, %p259
    %s261 = ssub.s32 %s23, %s42
    %s262 = ssub.s32 %s24, %s38
    %s263 = sor.u32 %s261, %s262
    %p264 = scmp.eq.s32.totalorder %s263, 0
    %s266 = sadd.s32 %s265, 1
    %s267 = scalar_select %p264, %s265, %s266
    %p270 = pneg %p264
    %p271 = scmp.eq.s32.totalorder %s16, 1
    %p272 = por %p270, %p271
    %p273 = scmp.ne.s32.totalorder %s265, %s268
    %p274 = scmp.eq.s32.totalorder %s16, 0
    %p275 = por %p273, %p274
    %p276 = scmp.ne.s32.totalorder %s265, %s268
    %p277 = scmp.eq.s32.totalorder %s21, 1
    %p278 = por %p276, %p277
    %p279 = scmp.ne.s32.totalorder %s268, %s269
    %p280 = scmp.eq.s32.totalorder %s21, 0
    %p281 = por %p279, %p280
    %p282 = scmp.ne.s32.totalorder %s268, %s269
    %p283 = scmp.eq.s32.totalorder %s22, 1
    %p284 = por %p282, %p283
    %p286 = scmp.ne.s32.totalorder %s269, %s285
    %p287 = scmp.eq.s32.totalorder %s22, 0
    %p288 = por %p286, %p287
    %s289 = ssub.s32 %s23, %s42
    %s290 = ssub.s32 %s24, %s38
    %s291 = sor.u32 %s289, %s290
    %p292 = scmp.eq.s32.totalorder %s291, 0
    %s294 = sadd.s32 %s293, 1
    %s295 = scalar_select %p292, %s293, %s294
    %p298 = pneg %p292
    %p299 = scmp.eq.s32.totalorder %s16, 1
    %p300 = por %p298, %p299
    %p301 = scmp.ne.s32.totalorder %s293, %s296
    %p302 = scmp.eq.s32.totalorder %s16, 0
    %p303 = por %p301, %p302
    %p304 = scmp.ne.s32.totalorder %s293, %s296
    %p305 = scmp.eq.s32.totalorder %s21, 1
    %p306 = por %p304, %p305
    %p307 = scmp.ne.s32.totalorder %s296, %s297
    %p308 = scmp.eq.s32.totalorder %s21, 0
    %p309 = por %p307, %p308
    %p310 = scmp.ne.s32.totalorder %s296, %s297
    %p311 = scmp.eq.s32.totalorder %s22, 1
    %p312 = por %p310, %p311
    %p314 = scmp.ne.s32.totalorder %s297, %s313
    %p315 = scmp.eq.s32.totalorder %s22, 0
    %p316 = por %p314, %p315
    %p317 = scmp.le.s32.totalorder 1, %s16
    %p318 = scmp.lt.s32.totalorder %s16, 3
    %p319 = pnand %p317, %p318
    %p320 = pneg %p319
    // Predicated region
    $region9: #{multi_headed_attention.3} parent=5 // pred_check
      _
    $region10: #{multi_headed_attention.3} parent=5 // pred_check_branch
      %322 = sbr.rel (%p319) target = $region12
    $region11: #{multi_headed_attention.3} parent=5 // pred_region
      %s323 = ssub.s32 %s16, 1
      // Predicated region
      $region13: #{multi_headed_attention.3} parent=11 // pred_check
        %p324 = pneg %p91
      $region14: #{multi_headed_attention.3} parent=11 // pred_check_branch
        %326 = sbr.rel (%p324) target = $region16
      $region15: #{multi_headed_attention.3} parent=11 // pred_region
        %s327 = smul.u32 4, %s28
        %p328 = scmp.lt.s32.totalorder %s327, 3
        %s329 = scalar_select %p328, %s327, 3
        %p330 = scmp.lt.s32.totalorder %s27, 0
        %s331 = scalar_select %p330, %s27, 0
        %s332 = sadd.s32 %s331, %s329
        %s333 = smul.addr %s332, 8
        %s334 = scalar_lea.vmem %s1, %s333
        %s335 = smul.u32 4, %s28
      $region16: #{multi_headed_attention.3} parent=11 // pred_fallthru
        _
      // Predicated region
      $region17: #{multi_headed_attention.3} parent=11 // pred_check
        %p336 = pneg %p119
      $region18: #{multi_headed_attention.3} parent=11 // pred_check_branch
        %338 = sbr.rel (%p336) target = $region20
      $region19: #{multi_headed_attention.3} parent=11 // pred_region
        %s339 = smul.u32 4, %s28
        %p340 = scmp.lt.s32.totalorder %s339, 3
        %s341 = scalar_select %p340, %s339, 3
        %p342 = scmp.lt.s32.totalorder %s27, 0
        %s343 = scalar_select %p342, %s27, 0
        %s344 = sadd.s32 %s343, %s341
        %s345 = smul.addr %s344, 8
        %s346 = scalar_lea.vmem %s2, %s345
        %s347 = smul.u32 4, %s28
      $region20: #{multi_headed_attention.3} parent=11 // pred_fallthru
        _
      // Predicated region
      $region21: #{multi_headed_attention.3} parent=11 // pred_check
        %p348 = pneg %p147
      $region22: #{multi_headed_attention.3} parent=11 // pred_check_branch
        %350 = sbr.rel (%p348) target = $region24
      $region23: #{multi_headed_attention.3} parent=11 // pred_region
        %s351 = smul.u32 4, %s28
        %p352 = scmp.lt.s32.totalorder %s351, 3
        %s353 = scalar_select %p352, %s351, 3
        %p354 = scmp.lt.s32.totalorder %s27, 0
        %s355 = scalar_select %p354, %s27, 0
        %s356 = sadd.s32 %s355, %s353
        %s357 = smul.addr %s356, 8
        %s358 = scalar_lea.vmem %s3, %s357
        %s359 = smul.u32 4, %s28
      $region24: #{multi_headed_attention.3} parent=11 // pred_fallthru
        _
      // Predicated region
      $region25: #{multi_headed_attention.3} parent=11 // pred_check
        %p360 = pneg %p173
      $region26: #{multi_headed_attention.3} parent=11 // pred_check_branch
        %362 = sbr.rel (%p360) target = $region28
      $region27: #{multi_headed_attention.3} parent=11 // pred_region
        %p363 = scmp.lt.s32.totalorder %s27, 0
        %s364 = scalar_select %p363, %s27, 0
        %s365 = scalar_lea.vmem %s4, %s364
      $region28: #{multi_headed_attention.3} parent=11 // pred_fallthru
        _
      // Predicated region
      $region29: #{multi_headed_attention.3} parent=11 // pred_check
        %p366 = pneg %p199
      $region30: #{multi_headed_attention.3} parent=11 // pred_check_branch
        %368 = sbr.rel (%p366) target = $region32
      $region31: #{multi_headed_attention.3} parent=11 // pred_region
        %p369 = scmp.lt.s32.totalorder %s27, 0
        %s370 = scalar_select %p369, %s27, 0
        %s371 = scalar_lea.vmem %s5, %s370
      $region32: #{multi_headed_attention.3} parent=11 // pred_fallthru
        _
      // Predicated region
      $region33: #{multi_headed_attention.3} parent=11 // pred_check
        %p372 = pneg %p225
      $region34: #{multi_headed_attention.3} parent=11 // pred_check_branch
        %374 = sbr.rel (%p372) target = $region36
      $region35: #{multi_headed_attention.3} parent=11 // pred_region
        %p375 = scmp.lt.s32.totalorder %s27, 0
        %s376 = scalar_select %p375, %s27, 0
        %s377 = scalar_lea.vmem %s6, %s376
      $region36: #{multi_headed_attention.3} parent=11 // pred_fallthru
        _
    $region12: #{multi_headed_attention.3} parent=5 // pred_fallthru
      _
    %p378 = scmp.lt.s32.totalorder %s16, 2
    // Predicated region
    $region37: #{multi_headed_attention.3} parent=5 // pred_check
      %p379 = pneg %p378
    $region38: #{multi_headed_attention.3} parent=5 // pred_check_branch
      %381 = sbr.rel (%p379) target = $region40
    $region39: #{multi_headed_attention.3} parent=5 // pred_region
      // Predicated region
      $region41: #{multi_headed_attention.3} parent=39 // pred_check
        %p382 = pneg %p57
      $region42: #{multi_headed_attention.3} parent=39 // pred_check_branch
        %384 = sbr.rel (%p382) target = $region44
      $region43: #{multi_headed_attention.3} parent=39 // pred_region
        %s385 = smul.u32 16, %s23
        %p386 = scmp.lt.s32.totalorder %s385, 31
        %s387 = scalar_select %p386, %s385, 31
        %p388 = scmp.lt.s32.totalorder %s25, 0
        %s389 = scalar_select %p388, %s25, 0
        %s390 = sadd.s32 %s389, %s387
        %s391 = smul.addr %s390, 8
        %s392 = scalar_lea.vmem %s0, %s391
        %s393 = smul.u32 16, %s23
      $region44: #{multi_headed_attention.3} parent=39 // pred_fallthru
        _
    $region40: #{multi_headed_attention.3} parent=5 // pred_fallthru
      _
    %p394 = scmp.le.s32.totalorder 1, %s16
    %p395 = scmp.lt.s32.totalorder %s16, 3
    %p396 = pnand %p394, %p395
    %p397 = pneg %p396
    // Predicated region
    $region45: #{multi_headed_attention.3} parent=5 // pred_check
      _
    $region46: #{multi_headed_attention.3} parent=5 // pred_check_branch
      %399 = sbr.rel (%p396) target = $region48
    $region47: #{multi_headed_attention.3} parent=5 // pred_region
      %s400 = ssub.s32 %s16, 1
      %s401 = smul.u32 16, %s26
      %p402 = scmp.lt.s32.totalorder %s401, 31
      %s403 = scalar_select %p402, %s401, 31
      %p404 = scmp.lt.s32.totalorder %s28, 0
      %s405 = scalar_select %p404, %s28, 0
      %s406 = sadd.s32 %s405, %s403
      %s407 = smul.addr %s406, 8
      %s408 = scalar_lea.vmem %s0, %s407
      %p409 = pneg %p63
      %p410 = pneg %p60
      %s411 = smul.u32 4, %s28
      %p412 = scmp.lt.s32.totalorder %s411, 3
      %s413 = scalar_select %p412, %s411, 3
      %p414 = scmp.lt.s32.totalorder %s27, 0
      %s415 = scalar_select %p414, %s27, 0
      %s416 = sadd.s32 %s415, %s413
      %s417 = smul.addr %s416, 8
      %s418 = scalar_lea.vmem %s1, %s417
      %p419 = pneg %p91
      %p420 = pneg %p88
      %s421 = smul.u32 4, %s28
      %p422 = scmp.lt.s32.totalorder %s421, 3
      %s423 = scalar_select %p422, %s421, 3
      %p424 = scmp.lt.s32.totalorder %s27, 0
      %s425 = scalar_select %p424, %s27, 0
      %s426 = sadd.s32 %s425, %s423
      %s427 = smul.addr %s426, 8
      %s428 = scalar_lea.vmem %s2, %s427
      %p429 = pneg %p119
      %p430 = pneg %p116
      %s431 = smul.u32 4, %s28
      %p432 = scmp.lt.s32.totalorder %s431, 3
      %s433 = scalar_select %p432, %s431, 3
      %p434 = scmp.lt.s32.totalorder %s27, 0
      %s435 = scalar_select %p434, %s27, 0
      %s436 = sadd.s32 %s435, %s433
      %s437 = smul.addr %s436, 8
      %s438 = scalar_lea.vmem %s3, %s437
      %p439 = pneg %p147
      %p440 = pneg %p144
      %p441 = scmp.lt.s32.totalorder %s27, 0
      %s442 = scalar_select %p441, %s27, 0
      %s443 = scalar_lea.vmem %s4, %s442
      %p444 = pneg %p173
      %p445 = pneg %p170
      %p446 = scmp.lt.s32.totalorder %s27, 0
      %s447 = scalar_select %p446, %s27, 0
      %s448 = scalar_lea.vmem %s5, %s447
      %p449 = pneg %p199
      %p450 = pneg %p196
      %p451 = scmp.lt.s32.totalorder %s27, 0
      %s452 = scalar_select %p451, %s27, 0
      %s453 = scalar_lea.vmem %s6, %s452
      %p454 = pneg %p225
      %p455 = pneg %p222
      %p456 = pneg %p253
      %p457 = pneg %p250
      %s458 = smul.u32 16, %s26
      %p459 = scmp.lt.s32.totalorder %s458, 31
      %s460 = scalar_select %p459, %s458, 31
      %p461 = scmp.lt.s32.totalorder %s27, 0
      %s462 = scalar_select %p461, %s27, 0
      %s463 = sadd.s32 %s462, %s460
      %s464 = smul.addr %s463, 8
      %s465 = scalar_lea.vmem %s7, %s464
      %p466 = pneg %p281
      %p467 = pneg %p278
      %s468 = smul.u32 16, %s26
      %p469 = scmp.lt.s32.totalorder %s468, 31
      %s470 = scalar_select %p469, %s468, 31
      %p471 = scmp.lt.s32.totalorder %s27, 0
      %s472 = scalar_select %p471, %s27, 0
      %s473 = sadd.s32 %s472, %s470
      %s474 = smul.addr %s473, 8
      %s475 = scalar_lea.vmem %s8, %s474
      %p476 = pneg %p309
      %p477 = pneg %p306
      %s478 = smul.u32 16, %s26
      %p479 = scmp.lt.s32.totalorder %s478, 31
      %s480 = scalar_select %p479, %s478, 31
      %p481 = scmp.lt.s32.totalorder %s27, 0
      %s482 = scalar_select %p481, %s27, 0
      %s483 = sadd.s32 %s482, %s480
      %s484 = smul.addr %s483, 8
      %s485 = scalar_lea.vmem %s9, %s484
      %s486 = smul.u32 16, %s26
      %p487 = scmp.lt.s32.totalorder %s486, 31
      %s488 = scalar_select %p487, %s486, 31
      %p489 = scmp.lt.s32.totalorder %s28, 0
      %s490 = scalar_select %p489, %s28, 0
      %s491 = sadd.s32 %s490, %s488
      %s492 = smul.addr %s491, 8
      %s493 = scalar_lea.vmem %s0, %s492
      %s494 = smul.u32 16, %s26
      %s495 = smul.u32 4, %s28
      %p496 = scmp.lt.s32.totalorder %s495, 3
      %s497 = scalar_select %p496, %s495, 3
      %p498 = scmp.lt.s32.totalorder %s27, 0
      %s499 = scalar_select %p498, %s27, 0
      %s500 = sadd.s32 %s499, %s497
      %s501 = smul.addr %s500, 8
      %s502 = scalar_lea.vmem %s1, %s501
      %s503 = smul.u32 4, %s28
      %s504 = smul.u32 4, %s28
      %p505 = scmp.lt.s32.totalorder %s504, 3
      %s506 = scalar_select %p505, %s504, 3
      %p507 = scmp.lt.s32.totalorder %s27, 0
      %s508 = scalar_select %p507, %s27, 0
      %s509 = sadd.s32 %s508, %s506
      %s510 = smul.addr %s509, 8
      %s511 = scalar_lea.vmem %s2, %s510
      %s512 = smul.u32 4, %s28
      %s513 = smul.u32 4, %s28
      %p514 = scmp.lt.s32.totalorder %s513, 3
      %s515 = scalar_select %p514, %s513, 3
      %p516 = scmp.lt.s32.totalorder %s27, 0
      %s517 = scalar_select %p516, %s27, 0
      %s518 = sadd.s32 %s517, %s515
      %s519 = smul.addr %s518, 8
      %s520 = scalar_lea.vmem %s3, %s519
      %s521 = smul.u32 4, %s28
      %p522 = scmp.lt.s32.totalorder %s27, 0
      %s523 = scalar_select %p522, %s27, 0
      %s524 = scalar_lea.vmem %s4, %s523
      %p525 = scmp.lt.s32.totalorder %s27, 0
      %s526 = scalar_select %p525, %s27, 0
      %s527 = scalar_lea.vmem %s5, %s526
      %p528 = scmp.lt.s32.totalorder %s27, 0
      %s529 = scalar_select %p528, %s27, 0
      %s530 = scalar_lea.vmem %s6, %s529
      %s531 = smul.u32 16, %s26
      %p532 = scmp.lt.s32.totalorder %s531, 31
      %s533 = scalar_select %p532, %s531, 31
      %p534 = scmp.lt.s32.totalorder %s27, 0
      %s535 = scalar_select %p534, %s27, 0
      %s536 = sadd.s32 %s535, %s533
      %s537 = smul.addr %s536, 8
      %s538 = scalar_lea.vmem %s7, %s537
      %s539 = smul.u32 16, %s26
      %s540 = smul.u32 16, %s26
      %p541 = scmp.lt.s32.totalorder %s540, 31
      %s542 = scalar_select %p541, %s540, 31
      %p543 = scmp.lt.s32.totalorder %s27, 0
      %s544 = scalar_select %p543, %s27, 0
      %s545 = sadd.s32 %s544, %s542
      %s546 = smul.addr %s545, 8
      %s547 = scalar_lea.vmem %s8, %s546
      %s548 = smul.u32 16, %s26
      %s549 = smul.u32 16, %s26
      %p550 = scmp.lt.s32.totalorder %s549, 31
      %s551 = scalar_select %p550, %s549, 31
      %p552 = scmp.lt.s32.totalorder %s27, 0
      %s553 = scalar_select %p552, %s27, 0
      %s554 = sadd.s32 %s553, %s551
      %s555 = smul.addr %s554, 8
      %s556 = scalar_lea.vmem %s9, %s555
      %s557 = smul.u32 16, %s26
      %p558 = scmp.eq.s32.totalorder %s28, 0
      // Predicated region
      $region49: #{multi_headed_attention.3} parent=47 // pred_check
        %p559 = pneg %p558
      $region50: #{multi_headed_attention.3} parent=47 // pred_check_branch
        %561 = sbr.rel (%p559) target = $region52
      $region51: #{multi_headed_attention.3} parent=47 // pred_region
        %vm562 = vcmask 261120
        %563 = vst.msk [vmem:[#allocation2] sm:$0xff] %vm562, 0.0
        %564 = vst.msk [vmem:[#allocation2 + $0x8] sm:$0xff] %vm562, 0.0
        %565 = vst.msk [vmem:[#allocation2 + $0x10] sm:$0xff] %vm562, 0.0
        %566 = vst.msk [vmem:[#allocation2 + $0x18] sm:$0xff] %vm562, 0.0
        %567 = vst.msk [vmem:[#allocation2 + $0x20] sm:$0xff] %vm562, 0.0
        %568 = vst.msk [vmem:[#allocation2 + $0x28] sm:$0xff] %vm562, 0.0
        %569 = vst.msk [vmem:[#allocation2 + $0x30] sm:$0xff] %vm562, 0.0
        %570 = vst.msk [vmem:[#allocation2 + $0x38] sm:$0xff] %vm562, 0.0
        %571 = vst.msk [vmem:[#allocation2 + $0x40] sm:$0xff] %vm562, 0.0
        %572 = vst.msk [vmem:[#allocation2 + $0x48] sm:$0xff] %vm562, 0.0
        %573 = vst.msk [vmem:[#allocation2 + $0x50] sm:$0xff] %vm562, 0.0
        %574 = vst.msk [vmem:[#allocation2 + $0x58] sm:$0xff] %vm562, 0.0
        %575 = vst.msk [vmem:[#allocation2 + $0x60] sm:$0xff] %vm562, 0.0
        %576 = vst.msk [vmem:[#allocation2 + $0x68] sm:$0xff] %vm562, 0.0
        %577 = vst.msk [vmem:[#allocation2 + $0x70] sm:$0xff] %vm562, 0.0
        %578 = vst.msk [vmem:[#allocation2 + $0x78] sm:$0xff] %vm562, 0.0
        %579 = vst.msk [vmem:[#allocation3] sm:$0xff] %vm562, 0.0
        %580 = vst.msk [vmem:[#allocation3 + $0x8] sm:$0xff] %vm562, 0.0
        %581 = vst.msk [vmem:[#allocation3 + $0x10] sm:$0xff] %vm562, 0.0
        %582 = vst.msk [vmem:[#allocation3 + $0x18] sm:$0xff] %vm562, 0.0
        %583 = vst.msk [vmem:[#allocation3 + $0x20] sm:$0xff] %vm562, 0.0
        %584 = vst.msk [vmem:[#allocation3 + $0x28] sm:$0xff] %vm562, 0.0
        %585 = vst.msk [vmem:[#allocation3 + $0x30] sm:$0xff] %vm562, 0.0
        %586 = vst.msk [vmem:[#allocation3 + $0x38] sm:$0xff] %vm562, 0.0
        %587 = vst.msk [vmem:[#allocation3 + $0x40] sm:$0xff] %vm562, 0.0
        %588 = vst.msk [vmem:[#allocation3 + $0x48] sm:$0xff] %vm562, 0.0
        %589 = vst.msk [vmem:[#allocation3 + $0x50] sm:$0xff] %vm562, 0.0
        %590 = vst.msk [vmem:[#allocation3 + $0x58] sm:$0xff] %vm562, 0.0
        %591 = vst.msk [vmem:[#allocation3 + $0x60] sm:$0xff] %vm562, 0.0
        %592 = vst.msk [vmem:[#allocation3 + $0x68] sm:$0xff] %vm562, 0.0
        %593 = vst.msk [vmem:[#allocation3 + $0x70] sm:$0xff] %vm562, 0.0
        %594 = vst.msk [vmem:[#allocation3 + $0x78] sm:$0xff] %vm562, 0.0
        %595 = vst.msk [vmem:[#allocation4] sm:$0xff] %vm562, 0.0
        %596 = vst.msk [vmem:[#allocation4 + $0x8] sm:$0xff] %vm562, 0.0
        %597 = vst.msk [vmem:[#allocation4 + $0x10] sm:$0xff] %vm562, 0.0
        %598 = vst.msk [vmem:[#allocation4 + $0x18] sm:$0xff] %vm562, 0.0
        %599 = vst.msk [vmem:[#allocation4 + $0x20] sm:$0xff] %vm562, 0.0
        %600 = vst.msk [vmem:[#allocation4 + $0x28] sm:$0xff] %vm562, 0.0
        %601 = vst.msk [vmem:[#allocation4 + $0x30] sm:$0xff] %vm562, 0.0
        %602 = vst.msk [vmem:[#allocation4 + $0x38] sm:$0xff] %vm562, 0.0
        %603 = vst.msk [vmem:[#allocation4 + $0x40] sm:$0xff] %vm562, 0.0
        %604 = vst.msk [vmem:[#allocation4 + $0x48] sm:$0xff] %vm562, 0.0
        %605 = vst.msk [vmem:[#allocation4 + $0x50] sm:$0xff] %vm562, 0.0
        %606 = vst.msk [vmem:[#allocation4 + $0x58] sm:$0xff] %vm562, 0.0
        %607 = vst.msk [vmem:[#allocation4 + $0x60] sm:$0xff] %vm562, 0.0
        %608 = vst.msk [vmem:[#allocation4 + $0x68] sm:$0xff] %vm562, 0.0
        %609 = vst.msk [vmem:[#allocation4 + $0x70] sm:$0xff] %vm562, 0.0
        %610 = vst.msk [vmem:[#allocation4 + $0x78] sm:$0xff] %vm562, 0.0
      $region52: #{multi_headed_attention.3} parent=47 // pred_fallthru
        _
      %v611 = vld [vmem:[%s493] sm:$0xff]
      %v612 = vld [vmem:[%s493 + $0x8] sm:$0xff]
      %v613 = vld [vmem:[%s493 + $0x10] sm:$0xff]
      %v614 = vld [vmem:[%s493 + $0x18] sm:$0xff]
      %v615 = vld [vmem:[%s493 + $0x20] sm:$0xff]
      %v616 = vld [vmem:[%s493 + $0x28] sm:$0xff]
      %v617 = vld [vmem:[%s493 + $0x30] sm:$0xff]
      %v618 = vld [vmem:[%s493 + $0x38] sm:$0xff]
      %v619 = vld [vmem:[%s493 + $0x40] sm:$0xff]
      %v620 = vld [vmem:[%s493 + $0x48] sm:$0xff]
      %v621 = vld [vmem:[%s493 + $0x50] sm:$0xff]
      %v622 = vld [vmem:[%s493 + $0x58] sm:$0xff]
      %v623 = vld [vmem:[%s493 + $0x60] sm:$0xff]
      %v624 = vld [vmem:[%s493 + $0x68] sm:$0xff]
      %v625 = vld [vmem:[%s493 + $0x70] sm:$0xff]
      %v626 = vld [vmem:[%s493 + $0x78] sm:$0xff]
      %v627 = vld [vmem:[#allocation2] sm:$0xff]
      %v628 = vld [vmem:[#allocation2 + $0x8] sm:$0xff]
      %v629 = vld [vmem:[#allocation2 + $0x10] sm:$0xff]
      %v630 = vld [vmem:[#allocation2 + $0x18] sm:$0xff]
      %v631 = vld [vmem:[#allocation2 + $0x20] sm:$0xff]
      %v632 = vld [vmem:[#allocation2 + $0x28] sm:$0xff]
      %v633 = vld [vmem:[#allocation2 + $0x30] sm:$0xff]
      %v634 = vld [vmem:[#allocation2 + $0x38] sm:$0xff]
      %v635 = vld [vmem:[#allocation2 + $0x40] sm:$0xff]
      %v636 = vld [vmem:[#allocation2 + $0x48] sm:$0xff]
      %v637 = vld [vmem:[#allocation2 + $0x50] sm:$0xff]
      %v638 = vld [vmem:[#allocation2 + $0x58] sm:$0xff]
      %v639 = vld [vmem:[#allocation2 + $0x60] sm:$0xff]
      %v640 = vld [vmem:[#allocation2 + $0x68] sm:$0xff]
      %v641 = vld [vmem:[#allocation2 + $0x70] sm:$0xff]
      %v642 = vld [vmem:[#allocation2 + $0x78] sm:$0xff]
      %v643 = vld [vmem:[%s502] sm:$0xff]
      %v644 = vld [vmem:[%s502 + $0x8] sm:$0xff]
      %v645 = vld [vmem:[%s502 + $0x10] sm:$0xff]
      %v646 = vld [vmem:[%s502 + $0x18] sm:$0xff]
      %vm647 = vcmask 261120
      %v649 = vsel %vm647, %v611, 0
      %v652 = vsel %vm647, %v612, 0
      %v655 = vsel %vm647, %v613, 0
      %v658 = vsel %vm647, %v614, 0
      %v661 = vsel %vm647, %v615, 0
      %v664 = vsel %vm647, %v616, 0
      %v667 = vsel %vm647, %v617, 0
      %v670 = vsel %vm647, %v618, 0
      %v673 = vsel %vm647, %v619, 0
      %v676 = vsel %vm647, %v620, 0
      %v679 = vsel %vm647, %v621, 0
      %v682 = vsel %vm647, %v622, 0
      %v685 = vsel %vm647, %v623, 0
      %v688 = vsel %vm647, %v624, 0
      %v691 = vsel %vm647, %v625, 0
      %v694 = vsel %vm647, %v626, 0
      %696 = vmatprep.subr.mxu0 0.0
      %697 = vmatpush1.msra.mxu0 %v643
      %698 = vmatprep.subr.mxu0 0.0
      %699 = vmatpush1.msra.mxu0 %v644
      %700 = vmatprep.subr.mxu0 0.0
      %701 = vmatpush1.msra.mxu0 %v645
      %702 = vmatprep.subr.mxu0 0.0
      %703 = vmatpush1.msra.mxu0 %v646
      %704 = vmatprep.subr.mxu0 0.0
      %705 = vmatpush1.msra.mxu0 0.0
      %706 = vmatprep.subr.mxu0 0.0
      %707 = vmatpush1.msra.mxu0 0.0
      %708 = vmatprep.subr.mxu0 0.0
      %709 = vmatpush1.msra.mxu0 0.0
      %710 = vmatprep.subr.mxu0 0.0
      %711 = vmatpush1.msra.mxu0 0.0
      %712 = vmatprep.subr.mxu0 0.0
      %713 = vmatpush1.msra.mxu0 0.0
      %714 = vmatprep.subr.mxu0 0.0
      %715 = vmatpush1.msra.mxu0 0.0
      %716 = vmatprep.subr.mxu0 0.0
      %717 = vmatpush1.msra.mxu0 0.0
      %718 = vmatprep.subr.mxu0 0.0
      %719 = vmatpush1.msra.mxu0 0.0
      %720 = vmatprep.subr.mxu0 0.0
      %721 = vmatpush1.msra.mxu0 0.0
      %722 = vmatprep.subr.mxu0 0.0
      %723 = vmatpush1.msra.mxu0 0.0
      %724 = vmatprep.subr.mxu0 0.0
      %725 = vmatpush1.msra.mxu0 0.0
      %726 = vmatprep.subr.mxu0 0.0
      %727 = vmatpush1.msra.mxu0 0.0
      %728 = vmatprep.subr.mxu0 0.0
      %729 = vmatpush1.msra.mxu0 0.0
      %730 = vmatprep.subr.mxu0 0.0
      %731 = vmatpush1.msra.mxu0 0.0
      %732 = vmatprep.subr.mxu0 0.0
      %733 = vmatpush1.msra.mxu0 0.0
      %734 = vmatprep.subr.mxu0 0.0
      %735 = vmatpush1.msra.mxu0 0.0
      %736 = vmatprep.subr.mxu0 0.0
      %737 = vmatpush1.msra.mxu0 0.0
      %738 = vmatprep.subr.mxu0 0.0
      %739 = vmatpush1.msra.mxu0 0.0
      %740 = vmatprep.subr.mxu0 0.0
      %741 = vmatpush1.msra.mxu0 0.0
      %742 = vmatprep.subr.mxu0 0.0
      %743 = vmatpush1.msra.mxu0 0.0
      %744 = vmatprep.subr.mxu0 0.0
      %745 = vmatpush1.msra.mxu0 0.0
      %746 = vmatprep.subr.mxu0 0.0
      %747 = vmatpush1.msra.mxu0 0.0
      %748 = vmatprep.subr.mxu0 0.0
      %749 = vmatpush1.msra.mxu0 0.0
      %750 = vmatprep.subr.mxu0 0.0
      %751 = vmatpush1.msra.mxu0 0.0
      %752 = vmatprep.subr.mxu0 0.0
      %753 = vmatpush1.msra.mxu0 0.0
      %754 = vmatprep.subr.mxu0 0.0
      %755 = vmatpush1.msra.mxu0 0.0
      %756 = vmatprep.subr.mxu0 0.0
      %757 = vmatpush1.msra.mxu0 0.0
      %758 = vmatprep.subr.mxu0 0.0
      %759 = vmatpush1.msra.mxu0 0.0
      %760 = vmatprep.mubr.f32.mxu0 0.0
      %761 = vmatmul.mubr.f32.gmra.mrb[0].mxu0 %v649
      %v762 = vpop.f32.mrb[0].mxu0
      %v763 = vadd.f32 0.0, %v762
      %v764 = vpop.f32.mrb[0].mxu0
      %765 = vmatprep.mubr.f32.mxu0 0.0
      %766 = vmatmul.mubr.f32.gmra.mrb[0].mxu0 %v652
      %v767 = vpop.f32.mrb[0].mxu0
      %v768 = vadd.f32 0.0, %v767
      %v769 = vpop.f32.mrb[0].mxu0
      %770 = vmatprep.mubr.f32.mxu0 0.0
      %771 = vmatmul.mubr.f32.gmra.mrb[0].mxu0 %v655
      %v772 = vpop.f32.mrb[0].mxu0
      %v773 = vadd.f32 0.0, %v772
      %v774 = vpop.f32.mrb[0].mxu0
      %775 = vmatprep.mubr.f32.mxu0 0.0
      %776 = vmatmul.mubr.f32.gmra.mrb[0].mxu0 %v658
      %v777 = vpop.f32.mrb[0].mxu0
      %v778 = vadd.f32 0.0, %v777
      %v779 = vpop.f32.mrb[0].mxu0
      %780 = vmatprep.mubr.f32.mxu0 0.0
      %781 = vmatmul.mubr.f32.gmra.mrb[0].mxu0 %v661
      %v782 = vpop.f32.mrb[0].mxu0
      %v783 = vadd.f32 0.0, %v782
      %v784 = vpop.f32.mrb[0].mxu0
      %785 = vmatprep.mubr.f32.mxu0 0.0
      %786 = vmatmul.mubr.f32.gmra.mrb[0].mxu0 %v664
      %v787 = vpop.f32.mrb[0].mxu0
      %v788 = vadd.f32 0.0, %v787
      %v789 = vpop.f32.mrb[0].mxu0
      %790 = vmatprep.mubr.f32.mxu0 0.0
      %791 = vmatmul.mubr.f32.gmra.mrb[0].mxu0 %v667
      %v792 = vpop.f32.mrb[0].mxu0
      %v793 = vadd.f32 0.0, %v792
      %v794 = vpop.f32.mrb[0].mxu0
      %795 = vmatprep.mubr.f32.mxu0 0.0
      %796 = vmatmul.mubr.f32.gmra.mrb[0].mxu0 %v670
      %v797 = vpop.f32.mrb[0].mxu0
      %v798 = vadd.f32 0.0, %v797
      %v799 = vpop.f32.mrb[0].mxu0
      %800 = vmatprep.mubr.f32.mxu0 0.0
      %801 = vmatmul.mubr.f32.gmra.mrb[0].mxu0 %v673
      %v802 = vpop.f32.mrb[0].mxu0
      %v803 = vadd.f32 0.0, %v802
      %v804 = vpop.f32.mrb[0].mxu0
      %805 = vmatprep.mubr.f32.mxu0 0.0
      %806 = vmatmul.mubr.f32.gmra.mrb[0].mxu0 %v676
      %v807 = vpop.f32.mrb[0].mxu0
      %v808 = vadd.f32 0.0, %v807
      %v809 = vpop.f32.mrb[0].mxu0
      %810 = vmatprep.mubr.f32.mxu0 0.0
      %811 = vmatmul.mubr.f32.gmra.mrb[0].mxu0 %v679
      %v812 = vpop.f32.mrb[0].mxu0
      %v813 = vadd.f32 0.0, %v812
      %v814 = vpop.f32.mrb[0].mxu0
      %815 = vmatprep.mubr.f32.mxu0 0.0
      %816 = vmatmul.mubr.f32.gmra.mrb[0].mxu0 %v682
      %v817 = vpop.f32.mrb[0].mxu0
      %v818 = vadd.f32 0.0, %v817
      %v819 = vpop.f32.mrb[0].mxu0
      %820 = vmatprep.mubr.f32.mxu0 0.0
      %821 = vmatmul.mubr.f32.gmra.mrb[0].mxu0 %v685
      %v822 = vpop.f32.mrb[0].mxu0
      %v823 = vadd.f32 0.0, %v822
      %v824 = vpop.f32.mrb[0].mxu0
      %825 = vmatprep.mubr.f32.mxu0 0.0
      %826 = vmatmul.mubr.f32.gmra.mrb[0].mxu0 %v688
      %v827 = vpop.f32.mrb[0].mxu0
      %v828 = vadd.f32 0.0, %v827
      %v829 = vpop.f32.mrb[0].mxu0
      %830 = vmatprep.mubr.f32.mxu0 0.0
      %831 = vmatmul.mubr.f32.gmra.mrb[0].mxu0 %v691
      %v832 = vpop.f32.mrb[0].mxu0
      %v833 = vadd.f32 0.0, %v832
      %v834 = vpop.f32.mrb[0].mxu0
      %835 = vmatprep.mubr.f32.mxu0 0.0
      %836 = vmatmul.mubr.f32.gmra.mrb[0].mxu0 %v694
      %v837 = vpop.f32.mrb[0].mxu0
      %v838 = vadd.f32 0.0, %v837
      %v839 = vpop.f32.mrb[0].mxu0
      %840 = vdwg.mxu0
      %v841 = vadd.f32 %v627, %v763
      %v842 = vadd.f32 %v628, %v768
      %v843 = vadd.f32 %v629, %v773
      %v844 = vadd.f32 %v630, %v778
      %v845 = vadd.f32 %v631, %v783
      %v846 = vadd.f32 %v632, %v788
      %v847 = vadd.f32 %v633, %v793
      %v848 = vadd.f32 %v634, %v798
      %v849 = vadd.f32 %v635, %v803
      %v850 = vadd.f32 %v636, %v808
      %v851 = vadd.f32 %v637, %v813
      %v852 = vadd.f32 %v638, %v818
      %v853 = vadd.f32 %v639, %v823
      %v854 = vadd.f32 %v640, %v828
      %v855 = vadd.f32 %v641, %v833
      %v856 = vadd.f32 %v642, %v838
      %857 = vst.msk [vmem:[#allocation2] sm:$0xff] %vm647, %v841
      %858 = vst.msk [vmem:[#allocation2 + $0x8] sm:$0xff] %vm647, %v842
      %859 = vst.msk [vmem:[#allocation2 + $0x10] sm:$0xff] %vm647, %v843
      %860 = vst.msk [vmem:[#allocation2 + $0x18] sm:$0xff] %vm647, %v844
      %861 = vst.msk [vmem:[#allocation2 + $0x20] sm:$0xff] %vm647, %v845
      %862 = vst.msk [vmem:[#allocation2 + $0x28] sm:$0xff] %vm647, %v846
      %863 = vst.msk [vmem:[#allocation2 + $0x30] sm:$0xff] %vm647, %v847
      %864 = vst.msk [vmem:[#allocation2 + $0x38] sm:$0xff] %vm647, %v848
      %865 = vst.msk [vmem:[#allocation2 + $0x40] sm:$0xff] %vm647, %v849
      %866 = vst.msk [vmem:[#allocation2 + $0x48] sm:$0xff] %vm647, %v850
      %867 = vst.msk [vmem:[#allocation2 + $0x50] sm:$0xff] %vm647, %v851
      %868 = vst.msk [vmem:[#allocation2 + $0x58] sm:$0xff] %vm647, %v852
      %869 = vst.msk [vmem:[#allocation2 + $0x60] sm:$0xff] %vm647, %v853
      %870 = vst.msk [vmem:[#allocation2 + $0x68] sm:$0xff] %vm647, %v854
      %871 = vst.msk [vmem:[#allocation2 + $0x70] sm:$0xff] %vm647, %v855
      %872 = vst.msk [vmem:[#allocation2 + $0x78] sm:$0xff] %vm647, %v856
      %v873 = vld [vmem:[#allocation3] sm:$0xff]
      %v874 = vld [vmem:[#allocation3 + $0x8] sm:$0xff]
      %v875 = vld [vmem:[#allocation3 + $0x10] sm:$0xff]
      %v876 = vld [vmem:[#allocation3 + $0x18] sm:$0xff]
      %v877 = vld [vmem:[#allocation3 + $0x20] sm:$0xff]
      %v878 = vld [vmem:[#allocation3 + $0x28] sm:$0xff]
      %v879 = vld [vmem:[#allocation3 + $0x30] sm:$0xff]
      %v880 = vld [vmem:[#allocation3 + $0x38] sm:$0xff]
      %v881 = vld [vmem:[#allocation3 + $0x40] sm:$0xff]
      %v882 = vld [vmem:[#allocation3 + $0x48] sm:$0xff]
      %v883 = vld [vmem:[#allocation3 + $0x50] sm:$0xff]
      %v884 = vld [vmem:[#allocation3 + $0x58] sm:$0xff]
      %v885 = vld [vmem:[#allocation3 + $0x60] sm:$0xff]
      %v886 = vld [vmem:[#allocation3 + $0x68] sm:$0xff]
      %v887 = vld [vmem:[#allocation3 + $0x70] sm:$0xff]
      %v888 = vld [vmem:[#allocation3 + $0x78] sm:$0xff]
      %v889 = vld [vmem:[%s511] sm:$0xff]
      %v890 = vld [vmem:[%s511 + $0x8] sm:$0xff]
      %v891 = vld [vmem:[%s511 + $0x10] sm:$0xff]
      %v892 = vld [vmem:[%s511 + $0x18] sm:$0xff]
      %893 = vmatprep.subr.mxu0 0.0
      %894 = vmatpush1.msra.mxu0 %v889
      %895 = vmatprep.subr.mxu0 0.0
      %896 = vmatpush1.msra.mxu0 %v890
      %897 = vmatprep.subr.mxu0 0.0
      %898 = vmatpush1.msra.mxu0 %v891
      %899 = vmatprep.subr.mxu0 0.0
      %900 = vmatpush1.msra.mxu0 %v892
      %901 = vmatprep.subr.mxu0 0.0
      %902 = vmatpush1.msra.mxu0 0.0
      %903 = vmatprep.subr.mxu0 0.0
      %904 = vmatpush1.msra.mxu0 0.0
      %905 = vmatprep.subr.mxu0 0.0
      %906 = vmatpush1.msra.mxu0 0.0
      %907 = vmatprep.subr.mxu0 0.0
      %908 = vmatpush1.msra.mxu0 0.0
      %909 = vmatprep.subr.mxu0 0.0
      %910 = vmatpush1.msra.mxu0 0.0
      %911 = vmatprep.subr.mxu0 0.0
      %912 = vmatpush1.msra.mxu0 0.0
      %913 = vmatprep.subr.mxu0 0.0
      %914 = vmatpush1.msra.mxu0 0.0
      %915 = vmatprep.subr.mxu0 0.0
      %916 = vmatpush1.msra.mxu0 0.0
      %917 = vmatprep.subr.mxu0 0.0
      %918 = vmatpush1.msra.mxu0 0.0
      %919 = vmatprep.subr.mxu0 0.0
      %920 = vmatpush1.msra.mxu0 0.0
      %921 = vmatprep.subr.mxu0 0.0
      %922 = vmatpush1.msra.mxu0 0.0
      %923 = vmatprep.subr.mxu0 0.0
      %924 = vmatpush1.msra.mxu0 0.0
      %925 = vmatprep.subr.mxu0 0.0
      %926 = vmatpush1.msra.mxu0 0.0
      %927 = vmatprep.subr.mxu0 0.0
      %928 = vmatpush1.msra.mxu0 0.0
      %929 = vmatprep.subr.mxu0 0.0
      %930 = vmatpush1.msra.mxu0 0.0
      %931 = vmatprep.subr.mxu0 0.0
      %932 = vmatpush1.msra.mxu0 0.0
      %933 = vmatprep.subr.mxu0 0.0
      %934 = vmatpush1.msra.mxu0 0.0
      %935 = vmatprep.subr.mxu0 0.0
      %936 = vmatpush1.msra.mxu0 0.0
      %937 = vmatprep.subr.mxu0 0.0
      %938 = vmatpush1.msra.mxu0 0.0
      %939 = vmatprep.subr.mxu0 0.0
      %940 = vmatpush1.msra.mxu0 0.0
      %941 = vmatprep.subr.mxu0 0.0
      %942 = vmatpush1.msra.mxu0 0.0
      %943 = vmatprep.subr.mxu0 0.0
      %944 = vmatpush1.msra.mxu0 0.0
      %945 = vmatprep.subr.mxu0 0.0
      %946 = vmatpush1.msra.mxu0 0.0
      %947 = vmatprep.subr.mxu0 0.0
      %948 = vmatpush1.msra.mxu0 0.0
      %949 = vmatprep.subr.mxu0 0.0
      %950 = vmatpush1.msra.mxu0 0.0
      %951 = vmatprep.subr.mxu0 0.0
      %952 = vmatpush1.msra.mxu0 0.0
      %953 = vmatprep.subr.mxu0 0.0
      %954 = vmatpush1.msra.mxu0 0.0
      %955 = vmatprep.subr.mxu0 0.0
      %956 = vmatpush1.msra.mxu0 0.0
      %957 = vmatprep.mubr.f32.mxu0 0.0
      %958 = vmatmul.mubr.f32.gmra.mrb[0].mxu0 %v649
      %v959 = vpop.f32.mrb[0].mxu0
      %v960 = vadd.f32 0.0, %v959
      %v961 = vpop.f32.mrb[0].mxu0
      %962 = vmatprep.mubr.f32.mxu0 0.0
      %963 = vmatmul.mubr.f32.gmra.mrb[0].mxu0 %v652
      %v964 = vpop.f32.mrb[0].mxu0
      %v965 = vadd.f32 0.0, %v964
      %v966 = vpop.f32.mrb[0].mxu0
      %967 = vmatprep.mubr.f32.mxu0 0.0
      %968 = vmatmul.mubr.f32.gmra.mrb[0].mxu0 %v655
      %v969 = vpop.f32.mrb[0].mxu0
      %v970 = vadd.f32 0.0, %v969
      %v971 = vpop.f32.mrb[0].mxu0
      %972 = vmatprep.mubr.f32.mxu0 0.0
      %973 = vmatmul.mubr.f32.gmra.mrb[0].mxu0 %v658
      %v974 = vpop.f32.mrb[0].mxu0
      %v975 = vadd.f32 0.0, %v974
      %v976 = vpop.f32.mrb[0].mxu0
      %977 = vmatprep.mubr.f32.mxu0 0.0
      %978 = vmatmul.mubr.f32.gmra.mrb[0].mxu0 %v661
      %v979 = vpop.f32.mrb[0].mxu0
      %v980 = vadd.f32 0.0, %v979
      %v981 = vpop.f32.mrb[0].mxu0
      %982 = vmatprep.mubr.f32.mxu0 0.0
      %983 = vmatmul.mubr.f32.gmra.mrb[0].mxu0 %v664
      %v984 = vpop.f32.mrb[0].mxu0
      %v985 = vadd.f32 0.0, %v984
      %v986 = vpop.f32.mrb[0].mxu0
      %987 = vmatprep.mubr.f32.mxu0 0.0
      %988 = vmatmul.mubr.f32.gmra.mrb[0].mxu0 %v667
      %v989 = vpop.f32.mrb[0].mxu0
      %v990 = vadd.f32 0.0, %v989
      %v991 = vpop.f32.mrb[0].mxu0
      %992 = vmatprep.mubr.f32.mxu0 0.0
      %993 = vmatmul.mubr.f32.gmra.mrb[0].mxu0 %v670
      %v994 = vpop.f32.mrb[0].mxu0
      %v995 = vadd.f32 0.0, %v994
      %v996 = vpop.f32.mrb[0].mxu0
      %997 = vmatprep.mubr.f32.mxu0 0.0
      %998 = vmatmul.mubr.f32.gmra.mrb[0].mxu0 %v673
      %v999 = vpop.f32.mrb[0].mxu0
      %v1000 = vadd.f32 0.0, %v999
      %v1001 = vpop.f32.mrb[0].mxu0
      %1002 = vmatprep.mubr.f32.mxu0 0.0
      %1003 = vmatmul.mubr.f32.gmra.mrb[0].mxu0 %v676
      %v1004 = vpop.f32.mrb[0].mxu0
      %v1005 = vadd.f32 0.0, %v1004
      %v1006 = vpop.f32.mrb[0].mxu0
      %1007 = vmatprep.mubr.f32.mxu0 0.0
      %1008 = vmatmul.mubr.f32.gmra.mrb[0].mxu0 %v679
      %v1009 = vpop.f32.mrb[0].mxu0
      %v1010 = vadd.f32 0.0, %v1009
      %v1011 = vpop.f32.mrb[0].mxu0
      %1012 = vmatprep.mubr.f32.mxu0 0.0
      %1013 = vmatmul.mubr.f32.gmra.mrb[0].mxu0 %v682
      %v1014 = vpop.f32.mrb[0].mxu0
      %v1015 = vadd.f32 0.0, %v1014
      %v1016 = vpop.f32.mrb[0].mxu0
      %1017 = vmatprep.mubr.f32.mxu0 0.0
      %1018 = vmatmul.mubr.f32.gmra.mrb[0].mxu0 %v685
      %v1019 = vpop.f32.mrb[0].mxu0
      %v1020 = vadd.f32 0.0, %v1019
      %v1021 = vpop.f32.mrb[0].mxu0
      %1022 = vmatprep.mubr.f32.mxu0 0.0
      %1023 = vmatmul.mubr.f32.gmra.mrb[0].mxu0 %v688
      %v1024 = vpop.f32.mrb[0].mxu0
      %v1025 = vadd.f32 0.0, %v1024
      %v1026 = vpop.f32.mrb[0].mxu0
      %1027 = vmatprep.mubr.f32.mxu0 0.0
      %1028 = vmatmul.mubr.f32.gmra.mrb[0].mxu0 %v691
      %v1029 = vpop.f32.mrb[0].mxu0
      %v1030 = vadd.f32 0.0, %v1029
      %v1031 = vpop.f32.mrb[0].mxu0
      %1032 = vmatprep.mubr.f32.mxu0 0.0
      %1033 = vmatmul.mubr.f32.gmra.mrb[0].mxu0 %v694
      %v1034 = vpop.f32.mrb[0].mxu0
      %v1035 = vadd.f32 0.0, %v1034
      %v1036 = vpop.f32.mrb[0].mxu0
      %1037 = vdwg.mxu0
      %v1038 = vadd.f32 %v873, %v960
      %v1039 = vadd.f32 %v874, %v965
      %v1040 = vadd.f32 %v875, %v970
      %v1041 = vadd.f32 %v876, %v975
      %v1042 = vadd.f32 %v877, %v980
      %v1043 = vadd.f32 %v878, %v985
      %v1044 = vadd.f32 %v879, %v990
      %v1045 = vadd.f32 %v880, %v995
      %v1046 = vadd.f32 %v881, %v1000
      %v1047 = vadd.f32 %v882, %v1005
      %v1048 = vadd.f32 %v883, %v1010
      %v1049 = vadd.f32 %v884, %v1015
      %v1050 = vadd.f32 %v885, %v1020
      %v1051 = vadd.f32 %v886, %v1025
      %v1052 = vadd.f32 %v887, %v1030
      %v1053 = vadd.f32 %v888, %v1035
      %1054 = vst.msk [vmem:[#allocation3] sm:$0xff] %vm647, %v1038
      %1055 = vst.msk [vmem:[#allocation3 + $0x8] sm:$0xff] %vm647, %v1039
      %1056 = vst.msk [vmem:[#allocation3 + $0x10] sm:$0xff] %vm647, %v1040
      %1057 = vst.msk [vmem:[#allocation3 + $0x18] sm:$0xff] %vm647, %v1041
      %1058 = vst.msk [vmem:[#allocation3 + $0x20] sm:$0xff] %vm647, %v1042
      %1059 = vst.msk [vmem:[#allocation3 + $0x28] sm:$0xff] %vm647, %v1043
      %1060 = vst.msk [vmem:[#allocation3 + $0x30] sm:$0xff] %vm647, %v1044
      %1061 = vst.msk [vmem:[#allocation3 + $0x38] sm:$0xff] %vm647, %v1045
      %1062 = vst.msk [vmem:[#allocation3 + $0x40] sm:$0xff] %vm647, %v1046
      %1063 = vst.msk [vmem:[#allocation3 + $0x48] sm:$0xff] %vm647, %v1047
      %1064 = vst.msk [vmem:[#allocation3 + $0x50] sm:$0xff] %vm647, %v1048
      %1065 = vst.msk [vmem:[#allocation3 + $0x58] sm:$0xff] %vm647, %v1049
      %1066 = vst.msk [vmem:[#allocation3 + $0x60] sm:$0xff] %vm647, %v1050
      %1067 = vst.msk [vmem:[#allocation3 + $0x68] sm:$0xff] %vm647, %v1051
      %1068 = vst.msk [vmem:[#allocation3 + $0x70] sm:$0xff] %vm647, %v1052
      %1069 = vst.msk [vmem:[#allocation3 + $0x78] sm:$0xff] %vm647, %v1053
      %v1070 = vld [vmem:[#allocation4] sm:$0xff]
      %v1071 = vld [vmem:[#allocation4 + $0x8] sm:$0xff]
      %v1072 = vld [vmem:[#allocation4 + $0x10] sm:$0xff]
      %v1073 = vld [vmem:[#allocation4 + $0x18] sm:$0xff]
      %v1074 = vld [vmem:[#allocation4 + $0x20] sm:$0xff]
      %v1075 = vld [vmem:[#allocation4 + $0x28] sm:$0xff]
      %v1076 = vld [vmem:[#allocation4 + $0x30] sm:$0xff]
      %v1077 = vld [vmem:[#allocation4 + $0x38] sm:$0xff]
      %v1078 = vld [vmem:[#allocation4 + $0x40] sm:$0xff]
      %v1079 = vld [vmem:[#allocation4 + $0x48] sm:$0xff]
      %v1080 = vld [vmem:[#allocation4 + $0x50] sm:$0xff]
      %v1081 = vld [vmem:[#allocation4 + $0x58] sm:$0xff]
      %v1082 = vld [vmem:[#allocation4 + $0x60] sm:$0xff]
      %v1083 = vld [vmem:[#allocation4 + $0x68] sm:$0xff]
      %v1084 = vld [vmem:[#allocation4 + $0x70] sm:$0xff]
      %v1085 = vld [vmem:[#allocation4 + $0x78] sm:$0xff]
      %v1086 = vld [vmem:[%s520] sm:$0xff]
      %v1087 = vld [vmem:[%s520 + $0x8] sm:$0xff]
      %v1088 = vld [vmem:[%s520 + $0x10] sm:$0xff]
      %v1089 = vld [vmem:[%s520 + $0x18] sm:$0xff]
      %1090 = vmatprep.subr.mxu0 0.0
      %1091 = vmatpush1.msra.mxu0 %v1086
      %1092 = vmatprep.subr.mxu0 0.0
      %1093 = vmatpush1.msra.mxu0 %v1087
      %1094 = vmatprep.subr.mxu0 0.0
      %1095 = vmatpush1.msra.mxu0 %v1088
      %1096 = vmatprep.subr.mxu0 0.0
      %1097 = vmatpush1.msra.mxu0 %v1089
      %1098 = vmatprep.subr.mxu0 0.0
      %1099 = vmatpush1.msra.mxu0 0.0
      %1100 = vmatprep.subr.mxu0 0.0
      %1101 = vmatpush1.msra.mxu0 0.0
      %1102 = vmatprep.subr.mxu0 0.0
      %1103 = vmatpush1.msra.mxu0 0.0
      %1104 = vmatprep.subr.mxu0 0.0
      %1105 = vmatpush1.msra.mxu0 0.0
      %1106 = vmatprep.subr.mxu0 0.0
      %1107 = vmatpush1.msra.mxu0 0.0
      %1108 = vmatprep.subr.mxu0 0.0
      %1109 = vmatpush1.msra.mxu0 0.0
      %1110 = vmatprep.subr.mxu0 0.0
      %1111 = vmatpush1.msra.mxu0 0.0
      %1112 = vmatprep.subr.mxu0 0.0
      %1113 = vmatpush1.msra.mxu0 0.0
      %1114 = vmatprep.subr.mxu0 0.0
      %1115 = vmatpush1.msra.mxu0 0.0
      %1116 = vmatprep.subr.mxu0 0.0
      %1117 = vmatpush1.msra.mxu0 0.0
      %1118 = vmatprep.subr.mxu0 0.0
      %1119 = vmatpush1.msra.mxu0 0.0
      %1120 = vmatprep.subr.mxu0 0.0
      %1121 = vmatpush1.msra.mxu0 0.0
      %1122 = vmatprep.subr.mxu0 0.0
      %1123 = vmatpush1.msra.mxu0 0.0
      %1124 = vmatprep.subr.mxu0 0.0
      %1125 = vmatpush1.msra.mxu0 0.0
      %1126 = vmatprep.subr.mxu0 0.0
      %1127 = vmatpush1.msra.mxu0 0.0
      %1128 = vmatprep.subr.mxu0 0.0
      %1129 = vmatpush1.msra.mxu0 0.0
      %1130 = vmatprep.subr.mxu0 0.0
      %1131 = vmatpush1.msra.mxu0 0.0
      %1132 = vmatprep.subr.mxu0 0.0
      %1133 = vmatpush1.msra.mxu0 0.0
      %1134 = vmatprep.subr.mxu0 0.0
      %1135 = vmatpush1.msra.mxu0 0.0
      %1136 = vmatprep.subr.mxu0 0.0
      %1137 = vmatpush1.msra.mxu0 0.0
      %1138 = vmatprep.subr.mxu0 0.0
      %1139 = vmatpush1.msra.mxu0 0.0
      %1140 = vmatprep.subr.mxu0 0.0
      %1141 = vmatpush1.msra.mxu0 0.0
      %1142 = vmatprep.subr.mxu0 0.0
      %1143 = vmatpush1.msra.mxu0 0.0
      %1144 = vmatprep.subr.mxu0 0.0
      %1145 = vmatpush1.msra.mxu0 0.0
      %1146 = vmatprep.subr.mxu0 0.0
      %1147 = vmatpush1.msra.mxu0 0.0
      %1148 = vmatprep.subr.mxu0 0.0
      %1149 = vmatpush1.msra.mxu0 0.0
      %1150 = vmatprep.subr.mxu0 0.0
      %1151 = vmatpush1.msra.mxu0 0.0
      %1152 = vmatprep.subr.mxu0 0.0
      %1153 = vmatpush1.msra.mxu0 0.0
      %1154 = vmatprep.mubr.f32.mxu0 0.0
      %1155 = vmatmul.mubr.f32.gmra.mrb[0].mxu0 %v649
      %v1156 = vpop.f32.mrb[0].mxu0
      %v1157 = vadd.f32 0.0, %v1156
      %v1158 = vpop.f32.mrb[0].mxu0
      %1159 = vmatprep.mubr.f32.mxu0 0.0
      %1160 = vmatmul.mubr.f32.gmra.mrb[0].mxu0 %v652
      %v1161 = vpop.f32.mrb[0].mxu0
      %v1162 = vadd.f32 0.0, %v1161
      %v1163 = vpop.f32.mrb[0].mxu0
      %1164 = vmatprep.mubr.f32.mxu0 0.0
      %1165 = vmatmul.mubr.f32.gmra.mrb[0].mxu0 %v655
      %v1166 = vpop.f32.mrb[0].mxu0
      %v1167 = vadd.f32 0.0, %v1166
      %v1168 = vpop.f32.mrb[0].mxu0
      %1169 = vmatprep.mubr.f32.mxu0 0.0
      %1170 = vmatmul.mubr.f32.gmra.mrb[0].mxu0 %v658
      %v1171 = vpop.f32.mrb[0].mxu0
      %v1172 = vadd.f32 0.0, %v1171
      %v1173 = vpop.f32.mrb[0].mxu0
      %1174 = vmatprep.mubr.f32.mxu0 0.0
      %1175 = vmatmul.mubr.f32.gmra.mrb[0].mxu0 %v661
      %v1176 = vpop.f32.mrb[0].mxu0
      %v1177 = vadd.f32 0.0, %v1176
      %v1178 = vpop.f32.mrb[0].mxu0
      %1179 = vmatprep.mubr.f32.mxu0 0.0
      %1180 = vmatmul.mubr.f32.gmra.mrb[0].mxu0 %v664
      %v1181 = vpop.f32.mrb[0].mxu0
      %v1182 = vadd.f32 0.0, %v1181
      %v1183 = vpop.f32.mrb[0].mxu0
      %1184 = vmatprep.mubr.f32.mxu0 0.0
      %1185 = vmatmul.mubr.f32.gmra.mrb[0].mxu0 %v667
      %v1186 = vpop.f32.mrb[0].mxu0
      %v1187 = vadd.f32 0.0, %v1186
      %v1188 = vpop.f32.mrb[0].mxu0
      %1189 = vmatprep.mubr.f32.mxu0 0.0
      %1190 = vmatmul.mubr.f32.gmra.mrb[0].mxu0 %v670
      %v1191 = vpop.f32.mrb[0].mxu0
      %v1192 = vadd.f32 0.0, %v1191
      %v1193 = vpop.f32.mrb[0].mxu0
      %1194 = vmatprep.mubr.f32.mxu0 0.0
      %1195 = vmatmul.mubr.f32.gmra.mrb[0].mxu0 %v673
      %v1196 = vpop.f32.mrb[0].mxu0
      %v1197 = vadd.f32 0.0, %v1196
      %v1198 = vpop.f32.mrb[0].mxu0
      %1199 = vmatprep.mubr.f32.mxu0 0.0
      %1200 = vmatmul.mubr.f32.gmra.mrb[0].mxu0 %v676
      %v1201 = vpop.f32.mrb[0].mxu0
      %v1202 = vadd.f32 0.0, %v1201
      %v1203 = vpop.f32.mrb[0].mxu0
      %1204 = vmatprep.mubr.f32.mxu0 0.0
      %1205 = vmatmul.mubr.f32.gmra.mrb[0].mxu0 %v679
      %v1206 = vpop.f32.mrb[0].mxu0
      %v1207 = vadd.f32 0.0, %v1206
      %v1208 = vpop.f32.mrb[0].mxu0
      %1209 = vmatprep.mubr.f32.mxu0 0.0
      %1210 = vmatmul.mubr.f32.gmra.mrb[0].mxu0 %v682
      %v1211 = vpop.f32.mrb[0].mxu0
      %v1212 = vadd.f32 0.0, %v1211
      %v1213 = vpop.f32.mrb[0].mxu0
      %1214 = vmatprep.mubr.f32.mxu0 0.0
      %1215 = vmatmul.mubr.f32.gmra.mrb[0].mxu0 %v685
      %v1216 = vpop.f32.mrb[0].mxu0
      %v1217 = vadd.f32 0.0, %v1216
      %v1218 = vpop.f32.mrb[0].mxu0
      %1219 = vmatprep.mubr.f32.mxu0 0.0
      %1220 = vmatmul.mubr.f32.gmra.mrb[0].mxu0 %v688
      %v1221 = vpop.f32.mrb[0].mxu0
      %v1222 = vadd.f32 0.0, %v1221
      %v1223 = vpop.f32.mrb[0].mxu0
      %1224 = vmatprep.mubr.f32.mxu0 0.0
      %1225 = vmatmul.mubr.f32.gmra.mrb[0].mxu0 %v691
      %v1226 = vpop.f32.mrb[0].mxu0
      %v1227 = vadd.f32 0.0, %v1226
      %v1228 = vpop.f32.mrb[0].mxu0
      %1229 = vmatprep.mubr.f32.mxu0 0.0
      %1230 = vmatmul.mubr.f32.gmra.mrb[0].mxu0 %v694
      %v1231 = vpop.f32.mrb[0].mxu0
      %v1232 = vadd.f32 0.0, %v1231
      %v1233 = vpop.f32.mrb[0].mxu0
      %1234 = vdwg.mxu0
      %v1235 = vadd.f32 %v1070, %v1157
      %v1236 = vadd.f32 %v1071, %v1162
      %v1237 = vadd.f32 %v1072, %v1167
      %v1238 = vadd.f32 %v1073, %v1172
      %v1239 = vadd.f32 %v1074, %v1177
      %v1240 = vadd.f32 %v1075, %v1182
      %v1241 = vadd.f32 %v1076, %v1187
      %v1242 = vadd.f32 %v1077, %v1192
      %v1243 = vadd.f32 %v1078, %v1197
      %v1244 = vadd.f32 %v1079, %v1202
      %v1245 = vadd.f32 %v1080, %v1207
      %v1246 = vadd.f32 %v1081, %v1212
      %v1247 = vadd.f32 %v1082, %v1217
      %v1248 = vadd.f32 %v1083, %v1222
      %v1249 = vadd.f32 %v1084, %v1227
      %v1250 = vadd.f32 %v1085, %v1232
      %1251 = vst.msk [vmem:[#allocation4] sm:$0xff] %vm647, %v1235
      %1252 = vst.msk [vmem:[#allocation4 + $0x8] sm:$0xff] %vm647, %v1236
      %1253 = vst.msk [vmem:[#allocation4 + $0x10] sm:$0xff] %vm647, %v1237
      %1254 = vst.msk [vmem:[#allocation4 + $0x18] sm:$0xff] %vm647, %v1238
      %1255 = vst.msk [vmem:[#allocation4 + $0x20] sm:$0xff] %vm647, %v1239
      %1256 = vst.msk [vmem:[#allocation4 + $0x28] sm:$0xff] %vm647, %v1240
      %1257 = vst.msk [vmem:[#allocation4 + $0x30] sm:$0xff] %vm647, %v1241
      %1258 = vst.msk [vmem:[#allocation4 + $0x38] sm:$0xff] %vm647, %v1242
      %1259 = vst.msk [vmem:[#allocation4 + $0x40] sm:$0xff] %vm647, %v1243
      %1260 = vst.msk [vmem:[#allocation4 + $0x48] sm:$0xff] %vm647, %v1244
      %1261 = vst.msk [vmem:[#allocation4 + $0x50] sm:$0xff] %vm647, %v1245
      %1262 = vst.msk [vmem:[#allocation4 + $0x58] sm:$0xff] %vm647, %v1246
      %1263 = vst.msk [vmem:[#allocation4 + $0x60] sm:$0xff] %vm647, %v1247
      %1264 = vst.msk [vmem:[#allocation4 + $0x68] sm:$0xff] %vm647, %v1248
      %1265 = vst.msk [vmem:[#allocation4 + $0x70] sm:$0xff] %vm647, %v1249
      %1266 = vst.msk [vmem:[#allocation4 + $0x78] sm:$0xff] %vm647, %v1250
      // Predicated region
      $region53: #{multi_headed_attention.3} parent=47 // pred_check
        %p1267 = pneg %p558
      $region54: #{multi_headed_attention.3} parent=47 // pred_check_branch
        %1269 = sbr.rel (%p1267) target = $region56
      $region55: #{multi_headed_attention.3} parent=47 // pred_region
        %v1270 = vld [vmem:[#allocation2] sm:$0xff]
        %v1271 = vld [vmem:[#allocation2 + $0x8] sm:$0xff]
        %v1272 = vld [vmem:[#allocation2 + $0x10] sm:$0xff]
        %v1273 = vld [vmem:[#allocation2 + $0x18] sm:$0xff]
        %v1274 = vld [vmem:[#allocation2 + $0x20] sm:$0xff]
        %v1275 = vld [vmem:[#allocation2 + $0x28] sm:$0xff]
        %v1276 = vld [vmem:[#allocation2 + $0x30] sm:$0xff]
        %v1277 = vld [vmem:[#allocation2 + $0x38] sm:$0xff]
        %v1278 = vld [vmem:[#allocation2 + $0x40] sm:$0xff]
        %v1279 = vld [vmem:[#allocation2 + $0x48] sm:$0xff]
        %v1280 = vld [vmem:[#allocation2 + $0x50] sm:$0xff]
        %v1281 = vld [vmem:[#allocation2 + $0x58] sm:$0xff]
        %v1282 = vld [vmem:[#allocation2 + $0x60] sm:$0xff]
        %v1283 = vld [vmem:[#allocation2 + $0x68] sm:$0xff]
        %v1284 = vld [vmem:[#allocation2 + $0x70] sm:$0xff]
        %v1285 = vld [vmem:[#allocation2 + $0x78] sm:$0xff]
        %v1286 = vld [vmem:[%s524] sm:$0x1]
        %v1288 = vlaneseq
        %v1289 = vshrl.u32 %v1288, 7
        %v1290 = vsub.s32 0, %v1289
        %v1291 = vrot.slane %v1286, %v1290
        %v1293 = vadd.f32 %v1270, %v1291
        %v1294 = vadd.f32 %v1271, %v1291
        %v1295 = vadd.f32 %v1272, %v1291
        %v1296 = vadd.f32 %v1273, %v1291
        %v1297 = vadd.f32 %v1274, %v1291
        %v1298 = vadd.f32 %v1275, %v1291
        %v1299 = vadd.f32 %v1276, %v1291
        %v1300 = vadd.f32 %v1277, %v1291
        %v1301 = vadd.f32 %v1278, %v1291
        %v1302 = vadd.f32 %v1279, %v1291
        %v1303 = vadd.f32 %v1280, %v1291
        %v1304 = vadd.f32 %v1281, %v1291
        %v1305 = vadd.f32 %v1282, %v1291
        %v1306 = vadd.f32 %v1283, %v1291
        %v1307 = vadd.f32 %v1284, %v1291
        %v1308 = vadd.f32 %v1285, %v1291
        %1309 = vst.msk [vmem:[%s538] sm:$0xff] %vm647, %v1293
        %1310 = vst.msk [vmem:[%s538 + $0x8] sm:$0xff] %vm647, %v1294
        %1311 = vst.msk [vmem:[%s538 + $0x10] sm:$0xff] %vm647, %v1295
        %1312 = vst.msk [vmem:[%s538 + $0x18] sm:$0xff] %vm647, %v1296
        %1313 = vst.msk [vmem:[%s538 + $0x20] sm:$0xff] %vm647, %v1297
        %1314 = vst.msk [vmem:[%s538 + $0x28] sm:$0xff] %vm647, %v1298
        %1315 = vst.msk [vmem:[%s538 + $0x30] sm:$0xff] %vm647, %v1299
        %1316 = vst.msk [vmem:[%s538 + $0x38] sm:$0xff] %vm647, %v1300
        %1317 = vst.msk [vmem:[%s538 + $0x40] sm:$0xff] %vm647, %v1301
        %1318 = vst.msk [vmem:[%s538 + $0x48] sm:$0xff] %vm647, %v1302
        %1319 = vst.msk [vmem:[%s538 + $0x50] sm:$0xff] %vm647, %v1303
        %1320 = vst.msk [vmem:[%s538 + $0x58] sm:$0xff] %vm647, %v1304
        %1321 = vst.msk [vmem:[%s538 + $0x60] sm:$0xff] %vm647, %v1305
        %1322 = vst.msk [vmem:[%s538 + $0x68] sm:$0xff] %vm647, %v1306
        %1323 = vst.msk [vmem:[%s538 + $0x70] sm:$0xff] %vm647, %v1307
        %1324 = vst.msk [vmem:[%s538 + $0x78] sm:$0xff] %vm647, %v1308
        %v1325 = vld [vmem:[#allocation3] sm:$0xff]
        %v1326 = vld [vmem:[#allocation3 + $0x8] sm:$0xff]
        %v1327 = vld [vmem:[#allocation3 + $0x10] sm:$0xff]
        %v1328 = vld [vmem:[#allocation3 + $0x18] sm:$0xff]
        %v1329 = vld [vmem:[#allocation3 + $0x20] sm:$0xff]
        %v1330 = vld [vmem:[#allocation3 + $0x28] sm:$0xff]
        %v1331 = vld [vmem:[#allocation3 + $0x30] sm:$0xff]
        %v1332 = vld [vmem:[#allocation3 + $0x38] sm:$0xff]
        %v1333 = vld [vmem:[#allocation3 + $0x40] sm:$0xff]
        %v1334 = vld [vmem:[#allocation3 + $0x48] sm:$0xff]
        %v1335 = vld [vmem:[#allocation3 + $0x50] sm:$0xff]
        %v1336 = vld [vmem:[#allocation3 + $0x58] sm:$0xff]
        %v1337 = vld [vmem:[#allocation3 + $0x60] sm:$0xff]
        %v1338 = vld [vmem:[#allocation3 + $0x68] sm:$0xff]
        %v1339 = vld [vmem:[#allocation3 + $0x70] sm:$0xff]
        %v1340 = vld [vmem:[#allocation3 + $0x78] sm:$0xff]
        %v1341 = vld [vmem:[%s527] sm:$0x1]
        %v1343 = vlaneseq
        %v1344 = vshrl.u32 %v1343, 7
        %v1345 = vsub.s32 0, %v1344
        %v1346 = vrot.slane %v1341, %v1345
        %v1348 = vadd.f32 %v1325, %v1346
        %v1349 = vadd.f32 %v1326, %v1346
        %v1350 = vadd.f32 %v1327, %v1346
        %v1351 = vadd.f32 %v1328, %v1346
        %v1352 = vadd.f32 %v1329, %v1346
        %v1353 = vadd.f32 %v1330, %v1346
        %v1354 = vadd.f32 %v1331, %v1346
        %v1355 = vadd.f32 %v1332, %v1346
        %v1356 = vadd.f32 %v1333, %v1346
        %v1357 = vadd.f32 %v1334, %v1346
        %v1358 = vadd.f32 %v1335, %v1346
        %v1359 = vadd.f32 %v1336, %v1346
        %v1360 = vadd.f32 %v1337, %v1346
        %v1361 = vadd.f32 %v1338, %v1346
        %v1362 = vadd.f32 %v1339, %v1346
        %v1363 = vadd.f32 %v1340, %v1346
        %1364 = vst.msk [vmem:[%s547] sm:$0xff] %vm647, %v1348
        %1365 = vst.msk [vmem:[%s547 + $0x8] sm:$0xff] %vm647, %v1349
        %1366 = vst.msk [vmem:[%s547 + $0x10] sm:$0xff] %vm647, %v1350
        %1367 = vst.msk [vmem:[%s547 + $0x18] sm:$0xff] %vm647, %v1351
        %1368 = vst.msk [vmem:[%s547 + $0x20] sm:$0xff] %vm647, %v1352
        %1369 = vst.msk [vmem:[%s547 + $0x28] sm:$0xff] %vm647, %v1353
        %1370 = vst.msk [vmem:[%s547 + $0x30] sm:$0xff] %vm647, %v1354
        %1371 = vst.msk [vmem:[%s547 + $0x38] sm:$0xff] %vm647, %v1355
        %1372 = vst.msk [vmem:[%s547 + $0x40] sm:$0xff] %vm647, %v1356
        %1373 = vst.msk [vmem:[%s547 + $0x48] sm:$0xff] %vm647, %v1357
        %1374 = vst.msk [vmem:[%s547 + $0x50] sm:$0xff] %vm647, %v1358
        %1375 = vst.msk [vmem:[%s547 + $0x58] sm:$0xff] %vm647, %v1359
        %1376 = vst.msk [vmem:[%s547 + $0x60] sm:$0xff] %vm647, %v1360
        %1377 = vst.msk [vmem:[%s547 + $0x68] sm:$0xff] %vm647, %v1361
        %1378 = vst.msk [vmem:[%s547 + $0x70] sm:$0xff] %vm647, %v1362
        %1379 = vst.msk [vmem:[%s547 + $0x78] sm:$0xff] %vm647, %v1363
        %v1380 = vld [vmem:[#allocation4] sm:$0xff]
        %v1381 = vld [vmem:[#allocation4 + $0x8] sm:$0xff]
        %v1382 = vld [vmem:[#allocation4 + $0x10] sm:$0xff]
        %v1383 = vld [vmem:[#allocation4 + $0x18] sm:$0xff]
        %v1384 = vld [vmem:[#allocation4 + $0x20] sm:$0xff]
        %v1385 = vld [vmem:[#allocation4 + $0x28] sm:$0xff]
        %v1386 = vld [vmem:[#allocation4 + $0x30] sm:$0xff]
        %v1387 = vld [vmem:[#allocation4 + $0x38] sm:$0xff]
        %v1388 = vld [vmem:[#allocation4 + $0x40] sm:$0xff]
        %v1389 = vld [vmem:[#allocation4 + $0x48] sm:$0xff]
        %v1390 = vld [vmem:[#allocation4 + $0x50] sm:$0xff]
        %v1391 = vld [vmem:[#allocation4 + $0x58] sm:$0xff]
        %v1392 = vld [vmem:[#allocation4 + $0x60] sm:$0xff]
        %v1393 = vld [vmem:[#allocation4 + $0x68] sm:$0xff]
        %v1394 = vld [vmem:[#allocation4 + $0x70] sm:$0xff]
        %v1395 = vld [vmem:[#allocation4 + $0x78] sm:$0xff]
        %v1396 = vld [vmem:[%s530] sm:$0x1]
        %v1398 = vlaneseq
        %v1399 = vshrl.u32 %v1398, 7
        %v1400 = vsub.s32 0, %v1399
        %v1401 = vrot.slane %v1396, %v1400
        %v1403 = vadd.f32 %v1380, %v1401
        %v1404 = vadd.f32 %v1381, %v1401
        %v1405 = vadd.f32 %v1382, %v1401
        %v1406 = vadd.f32 %v1383, %v1401
        %v1407 = vadd.f32 %v1384, %v1401
        %v1408 = vadd.f32 %v1385, %v1401
        %v1409 = vadd.f32 %v1386, %v1401
        %v1410 = vadd.f32 %v1387, %v1401
        %v1411 = vadd.f32 %v1388, %v1401
        %v1412 = vadd.f32 %v1389, %v1401
        %v1413 = vadd.f32 %v1390, %v1401
        %v1414 = vadd.f32 %v1391, %v1401
        %v1415 = vadd.f32 %v1392, %v1401
        %v1416 = vadd.f32 %v1393, %v1401
        %v1417 = vadd.f32 %v1394, %v1401
        %v1418 = vadd.f32 %v1395, %v1401
        %1419 = vst.msk [vmem:[%s556] sm:$0xff] %vm647, %v1403
        %1420 = vst.msk [vmem:[%s556 + $0x8] sm:$0xff] %vm647, %v1404
        %1421 = vst.msk [vmem:[%s556 + $0x10] sm:$0xff] %vm647, %v1405
        %1422 = vst.msk [vmem:[%s556 + $0x18] sm:$0xff] %vm647, %v1406
        %1423 = vst.msk [vmem:[%s556 + $0x20] sm:$0xff] %vm647, %v1407
        %1424 = vst.msk [vmem:[%s556 + $0x28] sm:$0xff] %vm647, %v1408
        %1425 = vst.msk [vmem:[%s556 + $0x30] sm:$0xff] %vm647, %v1409
        %1426 = vst.msk [vmem:[%s556 + $0x38] sm:$0xff] %vm647, %v1410
        %1427 = vst.msk [vmem:[%s556 + $0x40] sm:$0xff] %vm647, %v1411
        %1428 = vst.msk [vmem:[%s556 + $0x48] sm:$0xff] %vm647, %v1412
        %1429 = vst.msk [vmem:[%s556 + $0x50] sm:$0xff] %vm647, %v1413
        %1430 = vst.msk [vmem:[%s556 + $0x58] sm:$0xff] %vm647, %v1414
        %1431 = vst.msk [vmem:[%s556 + $0x60] sm:$0xff] %vm647, %v1415
        %1432 = vst.msk [vmem:[%s556 + $0x68] sm:$0xff] %vm647, %v1416
        %1433 = vst.msk [vmem:[%s556 + $0x70] sm:$0xff] %vm647, %v1417
        %1434 = vst.msk [vmem:[%s556 + $0x78] sm:$0xff] %vm647, %v1418
      $region56: #{multi_headed_attention.3} parent=47 // pred_fallthru
        _
      %s1435 = smul.u32 16, %s26
      %p1436 = scmp.lt.s32.totalorder %s1435, 31
      %s1437 = scalar_select %p1436, %s1435, 31
      %p1438 = scmp.lt.s32.totalorder %s27, 0
      %s1439 = scalar_select %p1438, %s27, 0
      %s1440 = sadd.s32 %s1439, %s1437
      %s1441 = smul.addr %s1440, 8
      %s1442 = scalar_lea.vmem %s7, %s1441
      %s1443 = smul.u32 16, %s26
      %p1444 = scmp.lt.s32.totalorder %s1443, 31
      %s1445 = scalar_select %p1444, %s1443, 31
      %p1446 = scmp.lt.s32.totalorder %s27, 0
      %s1447 = scalar_select %p1446, %s27, 0
      %s1448 = sadd.s32 %s1447, %s1445
      %s1449 = smul.addr %s1448, 8
      %s1450 = scalar_lea.vmem %s8, %s1449
      %s1451 = smul.u32 16, %s26
      %p1452 = scmp.lt.s32.totalorder %s1451, 31
      %s1453 = scalar_select %p1452, %s1451, 31
      %p1454 = scmp.lt.s32.totalorder %s27, 0
      %s1455 = scalar_select %p1454, %s27, 0
      %s1456 = sadd.s32 %s1455, %s1453
      %s1457 = smul.addr %s1456, 8
      %s1458 = scalar_lea.vmem %s9, %s1457
      // Predicated region
      $region57: #{multi_headed_attention.3} parent=47 // pred_check
        %p1459 = pneg %p250
      $region58: #{multi_headed_attention.3} parent=47 // pred_check_branch
        %1461 = sbr.rel (%p1459) target = $region60
      $region59: #{multi_headed_attention.3} parent=47 // pred_region
        %s1462 = smul.u32 16, %s26
      $region60: #{multi_headed_attention.3} parent=47 // pred_fallthru
        _
      // Predicated region
      $region61: #{multi_headed_attention.3} parent=47 // pred_check
        %p1463 = pneg %p278
      $region62: #{multi_headed_attention.3} parent=47 // pred_check_branch
        %1465 = sbr.rel (%p1463) target = $region64
      $region63: #{multi_headed_attention.3} parent=47 // pred_region
        %s1466 = smul.u32 16, %s26
      $region64: #{multi_headed_attention.3} parent=47 // pred_fallthru
        _
      // Predicated region
      $region65: #{multi_headed_attention.3} parent=47 // pred_check
        %p1467 = pneg %p306
      $region66: #{multi_headed_attention.3} parent=47 // pred_check_branch
        %1469 = sbr.rel (%p1467) target = $region68
      $region67: #{multi_headed_attention.3} parent=47 // pred_region
        %s1470 = smul.u32 16, %s26
      $region68: #{multi_headed_attention.3} parent=47 // pred_fallthru
        _
    $region48: #{multi_headed_attention.3} parent=5 // pred_fallthru
      _
    %p1471 = scmp.le.s32.totalorder 2, %s16
    // Predicated region
    $region69: #{multi_headed_attention.3} parent=5 // pred_check
      %p1472 = pneg %p1471
    $region70: #{multi_headed_attention.3} parent=5 // pred_check_branch
      %1474 = sbr.rel (%p1472) target = $region72
    $region71: #{multi_headed_attention.3} parent=5 // pred_region
      %s1475 = ssub.s32 %s16, 2
      // Predicated region
      $region73: #{multi_headed_attention.3} parent=71 // pred_check
        %p1476 = pneg %p256
      $region74: #{multi_headed_attention.3} parent=71 // pred_check_branch
        %1478 = sbr.rel (%p1476) target = $region76
      $region75: #{multi_headed_attention.3} parent=71 // pred_region
        %s1479 = smul.u32 16, %s29
        %p1480 = scmp.lt.s32.totalorder %s1479, 31
        %s1481 = scalar_select %p1480, %s1479, 31
        %p1482 = scmp.lt.s32.totalorder %s30, 0
        %s1483 = scalar_select %p1482, %s30, 0
        %s1484 = sadd.s32 %s1483, %s1481
        %s1485 = smul.addr %s1484, 8
        %s1486 = scalar_lea.vmem %s7, %s1485
      $region76: #{multi_headed_attention.3} parent=71 // pred_fallthru
        _
      // Predicated region
      $region77: #{multi_headed_attention.3} parent=71 // pred_check
        %p1487 = pneg %p284
      $region78: #{multi_headed_attention.3} parent=71 // pred_check_branch
        %1489 = sbr.rel (%p1487) target = $region80
      $region79: #{multi_headed_attention.3} parent=71 // pred_region
        %s1490 = smul.u32 16, %s29
        %p1491 = scmp.lt.s32.totalorder %s1490, 31
        %s1492 = scalar_select %p1491, %s1490, 31
        %p1493 = scmp.lt.s32.totalorder %s30, 0
        %s1494 = scalar_select %p1493, %s30, 0
        %s1495 = sadd.s32 %s1494, %s1492
        %s1496 = smul.addr %s1495, 8
        %s1497 = scalar_lea.vmem %s8, %s1496
      $region80: #{multi_headed_attention.3} parent=71 // pred_fallthru
        _
      // Predicated region
      $region81: #{multi_headed_attention.3} parent=71 // pred_check
        %p1498 = pneg %p312
      $region82: #{multi_headed_attention.3} parent=71 // pred_check_branch
        %1500 = sbr.rel (%p1498) target = $region84
      $region83: #{multi_headed_attention.3} parent=71 // pred_region
        %s1501 = smul.u32 16, %s29
        %p1502 = scmp.lt.s32.totalorder %s1501, 31
        %s1503 = scalar_select %p1502, %s1501, 31
        %p1504 = scmp.lt.s32.totalorder %s30, 0
        %s1505 = scalar_select %p1504, %s30, 0
        %s1506 = sadd.s32 %s1505, %s1503
        %s1507 = smul.addr %s1506, 8
        %s1508 = scalar_lea.vmem %s9, %s1507
      $region84: #{multi_headed_attention.3} parent=71 // pred_fallthru
        _
    $region72: #{multi_headed_attention.3} parent=5 // pred_fallthru
      _
  $region6: #{multi_headed_attention.3} parent=0 // loop_footer
    %s20 = sadd.s32 1, %s16
  $region7: #{multi_headed_attention.3} parent=0 // loop_footer_branch
    %15 = sbr.rel target = $region3
  $region8: #{multi_headed_attention.3} parent=0 // loop_exit
    _

// kernel: multi_headed_attention.4
$region0: #{multi_headed_attention.4}
  #allocation0 [shape = 'u32[]', space=smem, size = 0x4, offset = 0x4, fixed_abs, tag = 'smem constant byte address 0x4 - core index']
  #allocation1 [shape = 'u32[144,128]{1,0:T(1,128)}', space=vmem, size = 0x12000, scoped, tag = 'internal scratch']
  %s0 = inlined_call_operand.vmem [shape: f32[4,64,32], index: 0, kind: input, shape index: {}]
  %s1 = inlined_call_operand.vmem [shape: f32[4,64,32], index: 1, kind: input, shape index: {}]
  %s2 = inlined_call_operand.vmem [shape: f32[4,64,32], index: 2, kind: input, shape index: {}]
  %s3 = inlined_call_operand.vmem [shape: f32[4,64,32], index: 3, kind: output, shape index: {}]
  %s4 = sld [smem:[#allocation0]]
  $region45: #{multi_headed_attention.4} parent=0
    _
  %s6 = ssub.s32 1, %s4
  %s7 = scalar_select 0, %s6, %s4
  loop: start=0, step=1, limit=4
  $region2: #{multi_headed_attention.4} parent=0 // loop_pre_header
    _
  $region3: #{multi_headed_attention.4} parent=0 // loop_header
    %s9 = sphi 0, %s13
    %p10 = scmp.ge.s32.totalorder %s9, 4
    %s19 = sphi 0, %s21
    %s22 = sphi 0, %s19
    %s23 = sphi 0, %s22
    %s39 = sphi 0, %s23
    %s45 = sphi 0, %s47
    %s48 = sphi 0, %s45
    %s49 = sphi 0, %s48
    %s65 = sphi 0, %s49
    %s71 = sphi 0, %s73
    %s74 = sphi 0, %s71
    %s75 = sphi 0, %s74
    %s91 = sphi 0, %s75
    %s97 = sphi 0, %s99
    %s100 = sphi 0, %s97
    %s101 = sphi 0, %s100
    %s117 = sphi 0, %s101
  $region4: #{multi_headed_attention.4} parent=0 // loop_header_branch
    %12 = sbr.rel (%p10) target = $region8
  $region5: #{multi_headed_attention.4} parent=0 // loop_body
    %s14 = ssub.s32 %s9, 1
    %s15 = ssub.s32 %s9, 2
    %s16 = sadd.s32 %s9, 1
    %s17 = ssub.s32 %s9, %s16
    %p18 = scmp.eq.s32.totalorder %s17, 0
    %s20 = sadd.s32 %s19, 1
    %s21 = scalar_select %p18, %s19, %s20
    %p24 = pneg %p18
    %p25 = scmp.eq.s32.totalorder %s9, 1
    %p26 = por %p24, %p25
    %p27 = scmp.ne.s32.totalorder %s19, %s22
    %p28 = scmp.eq.s32.totalorder %s9, 0
    %p29 = por %p27, %p28
    %p30 = scmp.ne.s32.totalorder %s19, %s22
    %p31 = scmp.eq.s32.totalorder %s14, 1
    %p32 = por %p30, %p31
    %p33 = scmp.ne.s32.totalorder %s22, %s23
    %p34 = scmp.eq.s32.totalorder %s14, 0
    %p35 = por %p33, %p34
    %p36 = scmp.ne.s32.totalorder %s22, %s23
    %p37 = scmp.eq.s32.totalorder %s15, 1
    %p38 = por %p36, %p37
    %p40 = scmp.ne.s32.totalorder %s23, %s39
    %p41 = scmp.eq.s32.totalorder %s15, 0
    %p42 = por %p40, %p41
    %s43 = ssub.s32 %s9, %s16
    %p44 = scmp.eq.s32.totalorder %s43, 0
    %s46 = sadd.s32 %s45, 1
    %s47 = scalar_select %p44, %s45, %s46
    %p50 = pneg %p44
    %p51 = scmp.eq.s32.totalorder %s9, 1
    %p52 = por %p50, %p51
    %p53 = scmp.ne.s32.totalorder %s45, %s48
    %p54 = scmp.eq.s32.totalorder %s9, 0
    %p55 = por %p53, %p54
    %p56 = scmp.ne.s32.totalorder %s45, %s48
    %p57 = scmp.eq.s32.totalorder %s14, 1
    %p58 = por %p56, %p57
    %p59 = scmp.ne.s32.totalorder %s48, %s49
    %p60 = scmp.eq.s32.totalorder %s14, 0
    %p61 = por %p59, %p60
    %p62 = scmp.ne.s32.totalorder %s48, %s49
    %p63 = scmp.eq.s32.totalorder %s15, 1
    %p64 = por %p62, %p63
    %p66 = scmp.ne.s32.totalorder %s49, %s65
    %p67 = scmp.eq.s32.totalorder %s15, 0
    %p68 = por %p66, %p67
    %s69 = ssub.s32 %s9, %s16
    %p70 = scmp.eq.s32.totalorder %s69, 0
    %s72 = sadd.s32 %s71, 1
    %s73 = scalar_select %p70, %s71, %s72
    %p76 = pneg %p70
    %p77 = scmp.eq.s32.totalorder %s9, 1
    %p78 = por %p76, %p77
    %p79 = scmp.ne.s32.totalorder %s71, %s74
    %p80 = scmp.eq.s32.totalorder %s9, 0
    %p81 = por %p79, %p80
    %p82 = scmp.ne.s32.totalorder %s71, %s74
    %p83 = scmp.eq.s32.totalorder %s14, 1
    %p84 = por %p82, %p83
    %p85 = scmp.ne.s32.totalorder %s74, %s75
    %p86 = scmp.eq.s32.totalorder %s14, 0
    %p87 = por %p85, %p86
    %p88 = scmp.ne.s32.totalorder %s74, %s75
    %p89 = scmp.eq.s32.totalorder %s15, 1
    %p90 = por %p88, %p89
    %p92 = scmp.ne.s32.totalorder %s75, %s91
    %p93 = scmp.eq.s32.totalorder %s15, 0
    %p94 = por %p92, %p93
    %s95 = ssub.s32 %s9, %s16
    %p96 = scmp.eq.s32.totalorder %s95, 0
    %s98 = sadd.s32 %s97, 1
    %s99 = scalar_select %p96, %s97, %s98
    %p102 = pneg %p96
    %p103 = scmp.eq.s32.totalorder %s9, 1
    %p104 = por %p102, %p103
    %p105 = scmp.ne.s32.totalorder %s97, %s100
    %p106 = scmp.eq.s32.totalorder %s9, 0
    %p107 = por %p105, %p106
    %p108 = scmp.ne.s32.totalorder %s97, %s100
    %p109 = scmp.eq.s32.totalorder %s14, 1
    %p110 = por %p108, %p109
    %p111 = scmp.ne.s32.totalorder %s100, %s101
    %p112 = scmp.eq.s32.totalorder %s14, 0
    %p113 = por %p111, %p112
    %p114 = scmp.ne.s32.totalorder %s100, %s101
    %p115 = scmp.eq.s32.totalorder %s15, 1
    %p116 = por %p114, %p115
    %p118 = scmp.ne.s32.totalorder %s101, %s117
    %p119 = scmp.eq.s32.totalorder %s15, 0
    %p120 = por %p118, %p119
    %p121 = scmp.le.s32.totalorder 1, %s9
    %p122 = scmp.lt.s32.totalorder %s9, 3
    %p123 = pnand %p121, %p122
    %p124 = pneg %p123
    // Predicated region
    $region9: #{multi_headed_attention.4} parent=5 // pred_check
      _
    $region10: #{multi_headed_attention.4} parent=5 // pred_check_branch
      %126 = sbr.rel (%p123) target = $region12
    $region11: #{multi_headed_attention.4} parent=5 // pred_region
      %s127 = ssub.s32 %s9, 1
    $region12: #{multi_headed_attention.4} parent=5 // pred_fallthru
      _
    %p128 = scmp.lt.s32.totalorder %s9, 2
    // Predicated region
    $region13: #{multi_headed_attention.4} parent=5 // pred_check
      %p129 = pneg %p128
    $region14: #{multi_headed_attention.4} parent=5 // pred_check_branch
      %131 = sbr.rel (%p129) target = $region16
    $region15: #{multi_headed_attention.4} parent=5 // pred_region
      // Predicated region
      $region17: #{multi_headed_attention.4} parent=15 // pred_check
        %p132 = pneg %p29
      $region18: #{multi_headed_attention.4} parent=15 // pred_check_branch
        %134 = sbr.rel (%p132) target = $region20
      $region19: #{multi_headed_attention.4} parent=15 // pred_region
        %s135 = smul.u32 2, %s9
        %p136 = scmp.lt.s32.totalorder %s135, 3
        %s137 = scalar_select %p136, %s135, 3
        %s138 = smul.addr %s137, 8
        %s139 = smul.addr %s138, 8
        %s140 = scalar_lea.vmem %s0, %s139
        %s141 = smul.u32 2, %s9
      $region20: #{multi_headed_attention.4} parent=15 // pred_fallthru
        _
      // Predicated region
      $region21: #{multi_headed_attention.4} parent=15 // pred_check
        %p142 = pneg %p55
      $region22: #{multi_headed_attention.4} parent=15 // pred_check_branch
        %144 = sbr.rel (%p142) target = $region24
      $region23: #{multi_headed_attention.4} parent=15 // pred_region
        %s145 = smul.u32 2, %s9
        %p146 = scmp.lt.s32.totalorder %s145, 3
        %s147 = scalar_select %p146, %s145, 3
        %s148 = smul.addr %s147, 8
        %s149 = smul.addr %s148, 8
        %s150 = scalar_lea.vmem %s1, %s149
        %s151 = smul.u32 2, %s9
      $region24: #{multi_headed_attention.4} parent=15 // pred_fallthru
        _
      // Predicated region
      $region25: #{multi_headed_attention.4} parent=15 // pred_check
        %p152 = pneg %p81
      $region26: #{multi_headed_attention.4} parent=15 // pred_check_branch
        %154 = sbr.rel (%p152) target = $region28
      $region27: #{multi_headed_attention.4} parent=15 // pred_region
        %s155 = smul.u32 2, %s9
        %p156 = scmp.lt.s32.totalorder %s155, 3
        %s157 = scalar_select %p156, %s155, 3
        %s158 = smul.addr %s157, 8
        %s159 = smul.addr %s158, 8
        %s160 = scalar_lea.vmem %s2, %s159
        %s161 = smul.u32 2, %s9
      $region28: #{multi_headed_attention.4} parent=15 // pred_fallthru
        _
    $region16: #{multi_headed_attention.4} parent=5 // pred_fallthru
      _
    %p162 = scmp.le.s32.totalorder 1, %s9
    %p163 = scmp.lt.s32.totalorder %s9, 3
    %p164 = pnand %p162, %p163
    %p165 = pneg %p164
    // Predicated region
    $region29: #{multi_headed_attention.4} parent=5 // pred_check
      _
    $region30: #{multi_headed_attention.4} parent=5 // pred_check_branch
      %167 = sbr.rel (%p164) target = $region32
    $region31: #{multi_headed_attention.4} parent=5 // pred_region
      %s168 = ssub.s32 %s9, 1
      %s169 = smul.u32 2, %s14
      %p170 = scmp.lt.s32.totalorder %s169, 3
      %s171 = scalar_select %p170, %s169, 3
      %s172 = smul.addr %s171, 8
      %s173 = smul.addr %s172, 8
      %s174 = scalar_lea.vmem %s0, %s173
      %p175 = pneg %p35
      %p176 = pneg %p32
      %s177 = smul.u32 2, %s14
      %p178 = scmp.lt.s32.totalorder %s177, 3
      %s179 = scalar_select %p178, %s177, 3
      %s180 = smul.addr %s179, 8
      %s181 = smul.addr %s180, 8
      %s182 = scalar_lea.vmem %s1, %s181
      %p183 = pneg %p61
      %p184 = pneg %p58
      %s185 = smul.u32 2, %s14
      %p186 = scmp.lt.s32.totalorder %s185, 3
      %s187 = scalar_select %p186, %s185, 3
      %s188 = smul.addr %s187, 8
      %s189 = smul.addr %s188, 8
      %s190 = scalar_lea.vmem %s2, %s189
      %p191 = pneg %p87
      %p192 = pneg %p84
      %p193 = pneg %p113
      %p194 = pneg %p110
      %s195 = smul.u32 2, %s14
      %p196 = scmp.lt.s32.totalorder %s195, 3
      %s197 = scalar_select %p196, %s195, 3
      %s198 = smul.addr %s197, 8
      %s199 = smul.addr %s198, 8
      %s200 = scalar_lea.vmem %s3, %s199
      %s201 = smul.u32 2, %s14
      %p202 = scmp.lt.s32.totalorder %s201, 3
      %s203 = scalar_select %p202, %s201, 3
      %s204 = smul.addr %s203, 8
      %s205 = smul.addr %s204, 8
      %s206 = scalar_lea.vmem %s0, %s205
      %s207 = smul.u32 2, %s14
      %s208 = smul.u32 2, %s14
      %p209 = scmp.lt.s32.totalorder %s208, 3
      %s210 = scalar_select %p209, %s208, 3
      %s211 = smul.addr %s210, 8
      %s212 = smul.addr %s211, 8
      %s213 = scalar_lea.vmem %s1, %s212
      %s214 = smul.u32 2, %s14
      %s215 = smul.u32 2, %s14
      %p216 = scmp.lt.s32.totalorder %s215, 3
      %s217 = scalar_select %p216, %s215, 3
      %s218 = smul.addr %s217, 8
      %s219 = smul.addr %s218, 8
      %s220 = scalar_lea.vmem %s2, %s219
      %s221 = smul.u32 2, %s14
      %s222 = smul.u32 2, %s14
      %p223 = scmp.lt.s32.totalorder %s222, 3
      %s224 = scalar_select %p223, %s222, 3
      %s225 = smul.addr %s224, 8
      %s226 = smul.addr %s225, 8
      %s227 = scalar_lea.vmem %s3, %s226
      %s228 = smul.u32 2, %s14
      %v229 = vld [vmem:[%s206] sm:$0xff]
      %v230 = vld [vmem:[%s206 + $0x8] sm:$0xff]
      %v231 = vld [vmem:[%s206 + $0x10] sm:$0xff]
      %v232 = vld [vmem:[%s206 + $0x18] sm:$0xff]
      %v233 = vld [vmem:[%s206 + $0x20] sm:$0xff]
      %v234 = vld [vmem:[%s206 + $0x28] sm:$0xff]
      %v235 = vld [vmem:[%s206 + $0x30] sm:$0xff]
      %v236 = vld [vmem:[%s206 + $0x38] sm:$0xff]
      %v237 = vld [vmem:[%s206 + $0x40] sm:$0xff]
      %v238 = vld [vmem:[%s206 + $0x48] sm:$0xff]
      %v239 = vld [vmem:[%s206 + $0x50] sm:$0xff]
      %v240 = vld [vmem:[%s206 + $0x58] sm:$0xff]
      %v241 = vld [vmem:[%s206 + $0x60] sm:$0xff]
      %v242 = vld [vmem:[%s206 + $0x68] sm:$0xff]
      %v243 = vld [vmem:[%s206 + $0x70] sm:$0xff]
      %v244 = vld [vmem:[%s206 + $0x78] sm:$0xff]
      %v245 = vld [vmem:[%s213] sm:$0xff]
      %v246 = vld [vmem:[%s213 + $0x8] sm:$0xff]
      %v247 = vld [vmem:[%s213 + $0x10] sm:$0xff]
      %v248 = vld [vmem:[%s213 + $0x18] sm:$0xff]
      %v249 = vld [vmem:[%s213 + $0x20] sm:$0xff]
      %v250 = vld [vmem:[%s213 + $0x28] sm:$0xff]
      %v251 = vld [vmem:[%s213 + $0x30] sm:$0xff]
      %v252 = vld [vmem:[%s213 + $0x38] sm:$0xff]
      %v253 = vld [vmem:[%s213 + $0x40] sm:$0xff]
      %v254 = vld [vmem:[%s213 + $0x48] sm:$0xff]
      %v255 = vld [vmem:[%s213 + $0x50] sm:$0xff]
      %v256 = vld [vmem:[%s213 + $0x58] sm:$0xff]
      %v257 = vld [vmem:[%s213 + $0x60] sm:$0xff]
      %v258 = vld [vmem:[%s213 + $0x68] sm:$0xff]
      %v259 = vld [vmem:[%s213 + $0x70] sm:$0xff]
      %v260 = vld [vmem:[%s213 + $0x78] sm:$0xff]
      %v261 = vld [vmem:[%s220] sm:$0xff]
      %v262 = vld [vmem:[%s220 + $0x8] sm:$0xff]
      %v263 = vld [vmem:[%s220 + $0x10] sm:$0xff]
      %v264 = vld [vmem:[%s220 + $0x18] sm:$0xff]
      %v265 = vld [vmem:[%s220 + $0x20] sm:$0xff]
      %v266 = vld [vmem:[%s220 + $0x28] sm:$0xff]
      %v267 = vld [vmem:[%s220 + $0x30] sm:$0xff]
      %v268 = vld [vmem:[%s220 + $0x38] sm:$0xff]
      %v269 = vld [vmem:[%s220 + $0x40] sm:$0xff]
      %v270 = vld [vmem:[%s220 + $0x48] sm:$0xff]
      %v271 = vld [vmem:[%s220 + $0x50] sm:$0xff]
      %v272 = vld [vmem:[%s220 + $0x58] sm:$0xff]
      %v273 = vld [vmem:[%s220 + $0x60] sm:$0xff]
      %v274 = vld [vmem:[%s220 + $0x68] sm:$0xff]
      %v275 = vld [vmem:[%s220 + $0x70] sm:$0xff]
      %v276 = vld [vmem:[%s220 + $0x78] sm:$0xff]
      %vm277 = vcmask 64512
      %v279 = vsel %vm277, %v229, 0
      %v282 = vsel %vm277, %v230, 0
      %v285 = vsel %vm277, %v231, 0
      %v288 = vsel %vm277, %v232, 0
      %v291 = vsel %vm277, %v233, 0
      %v294 = vsel %vm277, %v234, 0
      %v297 = vsel %vm277, %v235, 0
      %v300 = vsel %vm277, %v236, 0
      %v303 = vsel %vm277, %v245, 0
      %v306 = vsel %vm277, %v246, 0
      %v309 = vsel %vm277, %v247, 0
      %v312 = vsel %vm277, %v248, 0
      %v315 = vsel %vm277, %v249, 0
      %v318 = vsel %vm277, %v250, 0
      %v321 = vsel %vm277, %v251, 0
      %v324 = vsel %vm277, %v252, 0
      %326 = vmatprep.subr.mxu0 0.0
      %327 = vmatpush1.xpose.msra.mxu0 %v303
      %328 = vmatprep.subr.mxu0 0.0
      %329 = vmatpush1.xpose.msra.mxu0 %v306
      %330 = vmatprep.subr.mxu0 0.0
      %331 = vmatpush1.xpose.msra.mxu0 %v309
      %332 = vmatprep.subr.mxu0 0.0
      %333 = vmatpush1.xpose.msra.mxu0 %v312
      %334 = vmatprep.subr.mxu0 0.0
      %335 = vmatpush1.xpose.msra.mxu0 %v315
      %336 = vmatprep.subr.mxu0 0.0
      %337 = vmatpush1.xpose.msra.mxu0 %v318
      %338 = vmatprep.subr.mxu0 0.0
      %339 = vmatpush1.xpose.msra.mxu0 %v321
      %340 = vmatprep.subr.mxu0 0.0
      %341 = vmatpush1.xpose.msra.mxu0 %v324
      %342 = vmatprep.subr.mxu0 0.0
      %343 = vmatpush1.xpose.msra.mxu0 0.0
      %344 = vmatprep.subr.mxu0 0.0
      %345 = vmatpush1.xpose.msra.mxu0 0.0
      %346 = vmatprep.subr.mxu0 0.0
      %347 = vmatpush1.xpose.msra.mxu0 0.0
      %348 = vmatprep.subr.mxu0 0.0
      %349 = vmatpush1.xpose.msra.mxu0 0.0
      %350 = vmatprep.subr.mxu0 0.0
      %351 = vmatpush1.xpose.msra.mxu0 0.0
      %352 = vmatprep.subr.mxu0 0.0
      %353 = vmatpush1.xpose.msra.mxu0 0.0
      %354 = vmatprep.subr.mxu0 0.0
      %355 = vmatpush1.xpose.msra.mxu0 0.0
      %356 = vmatprep.subr.mxu0 0.0
      %357 = vmatpush1.xpose.msra.mxu0 0.0
      %358 = vmatprep.subr.mxu0 0.0
      %359 = vmatpush1.xpose.msra.mxu0 0.0
      %360 = vmatprep.subr.mxu0 0.0
      %361 = vmatpush1.xpose.msra.mxu0 0.0
      %362 = vmatprep.subr.mxu0 0.0
      %363 = vmatpush1.xpose.msra.mxu0 0.0
      %364 = vmatprep.subr.mxu0 0.0
      %365 = vmatpush1.xpose.msra.mxu0 0.0
      %366 = vmatprep.subr.mxu0 0.0
      %367 = vmatpush1.xpose.msra.mxu0 0.0
      %368 = vmatprep.subr.mxu0 0.0
      %369 = vmatpush1.xpose.msra.mxu0 0.0
      %370 = vmatprep.subr.mxu0 0.0
      %371 = vmatpush1.xpose.msra.mxu0 0.0
      %372 = vmatprep.subr.mxu0 0.0
      %373 = vmatpush1.xpose.msra.mxu0 0.0
      %374 = vmatprep.subr.mxu0 0.0
      %375 = vmatpush1.xpose.msra.mxu0 0.0
      %376 = vmatprep.subr.mxu0 0.0
      %377 = vmatpush1.xpose.msra.mxu0 0.0
      %378 = vmatprep.subr.mxu0 0.0
      %379 = vmatpush1.xpose.msra.mxu0 0.0
      %380 = vmatprep.subr.mxu0 0.0
      %381 = vmatpush1.xpose.msra.mxu0 0.0
      %382 = vmatprep.subr.mxu0 0.0
      %383 = vmatpush1.xpose.msra.mxu0 0.0
      %384 = vmatprep.subr.mxu0 0.0
      %385 = vmatpush1.xpose.msra.mxu0 0.0
      %386 = vmatprep.subr.mxu0 0.0
      %387 = vmatpush1.xpose.msra.mxu0 0.0
      %388 = vmatprep.subr.mxu0 0.0
      %389 = vmatpush1.xpose.msra.mxu0 0.0
      %390 = vmatprep.mubr.f32.mxu0 0.0
      %391 = vmatmul.mubr.f32.gmra.mrb[0].mxu0 %v279
      %v392 = vpop.f32.mrb[0].mxu0
      %v393 = vadd.f32 0.0, %v392
      %v394 = vpop.f32.mrb[0].mxu0
      %395 = vmatprep.mubr.f32.mxu0 0.0
      %396 = vmatmul.mubr.f32.gmra.mrb[0].mxu0 %v282
      %v397 = vpop.f32.mrb[0].mxu0
      %v398 = vadd.f32 0.0, %v397
      %v399 = vpop.f32.mrb[0].mxu0
      %400 = vmatprep.mubr.f32.mxu0 0.0
      %401 = vmatmul.mubr.f32.gmra.mrb[0].mxu0 %v285
      %v402 = vpop.f32.mrb[0].mxu0
      %v403 = vadd.f32 0.0, %v402
      %v404 = vpop.f32.mrb[0].mxu0
      %405 = vmatprep.mubr.f32.mxu0 0.0
      %406 = vmatmul.mubr.f32.gmra.mrb[0].mxu0 %v288
      %v407 = vpop.f32.mrb[0].mxu0
      %v408 = vadd.f32 0.0, %v407
      %v409 = vpop.f32.mrb[0].mxu0
      %410 = vmatprep.mubr.f32.mxu0 0.0
      %411 = vmatmul.mubr.f32.gmra.mrb[0].mxu0 %v291
      %v412 = vpop.f32.mrb[0].mxu0
      %v413 = vadd.f32 0.0, %v412
      %v414 = vpop.f32.mrb[0].mxu0
      %415 = vmatprep.mubr.f32.mxu0 0.0
      %416 = vmatmul.mubr.f32.gmra.mrb[0].mxu0 %v294
      %v417 = vpop.f32.mrb[0].mxu0
      %v418 = vadd.f32 0.0, %v417
      %v419 = vpop.f32.mrb[0].mxu0
      %420 = vmatprep.mubr.f32.mxu0 0.0
      %421 = vmatmul.mubr.f32.gmra.mrb[0].mxu0 %v297
      %v422 = vpop.f32.mrb[0].mxu0
      %v423 = vadd.f32 0.0, %v422
      %v424 = vpop.f32.mrb[0].mxu0
      %425 = vmatprep.mubr.f32.mxu0 0.0
      %426 = vmatmul.mubr.f32.gmra.mrb[0].mxu0 %v300
      %v427 = vpop.f32.mrb[0].mxu0
      %v428 = vadd.f32 0.0, %v427
      %v429 = vpop.f32.mrb[0].mxu0
      %430 = vdwg.mxu0
      %v432 = vsel %vm277, %v237, 0
      %v435 = vsel %vm277, %v238, 0
      %v438 = vsel %vm277, %v239, 0
      %v441 = vsel %vm277, %v240, 0
      %v444 = vsel %vm277, %v241, 0
      %v447 = vsel %vm277, %v242, 0
      %v450 = vsel %vm277, %v243, 0
      %v453 = vsel %vm277, %v244, 0
      %v456 = vsel %vm277, %v253, 0
      %v459 = vsel %vm277, %v254, 0
      %v462 = vsel %vm277, %v255, 0
      %v465 = vsel %vm277, %v256, 0
      %v468 = vsel %vm277, %v257, 0
      %v471 = vsel %vm277, %v258, 0
      %v474 = vsel %vm277, %v259, 0
      %v477 = vsel %vm277, %v260, 0
      %479 = vmatprep.subr.mxu0 0.0
      %480 = vmatpush1.xpose.msra.mxu0 %v456
      %481 = vmatprep.subr.mxu0 0.0
      %482 = vmatpush1.xpose.msra.mxu0 %v459
      %483 = vmatprep.subr.mxu0 0.0
      %484 = vmatpush1.xpose.msra.mxu0 %v462
      %485 = vmatprep.subr.mxu0 0.0
      %486 = vmatpush1.xpose.msra.mxu0 %v465
      %487 = vmatprep.subr.mxu0 0.0
      %488 = vmatpush1.xpose.msra.mxu0 %v468
      %489 = vmatprep.subr.mxu0 0.0
      %490 = vmatpush1.xpose.msra.mxu0 %v471
      %491 = vmatprep.subr.mxu0 0.0
      %492 = vmatpush1.xpose.msra.mxu0 %v474
      %493 = vmatprep.subr.mxu0 0.0
      %494 = vmatpush1.xpose.msra.mxu0 %v477
      %495 = vmatprep.subr.mxu0 0.0
      %496 = vmatpush1.xpose.msra.mxu0 0.0
      %497 = vmatprep.subr.mxu0 0.0
      %498 = vmatpush1.xpose.msra.mxu0 0.0
      %499 = vmatprep.subr.mxu0 0.0
      %500 = vmatpush1.xpose.msra.mxu0 0.0
      %501 = vmatprep.subr.mxu0 0.0
      %502 = vmatpush1.xpose.msra.mxu0 0.0
      %503 = vmatprep.subr.mxu0 0.0
      %504 = vmatpush1.xpose.msra.mxu0 0.0
      %505 = vmatprep.subr.mxu0 0.0
      %506 = vmatpush1.xpose.msra.mxu0 0.0
      %507 = vmatprep.subr.mxu0 0.0
      %508 = vmatpush1.xpose.msra.mxu0 0.0
      %509 = vmatprep.subr.mxu0 0.0
      %510 = vmatpush1.xpose.msra.mxu0 0.0
      %511 = vmatprep.subr.mxu0 0.0
      %512 = vmatpush1.xpose.msra.mxu0 0.0
      %513 = vmatprep.subr.mxu0 0.0
      %514 = vmatpush1.xpose.msra.mxu0 0.0
      %515 = vmatprep.subr.mxu0 0.0
      %516 = vmatpush1.xpose.msra.mxu0 0.0
      %517 = vmatprep.subr.mxu0 0.0
      %518 = vmatpush1.xpose.msra.mxu0 0.0
      %519 = vmatprep.subr.mxu0 0.0
      %520 = vmatpush1.xpose.msra.mxu0 0.0
      %521 = vmatprep.subr.mxu0 0.0
      %522 = vmatpush1.xpose.msra.mxu0 0.0
      %523 = vmatprep.subr.mxu0 0.0
      %524 = vmatpush1.xpose.msra.mxu0 0.0
      %525 = vmatprep.subr.mxu0 0.0
      %526 = vmatpush1.xpose.msra.mxu0 0.0
      %527 = vmatprep.subr.mxu0 0.0
      %528 = vmatpush1.xpose.msra.mxu0 0.0
      %529 = vmatprep.subr.mxu0 0.0
      %530 = vmatpush1.xpose.msra.mxu0 0.0
      %531 = vmatprep.subr.mxu0 0.0
      %532 = vmatpush1.xpose.msra.mxu0 0.0
      %533 = vmatprep.subr.mxu0 0.0
      %534 = vmatpush1.xpose.msra.mxu0 0.0
      %535 = vmatprep.subr.mxu0 0.0
      %536 = vmatpush1.xpose.msra.mxu0 0.0
      %537 = vmatprep.subr.mxu0 0.0
      %538 = vmatpush1.xpose.msra.mxu0 0.0
      %539 = vmatprep.subr.mxu0 0.0
      %540 = vmatpush1.xpose.msra.mxu0 0.0
      %541 = vmatprep.subr.mxu0 0.0
      %542 = vmatpush1.xpose.msra.mxu0 0.0
      %543 = vmatprep.mubr.f32.mxu0 0.0
      %544 = vmatmul.mubr.f32.gmra.mrb[0].mxu0 %v432
      %v545 = vpop.f32.mrb[0].mxu0
      %v546 = vadd.f32 0.0, %v545
      %v547 = vpop.f32.mrb[0].mxu0
      %548 = vmatprep.mubr.f32.mxu0 0.0
      %549 = vmatmul.mubr.f32.gmra.mrb[0].mxu0 %v435
      %v550 = vpop.f32.mrb[0].mxu0
      %v551 = vadd.f32 0.0, %v550
      %v552 = vpop.f32.mrb[0].mxu0
      %553 = vmatprep.mubr.f32.mxu0 0.0
      %554 = vmatmul.mubr.f32.gmra.mrb[0].mxu0 %v438
      %v555 = vpop.f32.mrb[0].mxu0
      %v556 = vadd.f32 0.0, %v555
      %v557 = vpop.f32.mrb[0].mxu0
      %558 = vmatprep.mubr.f32.mxu0 0.0
      %559 = vmatmul.mubr.f32.gmra.mrb[0].mxu0 %v441
      %v560 = vpop.f32.mrb[0].mxu0
      %v561 = vadd.f32 0.0, %v560
      %v562 = vpop.f32.mrb[0].mxu0
      %563 = vmatprep.mubr.f32.mxu0 0.0
      %564 = vmatmul.mubr.f32.gmra.mrb[0].mxu0 %v444
      %v565 = vpop.f32.mrb[0].mxu0
      %v566 = vadd.f32 0.0, %v565
      %v567 = vpop.f32.mrb[0].mxu0
      %568 = vmatprep.mubr.f32.mxu0 0.0
      %569 = vmatmul.mubr.f32.gmra.mrb[0].mxu0 %v447
      %v570 = vpop.f32.mrb[0].mxu0
      %v571 = vadd.f32 0.0, %v570
      %v572 = vpop.f32.mrb[0].mxu0
      %573 = vmatprep.mubr.f32.mxu0 0.0
      %574 = vmatmul.mubr.f32.gmra.mrb[0].mxu0 %v450
      %v575 = vpop.f32.mrb[0].mxu0
      %v576 = vadd.f32 0.0, %v575
      %v577 = vpop.f32.mrb[0].mxu0
      %578 = vmatprep.mubr.f32.mxu0 0.0
      %579 = vmatmul.mubr.f32.gmra.mrb[0].mxu0 %v453
      %v580 = vpop.f32.mrb[0].mxu0
      %v581 = vadd.f32 0.0, %v580
      %v582 = vpop.f32.mrb[0].mxu0
      %583 = vdwg.mxu0
      %vm584 = vcmask 523264
      %v585 = vsel %vm584, %v393, -inf
      %586 = vmax.xlane.f32.xlu0 %v585
      %v587 = vpop.xlane.xlu0 %586
      %v588 = vsel %vm584, %v398, -inf
      %589 = vmax.xlane.f32.xlu0 %v588
      %v590 = vpop.xlane.xlu0 %589
      %v591 = vsel %vm584, %v403, -inf
      %592 = vmax.xlane.f32.xlu0 %v591
      %v593 = vpop.xlane.xlu0 %592
      %v594 = vsel %vm584, %v408, -inf
      %595 = vmax.xlane.f32.xlu0 %v594
      %v596 = vpop.xlane.xlu0 %595
      %v597 = vsel %vm584, %v413, -inf
      %598 = vmax.xlane.f32.xlu0 %v597
      %v599 = vpop.xlane.xlu0 %598
      %v600 = vsel %vm584, %v418, -inf
      %601 = vmax.xlane.f32.xlu0 %v600
      %v602 = vpop.xlane.xlu0 %601
      %v603 = vsel %vm584, %v423, -inf
      %604 = vmax.xlane.f32.xlu0 %v603
      %v605 = vpop.xlane.xlu0 %604
      %v606 = vsel %vm584, %v428, -inf
      %607 = vmax.xlane.f32.xlu0 %v606
      %v608 = vpop.xlane.xlu0 %607
      %v609 = vsel %vm584, %v546, -inf
      %610 = vmax.xlane.f32.xlu0 %v609
      %v611 = vpop.xlane.xlu0 %610
      %v612 = vsel %vm584, %v551, -inf
      %613 = vmax.xlane.f32.xlu0 %v612
      %v614 = vpop.xlane.xlu0 %613
      %v615 = vsel %vm584, %v556, -inf
      %616 = vmax.xlane.f32.xlu0 %v615
      %v617 = vpop.xlane.xlu0 %616
      %v618 = vsel %vm584, %v561, -inf
      %619 = vmax.xlane.f32.xlu0 %v618
      %v620 = vpop.xlane.xlu0 %619
      %v621 = vsel %vm584, %v566, -inf
      %622 = vmax.xlane.f32.xlu0 %v621
      %v623 = vpop.xlane.xlu0 %622
      %v624 = vsel %vm584, %v571, -inf
      %625 = vmax.xlane.f32.xlu0 %v624
      %v626 = vpop.xlane.xlu0 %625
      %v627 = vsel %vm584, %v576, -inf
      %628 = vmax.xlane.f32.xlu0 %v627
      %v629 = vpop.xlane.xlu0 %628
      %v630 = vsel %vm584, %v581, -inf
      %631 = vmax.xlane.f32.xlu0 %v630
      %v632 = vpop.xlane.xlu0 %631
      %v633 = vsub.f32 %v393, %v587
      %v634 = vsub.f32 %v398, %v590
      %v635 = vsub.f32 %v403, %v593
      %v636 = vsub.f32 %v408, %v596
      %v637 = vsub.f32 %v413, %v599
      %v638 = vsub.f32 %v418, %v602
      %v639 = vsub.f32 %v423, %v605
      %v640 = vsub.f32 %v428, %v608
      %v641 = vsub.f32 %v546, %v611
      %v642 = vsub.f32 %v551, %v614
      %v643 = vsub.f32 %v556, %v617
      %v644 = vsub.f32 %v561, %v620
      %v645 = vsub.f32 %v566, %v623
      %v646 = vsub.f32 %v571, %v626
      %v647 = vsub.f32 %v576, %v629
      %v648 = vsub.f32 %v581, %v632
      %v649 = vmul.f32 %v633, 1.442695
      %v650 = vpow.pop %v649
      %v651 = vmul.f32 %v634, 1.442695
      %v652 = vpow.pop %v651
      %v653 = vmul.f32 %v635, 1.442695
      %v654 = vpow.pop %v653
      %v655 = vmul.f32 %v636, 1.442695
      %v656 = vpow.pop %v655
      %v657 = vmul.f32 %v637, 1.442695
      %v658 = vpow.pop %v657
      %v659 = vmul.f32 %v638, 1.442695
      %v660 = vpow.pop %v659
      %v661 = vmul.f32 %v639, 1.442695
      %v662 = vpow.pop %v661
      %v663 = vmul.f32 %v640, 1.442695
      %v664 = vpow.pop %v663
      %v665 = vmul.f32 %v641, 1.442695
      %v666 = vpow.pop %v665
      %v667 = vmul.f32 %v642, 1.442695
      %v668 = vpow.pop %v667
      %v669 = vmul.f32 %v643, 1.442695
      %v670 = vpow.pop %v669
      %v671 = vmul.f32 %v644, 1.442695
      %v672 = vpow.pop %v671
      %v673 = vmul.f32 %v645, 1.442695
      %v674 = vpow.pop %v673
      %v675 = vmul.f32 %v646, 1.442695
      %v676 = vpow.pop %v675
      %v677 = vmul.f32 %v647, 1.442695
      %v678 = vpow.pop %v677
      %v679 = vmul.f32 %v648, 1.442695
      %v680 = vpow.pop %v679
      %v681 = vsel %vm584, %v650, 0.0
      %682 = vadd.xlane.f32.xlu0 %v681
      %v683 = vpop.xlane.xlu0 %682
      %v684 = vsel %vm584, %v652, 0.0
      %685 = vadd.xlane.f32.xlu0 %v684
      %v686 = vpop.xlane.xlu0 %685
      %v687 = vsel %vm584, %v654, 0.0
      %688 = vadd.xlane.f32.xlu0 %v687
      %v689 = vpop.xlane.xlu0 %688
      %v690 = vsel %vm584, %v656, 0.0
      %691 = vadd.xlane.f32.xlu0 %v690
      %v692 = vpop.xlane.xlu0 %691
      %v693 = vsel %vm584, %v658, 0.0
      %694 = vadd.xlane.f32.xlu0 %v693
      %v695 = vpop.xlane.xlu0 %694
      %v696 = vsel %vm584, %v660, 0.0
      %697 = vadd.xlane.f32.xlu0 %v696
      %v698 = vpop.xlane.xlu0 %697
      %v699 = vsel %vm584, %v662, 0.0
      %700 = vadd.xlane.f32.xlu0 %v699
      %v701 = vpop.xlane.xlu0 %700
      %v702 = vsel %vm584, %v664, 0.0
      %703 = vadd.xlane.f32.xlu0 %v702
      %v704 = vpop.xlane.xlu0 %703
      %v705 = vsel %vm584, %v666, 0.0
      %706 = vadd.xlane.f32.xlu0 %v705
      %v707 = vpop.xlane.xlu0 %706
      %v708 = vsel %vm584, %v668, 0.0
      %709 = vadd.xlane.f32.xlu0 %v708
      %v710 = vpop.xlane.xlu0 %709
      %v711 = vsel %vm584, %v670, 0.0
      %712 = vadd.xlane.f32.xlu0 %v711
      %v713 = vpop.xlane.xlu0 %712
      %v714 = vsel %vm584, %v672, 0.0
      %715 = vadd.xlane.f32.xlu0 %v714
      %v716 = vpop.xlane.xlu0 %715
      %v717 = vsel %vm584, %v674, 0.0
      %718 = vadd.xlane.f32.xlu0 %v717
      %v719 = vpop.xlane.xlu0 %718
      %v720 = vsel %vm584, %v676, 0.0
      %721 = vadd.xlane.f32.xlu0 %v720
      %v722 = vpop.xlane.xlu0 %721
      %v723 = vsel %vm584, %v678, 0.0
      %724 = vadd.xlane.f32.xlu0 %v723
      %v725 = vpop.xlane.xlu0 %724
      %v726 = vsel %vm584, %v680, 0.0
      %727 = vadd.xlane.f32.xlu0 %v726
      %v728 = vpop.xlane.xlu0 %727
      %v729 = vrcp.pop %v683
      %v730 = vrcp.pop %v686
      %v731 = vrcp.pop %v689
      %v732 = vrcp.pop %v692
      %v733 = vrcp.pop %v695
      %v734 = vrcp.pop %v698
      %v735 = vrcp.pop %v701
      %v736 = vrcp.pop %v704
      %v737 = vrcp.pop %v707
      %v738 = vrcp.pop %v710
      %v739 = vrcp.pop %v713
      %v740 = vrcp.pop %v716
      %v741 = vrcp.pop %v719
      %v742 = vrcp.pop %v722
      %v743 = vrcp.pop %v725
      %v744 = vrcp.pop %v728
      %v745 = vmul.f32 %v650, %v729
      %v746 = vmul.f32 %v652, %v730
      %v747 = vmul.f32 %v654, %v731
      %v748 = vmul.f32 %v656, %v732
      %v749 = vmul.f32 %v658, %v733
      %v750 = vmul.f32 %v660, %v734
      %v751 = vmul.f32 %v662, %v735
      %v752 = vmul.f32 %v664, %v736
      %v753 = vmul.f32 %v666, %v737
      %v754 = vmul.f32 %v668, %v738
      %v755 = vmul.f32 %v670, %v739
      %v756 = vmul.f32 %v672, %v740
      %v757 = vmul.f32 %v674, %v741
      %v758 = vmul.f32 %v676, %v742
      %v759 = vmul.f32 %v678, %v743
      %v760 = vmul.f32 %v680, %v744
      %v762 = vsel %vm584, %v745, 0
      %v765 = vsel %vm584, %v746, 0
      %v768 = vsel %vm584, %v747, 0
      %v771 = vsel %vm584, %v748, 0
      %v774 = vsel %vm584, %v749, 0
      %v777 = vsel %vm584, %v750, 0
      %v780 = vsel %vm584, %v751, 0
      %v783 = vsel %vm584, %v752, 0
      %785 = vmatprep.subr.mxu0 0.0
      %786 = vmatpush1.msra.mxu0 %v261
      %787 = vmatprep.subr.mxu0 0.0
      %788 = vmatpush1.msra.mxu0 %v262
      %789 = vmatprep.subr.mxu0 0.0
      %790 = vmatpush1.msra.mxu0 %v263
      %791 = vmatprep.subr.mxu0 0.0
      %792 = vmatpush1.msra.mxu0 %v264
      %793 = vmatprep.subr.mxu0 0.0
      %794 = vmatpush1.msra.mxu0 %v265
      %795 = vmatprep.subr.mxu0 0.0
      %796 = vmatpush1.msra.mxu0 %v266
      %797 = vmatprep.subr.mxu0 0.0
      %798 = vmatpush1.msra.mxu0 %v267
      %799 = vmatprep.subr.mxu0 0.0
      %800 = vmatpush1.msra.mxu0 %v268
      %801 = vmatprep.subr.mxu0 0.0
      %802 = vmatpush1.msra.mxu0 0.0
      %803 = vmatprep.subr.mxu0 0.0
      %804 = vmatpush1.msra.mxu0 0.0
      %805 = vmatprep.subr.mxu0 0.0
      %806 = vmatpush1.msra.mxu0 0.0
      %807 = vmatprep.subr.mxu0 0.0
      %808 = vmatpush1.msra.mxu0 0.0
      %809 = vmatprep.subr.mxu0 0.0
      %810 = vmatpush1.msra.mxu0 0.0
      %811 = vmatprep.subr.mxu0 0.0
      %812 = vmatpush1.msra.mxu0 0.0
      %813 = vmatprep.subr.mxu0 0.0
      %814 = vmatpush1.msra.mxu0 0.0
      %815 = vmatprep.subr.mxu0 0.0
      %816 = vmatpush1.msra.mxu0 0.0
      %817 = vmatprep.subr.mxu0 0.0
      %818 = vmatpush1.msra.mxu0 0.0
      %819 = vmatprep.subr.mxu0 0.0
      %820 = vmatpush1.msra.mxu0 0.0
      %821 = vmatprep.subr.mxu0 0.0
      %822 = vmatpush1.msra.mxu0 0.0
      %823 = vmatprep.subr.mxu0 0.0
      %824 = vmatpush1.msra.mxu0 0.0
      %825 = vmatprep.subr.mxu0 0.0
      %826 = vmatpush1.msra.mxu0 0.0
      %827 = vmatprep.subr.mxu0 0.0
      %828 = vmatpush1.msra.mxu0 0.0
      %829 = vmatprep.subr.mxu0 0.0
      %830 = vmatpush1.msra.mxu0 0.0
      %831 = vmatprep.subr.mxu0 0.0
      %832 = vmatpush1.msra.mxu0 0.0
      %833 = vmatprep.subr.mxu0 0.0
      %834 = vmatpush1.msra.mxu0 0.0
      %835 = vmatprep.subr.mxu0 0.0
      %836 = vmatpush1.msra.mxu0 0.0
      %837 = vmatprep.subr.mxu0 0.0
      %838 = vmatpush1.msra.mxu0 0.0
      %839 = vmatprep.subr.mxu0 0.0
      %840 = vmatpush1.msra.mxu0 0.0
      %841 = vmatprep.subr.mxu0 0.0
      %842 = vmatpush1.msra.mxu0 0.0
      %843 = vmatprep.subr.mxu0 0.0
      %844 = vmatpush1.msra.mxu0 0.0
      %845 = vmatprep.subr.mxu0 0.0
      %846 = vmatpush1.msra.mxu0 0.0
      %847 = vmatprep.subr.mxu0 0.0
      %848 = vmatpush1.msra.mxu0 0.0
      %849 = vmatprep.mubr.f32.mxu0 0.0
      %850 = vmatmul.mubr.f32.gmra.mrb[0].mxu0 %v762
      %v851 = vpop.f32.mrb[0].mxu0
      %v852 = vadd.f32 0.0, %v851
      %v853 = vpop.f32.mrb[0].mxu0
      %854 = vmatprep.mubr.f32.mxu0 0.0
      %855 = vmatmul.mubr.f32.gmra.mrb[0].mxu0 %v765
      %v856 = vpop.f32.mrb[0].mxu0
      %v857 = vadd.f32 0.0, %v856
      %v858 = vpop.f32.mrb[0].mxu0
      %859 = vmatprep.mubr.f32.mxu0 0.0
      %860 = vmatmul.mubr.f32.gmra.mrb[0].mxu0 %v768
      %v861 = vpop.f32.mrb[0].mxu0
      %v862 = vadd.f32 0.0, %v861
      %v863 = vpop.f32.mrb[0].mxu0
      %864 = vmatprep.mubr.f32.mxu0 0.0
      %865 = vmatmul.mubr.f32.gmra.mrb[0].mxu0 %v771
      %v866 = vpop.f32.mrb[0].mxu0
      %v867 = vadd.f32 0.0, %v866
      %v868 = vpop.f32.mrb[0].mxu0
      %869 = vmatprep.mubr.f32.mxu0 0.0
      %870 = vmatmul.mubr.f32.gmra.mrb[0].mxu0 %v774
      %v871 = vpop.f32.mrb[0].mxu0
      %v872 = vadd.f32 0.0, %v871
      %v873 = vpop.f32.mrb[0].mxu0
      %874 = vmatprep.mubr.f32.mxu0 0.0
      %875 = vmatmul.mubr.f32.gmra.mrb[0].mxu0 %v777
      %v876 = vpop.f32.mrb[0].mxu0
      %v877 = vadd.f32 0.0, %v876
      %v878 = vpop.f32.mrb[0].mxu0
      %879 = vmatprep.mubr.f32.mxu0 0.0
      %880 = vmatmul.mubr.f32.gmra.mrb[0].mxu0 %v780
      %v881 = vpop.f32.mrb[0].mxu0
      %v882 = vadd.f32 0.0, %v881
      %v883 = vpop.f32.mrb[0].mxu0
      %884 = vmatprep.mubr.f32.mxu0 0.0
      %885 = vmatmul.mubr.f32.gmra.mrb[0].mxu0 %v783
      %v886 = vpop.f32.mrb[0].mxu0
      %v887 = vadd.f32 0.0, %v886
      %v888 = vpop.f32.mrb[0].mxu0
      %889 = vdwg.mxu0
      %v891 = vsel %vm584, %v753, 0
      %v894 = vsel %vm584, %v754, 0
      %v897 = vsel %vm584, %v755, 0
      %v900 = vsel %vm584, %v756, 0
      %v903 = vsel %vm584, %v757, 0
      %v906 = vsel %vm584, %v758, 0
      %v909 = vsel %vm584, %v759, 0
      %v912 = vsel %vm584, %v760, 0
      %914 = vmatprep.subr.mxu0 0.0
      %915 = vmatpush1.msra.mxu0 %v269
      %916 = vmatprep.subr.mxu0 0.0
      %917 = vmatpush1.msra.mxu0 %v270
      %918 = vmatprep.subr.mxu0 0.0
      %919 = vmatpush1.msra.mxu0 %v271
      %920 = vmatprep.subr.mxu0 0.0
      %921 = vmatpush1.msra.mxu0 %v272
      %922 = vmatprep.subr.mxu0 0.0
      %923 = vmatpush1.msra.mxu0 %v273
      %924 = vmatprep.subr.mxu0 0.0
      %925 = vmatpush1.msra.mxu0 %v274
      %926 = vmatprep.subr.mxu0 0.0
      %927 = vmatpush1.msra.mxu0 %v275
      %928 = vmatprep.subr.mxu0 0.0
      %929 = vmatpush1.msra.mxu0 %v276
      %930 = vmatprep.subr.mxu0 0.0
      %931 = vmatpush1.msra.mxu0 0.0
      %932 = vmatprep.subr.mxu0 0.0
      %933 = vmatpush1.msra.mxu0 0.0
      %934 = vmatprep.subr.mxu0 0.0
      %935 = vmatpush1.msra.mxu0 0.0
      %936 = vmatprep.subr.mxu0 0.0
      %937 = vmatpush1.msra.mxu0 0.0
      %938 = vmatprep.subr.mxu0 0.0
      %939 = vmatpush1.msra.mxu0 0.0
      %940 = vmatprep.subr.mxu0 0.0
      %941 = vmatpush1.msra.mxu0 0.0
      %942 = vmatprep.subr.mxu0 0.0
      %943 = vmatpush1.msra.mxu0 0.0
      %944 = vmatprep.subr.mxu0 0.0
      %945 = vmatpush1.msra.mxu0 0.0
      %946 = vmatprep.subr.mxu0 0.0
      %947 = vmatpush1.msra.mxu0 0.0
      %948 = vmatprep.subr.mxu0 0.0
      %949 = vmatpush1.msra.mxu0 0.0
      %950 = vmatprep.subr.mxu0 0.0
      %951 = vmatpush1.msra.mxu0 0.0
      %952 = vmatprep.subr.mxu0 0.0
      %953 = vmatpush1.msra.mxu0 0.0
      %954 = vmatprep.subr.mxu0 0.0
      %955 = vmatpush1.msra.mxu0 0.0
      %956 = vmatprep.subr.mxu0 0.0
      %957 = vmatpush1.msra.mxu0 0.0
      %958 = vmatprep.subr.mxu0 0.0
      %959 = vmatpush1.msra.mxu0 0.0
      %960 = vmatprep.subr.mxu0 0.0
      %961 = vmatpush1.msra.mxu0 0.0
      %962 = vmatprep.subr.mxu0 0.0
      %963 = vmatpush1.msra.mxu0 0.0
      %964 = vmatprep.subr.mxu0 0.0
      %965 = vmatpush1.msra.mxu0 0.0
      %966 = vmatprep.subr.mxu0 0.0
      %967 = vmatpush1.msra.mxu0 0.0
      %968 = vmatprep.subr.mxu0 0.0
      %969 = vmatpush1.msra.mxu0 0.0
      %970 = vmatprep.subr.mxu0 0.0
      %971 = vmatpush1.msra.mxu0 0.0
      %972 = vmatprep.subr.mxu0 0.0
      %973 = vmatpush1.msra.mxu0 0.0
      %974 = vmatprep.subr.mxu0 0.0
      %975 = vmatpush1.msra.mxu0 0.0
      %976 = vmatprep.subr.mxu0 0.0
      %977 = vmatpush1.msra.mxu0 0.0
      %978 = vmatprep.mubr.f32.mxu0 0.0
      %979 = vmatmul.mubr.f32.gmra.mrb[0].mxu0 %v891
      %v980 = vpop.f32.mrb[0].mxu0
      %v981 = vadd.f32 0.0, %v980
      %v982 = vpop.f32.mrb[0].mxu0
      %983 = vmatprep.mubr.f32.mxu0 0.0
      %984 = vmatmul.mubr.f32.gmra.mrb[0].mxu0 %v894
      %v985 = vpop.f32.mrb[0].mxu0
      %v986 = vadd.f32 0.0, %v985
      %v987 = vpop.f32.mrb[0].mxu0
      %988 = vmatprep.mubr.f32.mxu0 0.0
      %989 = vmatmul.mubr.f32.gmra.mrb[0].mxu0 %v897
      %v990 = vpop.f32.mrb[0].mxu0
      %v991 = vadd.f32 0.0, %v990
      %v992 = vpop.f32.mrb[0].mxu0
      %993 = vmatprep.mubr.f32.mxu0 0.0
      %994 = vmatmul.mubr.f32.gmra.mrb[0].mxu0 %v900
      %v995 = vpop.f32.mrb[0].mxu0
      %v996 = vadd.f32 0.0, %v995
      %v997 = vpop.f32.mrb[0].mxu0
      %998 = vmatprep.mubr.f32.mxu0 0.0
      %999 = vmatmul.mubr.f32.gmra.mrb[0].mxu0 %v903
      %v1000 = vpop.f32.mrb[0].mxu0
      %v1001 = vadd.f32 0.0, %v1000
      %v1002 = vpop.f32.mrb[0].mxu0
      %1003 = vmatprep.mubr.f32.mxu0 0.0
      %1004 = vmatmul.mubr.f32.gmra.mrb[0].mxu0 %v906
      %v1005 = vpop.f32.mrb[0].mxu0
      %v1006 = vadd.f32 0.0, %v1005
      %v1007 = vpop.f32.mrb[0].mxu0
      %1008 = vmatprep.mubr.f32.mxu0 0.0
      %1009 = vmatmul.mubr.f32.gmra.mrb[0].mxu0 %v909
      %v1010 = vpop.f32.mrb[0].mxu0
      %v1011 = vadd.f32 0.0, %v1010
      %v1012 = vpop.f32.mrb[0].mxu0
      %1013 = vmatprep.mubr.f32.mxu0 0.0
      %1014 = vmatmul.mubr.f32.gmra.mrb[0].mxu0 %v912
      %v1015 = vpop.f32.mrb[0].mxu0
      %v1016 = vadd.f32 0.0, %v1015
      %v1017 = vpop.f32.mrb[0].mxu0
      %1018 = vdwg.mxu0
      %1019 = vrot.lane.b32.xlu0 %v229, 120
      %v1020 = vpop.permute.xlu0 %1019
      %1021 = vrot.lane.b32.xlu0 %v230, 120
      %v1022 = vpop.permute.xlu0 %1021
      %1023 = vrot.lane.b32.xlu0 %v231, 120
      %v1024 = vpop.permute.xlu0 %1023
      %1025 = vrot.lane.b32.xlu0 %v232, 120
      %v1026 = vpop.permute.xlu0 %1025
      %1027 = vrot.lane.b32.xlu0 %v233, 120
      %v1028 = vpop.permute.xlu0 %1027
      %1029 = vrot.lane.b32.xlu0 %v234, 120
      %v1030 = vpop.permute.xlu0 %1029
      %1031 = vrot.lane.b32.xlu0 %v235, 120
      %v1032 = vpop.permute.xlu0 %1031
      %1033 = vrot.lane.b32.xlu0 %v236, 120
      %v1034 = vpop.permute.xlu0 %1033
      %1035 = vrot.lane.b32.xlu0 %v245, 120
      %v1036 = vpop.permute.xlu0 %1035
      %1037 = vrot.lane.b32.xlu0 %v246, 120
      %v1038 = vpop.permute.xlu0 %1037
      %1039 = vrot.lane.b32.xlu0 %v247, 120
      %v1040 = vpop.permute.xlu0 %1039
      %1041 = vrot.lane.b32.xlu0 %v248, 120
      %v1042 = vpop.permute.xlu0 %1041
      %1043 = vrot.lane.b32.xlu0 %v249, 120
      %v1044 = vpop.permute.xlu0 %1043
      %1045 = vrot.lane.b32.xlu0 %v250, 120
      %v1046 = vpop.permute.xlu0 %1045
      %1047 = vrot.lane.b32.xlu0 %v251, 120
      %v1048 = vpop.permute.xlu0 %1047
      %1049 = vrot.lane.b32.xlu0 %v252, 120
      %v1050 = vpop.permute.xlu0 %1049
      %v1051 = vsel %vm277, %v1020, 0
      %v1053 = vsel %vm277, %v1022, 0
      %v1055 = vsel %vm277, %v1024, 0
      %v1057 = vsel %vm277, %v1026, 0
      %v1059 = vsel %vm277, %v1028, 0
      %v1061 = vsel %vm277, %v1030, 0
      %v1063 = vsel %vm277, %v1032, 0
      %v1065 = vsel %vm277, %v1034, 0
      %v1067 = vsel %vm277, %v1036, 0
      %v1069 = vsel %vm277, %v1038, 0
      %v1071 = vsel %vm277, %v1040, 0
      %v1073 = vsel %vm277, %v1042, 0
      %v1075 = vsel %vm277, %v1044, 0
      %v1077 = vsel %vm277, %v1046, 0
      %v1079 = vsel %vm277, %v1048, 0
      %v1081 = vsel %vm277, %v1050, 0
      %1083 = vmatprep.subr.mxu0 0.0
      %1084 = vmatpush1.xpose.msra.mxu0 %v1067
      %1085 = vmatprep.subr.mxu0 0.0
      %1086 = vmatpush1.xpose.msra.mxu0 %v1069
      %1087 = vmatprep.subr.mxu0 0.0
      %1088 = vmatpush1.xpose.msra.mxu0 %v1071
      %1089 = vmatprep.subr.mxu0 0.0
      %1090 = vmatpush1.xpose.msra.mxu0 %v1073
      %1091 = vmatprep.subr.mxu0 0.0
      %1092 = vmatpush1.xpose.msra.mxu0 %v1075
      %1093 = vmatprep.subr.mxu0 0.0
      %1094 = vmatpush1.xpose.msra.mxu0 %v1077
      %1095 = vmatprep.subr.mxu0 0.0
      %1096 = vmatpush1.xpose.msra.mxu0 %v1079
      %1097 = vmatprep.subr.mxu0 0.0
      %1098 = vmatpush1.xpose.msra.mxu0 %v1081
      %1099 = vmatprep.subr.mxu0 0.0
      %1100 = vmatpush1.xpose.msra.mxu0 0.0
      %1101 = vmatprep.subr.mxu0 0.0
      %1102 = vmatpush1.xpose.msra.mxu0 0.0
      %1103 = vmatprep.subr.mxu0 0.0
      %1104 = vmatpush1.xpose.msra.mxu0 0.0
      %1105 = vmatprep.subr.mxu0 0.0
      %1106 = vmatpush1.xpose.msra.mxu0 0.0
      %1107 = vmatprep.subr.mxu0 0.0
      %1108 = vmatpush1.xpose.msra.mxu0 0.0
      %1109 = vmatprep.subr.mxu0 0.0
      %1110 = vmatpush1.xpose.msra.mxu0 0.0
      %1111 = vmatprep.subr.mxu0 0.0
      %1112 = vmatpush1.xpose.msra.mxu0 0.0
      %1113 = vmatprep.subr.mxu0 0.0
      %1114 = vmatpush1.xpose.msra.mxu0 0.0
      %1115 = vmatprep.subr.mxu0 0.0
      %1116 = vmatpush1.xpose.msra.mxu0 0.0
      %1117 = vmatprep.subr.mxu0 0.0
      %1118 = vmatpush1.xpose.msra.mxu0 0.0
      %1119 = vmatprep.subr.mxu0 0.0
      %1120 = vmatpush1.xpose.msra.mxu0 0.0
      %1121 = vmatprep.subr.mxu0 0.0
      %1122 = vmatpush1.xpose.msra.mxu0 0.0
      %1123 = vmatprep.subr.mxu0 0.0
      %1124 = vmatpush1.xpose.msra.mxu0 0.0
      %1125 = vmatprep.subr.mxu0 0.0
      %1126 = vmatpush1.xpose.msra.mxu0 0.0
      %1127 = vmatprep.subr.mxu0 0.0
      %1128 = vmatpush1.xpose.msra.mxu0 0.0
      %1129 = vmatprep.subr.mxu0 0.0
      %1130 = vmatpush1.xpose.msra.mxu0 0.0
      %1131 = vmatprep.subr.mxu0 0.0
      %1132 = vmatpush1.xpose.msra.mxu0 0.0
      %1133 = vmatprep.subr.mxu0 0.0
      %1134 = vmatpush1.xpose.msra.mxu0 0.0
      %1135 = vmatprep.subr.mxu0 0.0
      %1136 = vmatpush1.xpose.msra.mxu0 0.0
      %1137 = vmatprep.subr.mxu0 0.0
      %1138 = vmatpush1.xpose.msra.mxu0 0.0
      %1139 = vmatprep.subr.mxu0 0.0
      %1140 = vmatpush1.xpose.msra.mxu0 0.0
      %1141 = vmatprep.subr.mxu0 0.0
      %1142 = vmatpush1.xpose.msra.mxu0 0.0
      %1143 = vmatprep.subr.mxu0 0.0
      %1144 = vmatpush1.xpose.msra.mxu0 0.0
      %1145 = vmatprep.subr.mxu0 0.0
      %1146 = vmatpush1.xpose.msra.mxu0 0.0
      %1147 = vmatprep.mubr.f32.mxu0 0.0
      %1148 = vmatmul.mubr.f32.gmra.mrb[0].mxu0 %v1051
      %v1149 = vpop.f32.mrb[0].mxu0
      %v1150 = vadd.f32 0.0, %v1149
      %v1151 = vpop.f32.mrb[0].mxu0
      %1152 = vmatprep.mubr.f32.mxu0 0.0
      %1153 = vmatmul.mubr.f32.gmra.mrb[0].mxu0 %v1053
      %v1154 = vpop.f32.mrb[0].mxu0
      %v1155 = vadd.f32 0.0, %v1154
      %v1156 = vpop.f32.mrb[0].mxu0
      %1157 = vmatprep.mubr.f32.mxu0 0.0
      %1158 = vmatmul.mubr.f32.gmra.mrb[0].mxu0 %v1055
      %v1159 = vpop.f32.mrb[0].mxu0
      %v1160 = vadd.f32 0.0, %v1159
      %v1161 = vpop.f32.mrb[0].mxu0
      %1162 = vmatprep.mubr.f32.mxu0 0.0
      %1163 = vmatmul.mubr.f32.gmra.mrb[0].mxu0 %v1057
      %v1164 = vpop.f32.mrb[0].mxu0
      %v1165 = vadd.f32 0.0, %v1164
      %v1166 = vpop.f32.mrb[0].mxu0
      %1167 = vmatprep.mubr.f32.mxu0 0.0
      %1168 = vmatmul.mubr.f32.gmra.mrb[0].mxu0 %v1059
      %v1169 = vpop.f32.mrb[0].mxu0
      %v1170 = vadd.f32 0.0, %v1169
      %v1171 = vpop.f32.mrb[0].mxu0
      %1172 = vmatprep.mubr.f32.mxu0 0.0
      %1173 = vmatmul.mubr.f32.gmra.mrb[0].mxu0 %v1061
      %v1174 = vpop.f32.mrb[0].mxu0
      %v1175 = vadd.f32 0.0, %v1174
      %v1176 = vpop.f32.mrb[0].mxu0
      %1177 = vmatprep.mubr.f32.mxu0 0.0
      %1178 = vmatmul.mubr.f32.gmra.mrb[0].mxu0 %v1063
      %v1179 = vpop.f32.mrb[0].mxu0
      %v1180 = vadd.f32 0.0, %v1179
      %v1181 = vpop.f32.mrb[0].mxu0
      %1182 = vmatprep.mubr.f32.mxu0 0.0
      %1183 = vmatmul.mubr.f32.gmra.mrb[0].mxu0 %v1065
      %v1184 = vpop.f32.mrb[0].mxu0
      %v1185 = vadd.f32 0.0, %v1184
      %v1186 = vpop.f32.mrb[0].mxu0
      %1187 = vdwg.mxu0
      %1188 = vrot.lane.b32.xlu0 %v237, 120
      %v1189 = vpop.permute.xlu0 %1188
      %1190 = vrot.lane.b32.xlu0 %v238, 120
      %v1191 = vpop.permute.xlu0 %1190
      %1192 = vrot.lane.b32.xlu0 %v239, 120
      %v1193 = vpop.permute.xlu0 %1192
      %1194 = vrot.lane.b32.xlu0 %v240, 120
      %v1195 = vpop.permute.xlu0 %1194
      %1196 = vrot.lane.b32.xlu0 %v241, 120
      %v1197 = vpop.permute.xlu0 %1196
      %1198 = vrot.lane.b32.xlu0 %v242, 120
      %v1199 = vpop.permute.xlu0 %1198
      %1200 = vrot.lane.b32.xlu0 %v243, 120
      %v1201 = vpop.permute.xlu0 %1200
      %1202 = vrot.lane.b32.xlu0 %v244, 120
      %v1203 = vpop.permute.xlu0 %1202
      %1204 = vrot.lane.b32.xlu0 %v253, 120
      %v1205 = vpop.permute.xlu0 %1204
      %1206 = vrot.lane.b32.xlu0 %v254, 120
      %v1207 = vpop.permute.xlu0 %1206
      %1208 = vrot.lane.b32.xlu0 %v255, 120
      %v1209 = vpop.permute.xlu0 %1208
      %1210 = vrot.lane.b32.xlu0 %v256, 120
      %v1211 = vpop.permute.xlu0 %1210
      %1212 = vrot.lane.b32.xlu0 %v257, 120
      %v1213 = vpop.permute.xlu0 %1212
      %1214 = vrot.lane.b32.xlu0 %v258, 120
      %v1215 = vpop.permute.xlu0 %1214
      %1216 = vrot.lane.b32.xlu0 %v259, 120
      %v1217 = vpop.permute.xlu0 %1216
      %1218 = vrot.lane.b32.xlu0 %v260, 120
      %v1219 = vpop.permute.xlu0 %1218
      %v1220 = vsel %vm277, %v1189, 0
      %v1222 = vsel %vm277, %v1191, 0
      %v1224 = vsel %vm277, %v1193, 0
      %v1226 = vsel %vm277, %v1195, 0
      %v1228 = vsel %vm277, %v1197, 0
      %v1230 = vsel %vm277, %v1199, 0
      %v1232 = vsel %vm277, %v1201, 0
      %v1234 = vsel %vm277, %v1203, 0
      %v1236 = vsel %vm277, %v1205, 0
      %v1238 = vsel %vm277, %v1207, 0
      %v1240 = vsel %vm277, %v1209, 0
      %v1242 = vsel %vm277, %v1211, 0
      %v1244 = vsel %vm277, %v1213, 0
      %v1246 = vsel %vm277, %v1215, 0
      %v1248 = vsel %vm277, %v1217, 0
      %v1250 = vsel %vm277, %v1219, 0
      %1252 = vmatprep.subr.mxu0 0.0
      %1253 = vmatpush1.xpose.msra.mxu0 %v1236
      %1254 = vmatprep.subr.mxu0 0.0
      %1255 = vmatpush1.xpose.msra.mxu0 %v1238
      %1256 = vmatprep.subr.mxu0 0.0
      %1257 = vmatpush1.xpose.msra.mxu0 %v1240
      %1258 = vmatprep.subr.mxu0 0.0
      %1259 = vmatpush1.xpose.msra.mxu0 %v1242
      %1260 = vmatprep.subr.mxu0 0.0
      %1261 = vmatpush1.xpose.msra.mxu0 %v1244
      %1262 = vmatprep.subr.mxu0 0.0
      %1263 = vmatpush1.xpose.msra.mxu0 %v1246
      %1264 = vmatprep.subr.mxu0 0.0
      %1265 = vmatpush1.xpose.msra.mxu0 %v1248
      %1266 = vmatprep.subr.mxu0 0.0
      %1267 = vmatpush1.xpose.msra.mxu0 %v1250
      %1268 = vmatprep.subr.mxu0 0.0
      %1269 = vmatpush1.xpose.msra.mxu0 0.0
      %1270 = vmatprep.subr.mxu0 0.0
      %1271 = vmatpush1.xpose.msra.mxu0 0.0
      %1272 = vmatprep.subr.mxu0 0.0
      %1273 = vmatpush1.xpose.msra.mxu0 0.0
      %1274 = vmatprep.subr.mxu0 0.0
      %1275 = vmatpush1.xpose.msra.mxu0 0.0
      %1276 = vmatprep.subr.mxu0 0.0
      %1277 = vmatpush1.xpose.msra.mxu0 0.0
      %1278 = vmatprep.subr.mxu0 0.0
      %1279 = vmatpush1.xpose.msra.mxu0 0.0
      %1280 = vmatprep.subr.mxu0 0.0
      %1281 = vmatpush1.xpose.msra.mxu0 0.0
      %1282 = vmatprep.subr.mxu0 0.0
      %1283 = vmatpush1.xpose.msra.mxu0 0.0
      %1284 = vmatprep.subr.mxu0 0.0
      %1285 = vmatpush1.xpose.msra.mxu0 0.0
      %1286 = vmatprep.subr.mxu0 0.0
      %1287 = vmatpush1.xpose.msra.mxu0 0.0
      %1288 = vmatprep.subr.mxu0 0.0
      %1289 = vmatpush1.xpose.msra.mxu0 0.0
      %1290 = vmatprep.subr.mxu0 0.0
      %1291 = vmatpush1.xpose.msra.mxu0 0.0
      %1292 = vmatprep.subr.mxu0 0.0
      %1293 = vmatpush1.xpose.msra.mxu0 0.0
      %1294 = vmatprep.subr.mxu0 0.0
      %1295 = vmatpush1.xpose.msra.mxu0 0.0
      %1296 = vmatprep.subr.mxu0 0.0
      %1297 = vmatpush1.xpose.msra.mxu0 0.0
      %1298 = vmatprep.subr.mxu0 0.0
      %1299 = vmatpush1.xpose.msra.mxu0 0.0
      %1300 = vmatprep.subr.mxu0 0.0
      %1301 = vmatpush1.xpose.msra.mxu0 0.0
      %1302 = vmatprep.subr.mxu0 0.0
      %1303 = vmatpush1.xpose.msra.mxu0 0.0
      %1304 = vmatprep.subr.mxu0 0.0
      %1305 = vmatpush1.xpose.msra.mxu0 0.0
      %1306 = vmatprep.subr.mxu0 0.0
      %1307 = vmatpush1.xpose.msra.mxu0 0.0
      %1308 = vmatprep.subr.mxu0 0.0
      %1309 = vmatpush1.xpose.msra.mxu0 0.0
      %1310 = vmatprep.subr.mxu0 0.0
      %1311 = vmatpush1.xpose.msra.mxu0 0.0
      %1312 = vmatprep.subr.mxu0 0.0
      %1313 = vmatpush1.xpose.msra.mxu0 0.0
      %1314 = vmatprep.subr.mxu0 0.0
      %1315 = vmatpush1.xpose.msra.mxu0 0.0
      %1316 = vmatprep.mubr.f32.mxu0 0.0
      %1317 = vmatmul.mubr.f32.gmra.mrb[0].mxu0 %v1220
      %v1318 = vpop.f32.mrb[0].mxu0
      %v1319 = vadd.f32 0.0, %v1318
      %v1320 = vpop.f32.mrb[0].mxu0
      %1321 = vmatprep.mubr.f32.mxu0 0.0
      %1322 = vmatmul.mubr.f32.gmra.mrb[0].mxu0 %v1222
      %v1323 = vpop.f32.mrb[0].mxu0
      %v1324 = vadd.f32 0.0, %v1323
      %v1325 = vpop.f32.mrb[0].mxu0
      %1326 = vmatprep.mubr.f32.mxu0 0.0
      %1327 = vmatmul.mubr.f32.gmra.mrb[0].mxu0 %v1224
      %v1328 = vpop.f32.mrb[0].mxu0
      %v1329 = vadd.f32 0.0, %v1328
      %v1330 = vpop.f32.mrb[0].mxu0
      %1331 = vmatprep.mubr.f32.mxu0 0.0
      %1332 = vmatmul.mubr.f32.gmra.mrb[0].mxu0 %v1226
      %v1333 = vpop.f32.mrb[0].mxu0
      %v1334 = vadd.f32 0.0, %v1333
      %v1335 = vpop.f32.mrb[0].mxu0
      %1336 = vmatprep.mubr.f32.mxu0 0.0
      %1337 = vmatmul.mubr.f32.gmra.mrb[0].mxu0 %v1228
      %v1338 = vpop.f32.mrb[0].mxu0
      %v1339 = vadd.f32 0.0, %v1338
      %v1340 = vpop.f32.mrb[0].mxu0
      %1341 = vmatprep.mubr.f32.mxu0 0.0
      %1342 = vmatmul.mubr.f32.gmra.mrb[0].mxu0 %v1230
      %v1343 = vpop.f32.mrb[0].mxu0
      %v1344 = vadd.f32 0.0, %v1343
      %v1345 = vpop.f32.mrb[0].mxu0
      %1346 = vmatprep.mubr.f32.mxu0 0.0
      %1347 = vmatmul.mubr.f32.gmra.mrb[0].mxu0 %v1232
      %v1348 = vpop.f32.mrb[0].mxu0
      %v1349 = vadd.f32 0.0, %v1348
      %v1350 = vpop.f32.mrb[0].mxu0
      %1351 = vmatprep.mubr.f32.mxu0 0.0
      %1352 = vmatmul.mubr.f32.gmra.mrb[0].mxu0 %v1234
      %v1353 = vpop.f32.mrb[0].mxu0
      %v1354 = vadd.f32 0.0, %v1353
      %v1355 = vpop.f32.mrb[0].mxu0
      %1356 = vdwg.mxu0
      %v1357 = vsel %vm584, %v1150, -inf
      %1358 = vmax.xlane.f32.xlu0 %v1357
      %v1359 = vpop.xlane.xlu0 %1358
      %v1360 = vsel %vm584, %v1155, -inf
      %1361 = vmax.xlane.f32.xlu0 %v1360
      %v1362 = vpop.xlane.xlu0 %1361
      %v1363 = vsel %vm584, %v1160, -inf
      %1364 = vmax.xlane.f32.xlu0 %v1363
      %v1365 = vpop.xlane.xlu0 %1364
      %v1366 = vsel %vm584, %v1165, -inf
      %1367 = vmax.xlane.f32.xlu0 %v1366
      %v1368 = vpop.xlane.xlu0 %1367
      %v1369 = vsel %vm584, %v1170, -inf
      %1370 = vmax.xlane.f32.xlu0 %v1369
      %v1371 = vpop.xlane.xlu0 %1370
      %v1372 = vsel %vm584, %v1175, -inf
      %1373 = vmax.xlane.f32.xlu0 %v1372
      %v1374 = vpop.xlane.xlu0 %1373
      %v1375 = vsel %vm584, %v1180, -inf
      %1376 = vmax.xlane.f32.xlu0 %v1375
      %v1377 = vpop.xlane.xlu0 %1376
      %v1378 = vsel %vm584, %v1185, -inf
      %1379 = vmax.xlane.f32.xlu0 %v1378
      %v1380 = vpop.xlane.xlu0 %1379
      %v1381 = vsel %vm584, %v1319, -inf
      %1382 = vmax.xlane.f32.xlu0 %v1381
      %v1383 = vpop.xlane.xlu0 %1382
      %v1384 = vsel %vm584, %v1324, -inf
      %1385 = vmax.xlane.f32.xlu0 %v1384
      %v1386 = vpop.xlane.xlu0 %1385
      %v1387 = vsel %vm584, %v1329, -inf
      %1388 = vmax.xlane.f32.xlu0 %v1387
      %v1389 = vpop.xlane.xlu0 %1388
      %v1390 = vsel %vm584, %v1334, -inf
      %1391 = vmax.xlane.f32.xlu0 %v1390
      %v1392 = vpop.xlane.xlu0 %1391
      %v1393 = vsel %vm584, %v1339, -inf
      %1394 = vmax.xlane.f32.xlu0 %v1393
      %v1395 = vpop.xlane.xlu0 %1394
      %v1396 = vsel %vm584, %v1344, -inf
      %1397 = vmax.xlane.f32.xlu0 %v1396
      %v1398 = vpop.xlane.xlu0 %1397
      %v1399 = vsel %vm584, %v1349, -inf
      %1400 = vmax.xlane.f32.xlu0 %v1399
      %v1401 = vpop.xlane.xlu0 %1400
      %v1402 = vsel %vm584, %v1354, -inf
      %1403 = vmax.xlane.f32.xlu0 %v1402
      %v1404 = vpop.xlane.xlu0 %1403
      %v1405 = vsub.f32 %v1150, %v1359
      %v1406 = vsub.f32 %v1155, %v1362
      %v1407 = vsub.f32 %v1160, %v1365
      %v1408 = vsub.f32 %v1165, %v1368
      %v1409 = vsub.f32 %v1170, %v1371
      %v1410 = vsub.f32 %v1175, %v1374
      %v1411 = vsub.f32 %v1180, %v1377
      %v1412 = vsub.f32 %v1185, %v1380
      %v1413 = vsub.f32 %v1319, %v1383
      %v1414 = vsub.f32 %v1324, %v1386
      %v1415 = vsub.f32 %v1329, %v1389
      %v1416 = vsub.f32 %v1334, %v1392
      %v1417 = vsub.f32 %v1339, %v1395
      %v1418 = vsub.f32 %v1344, %v1398
      %v1419 = vsub.f32 %v1349, %v1401
      %v1420 = vsub.f32 %v1354, %v1404
      %v1421 = vmul.f32 %v1405, 1.442695
      %v1422 = vpow.pop %v1421
      %v1423 = vmul.f32 %v1406, 1.442695
      %v1424 = vpow.pop %v1423
      %v1425 = vmul.f32 %v1407, 1.442695
      %v1426 = vpow.pop %v1425
      %v1427 = vmul.f32 %v1408, 1.442695
      %v1428 = vpow.pop %v1427
      %v1429 = vmul.f32 %v1409, 1.442695
      %v1430 = vpow.pop %v1429
      %v1431 = vmul.f32 %v1410, 1.442695
      %v1432 = vpow.pop %v1431
      %v1433 = vmul.f32 %v1411, 1.442695
      %v1434 = vpow.pop %v1433
      %v1435 = vmul.f32 %v1412, 1.442695
      %v1436 = vpow.pop %v1435
      %v1437 = vmul.f32 %v1413, 1.442695
      %v1438 = vpow.pop %v1437
      %v1439 = vmul.f32 %v1414, 1.442695
      %v1440 = vpow.pop %v1439
      %v1441 = vmul.f32 %v1415, 1.442695
      %v1442 = vpow.pop %v1441
      %v1443 = vmul.f32 %v1416, 1.442695
      %v1444 = vpow.pop %v1443
      %v1445 = vmul.f32 %v1417, 1.442695
      %v1446 = vpow.pop %v1445
      %v1447 = vmul.f32 %v1418, 1.442695
      %v1448 = vpow.pop %v1447
      %v1449 = vmul.f32 %v1419, 1.442695
      %v1450 = vpow.pop %v1449
      %v1451 = vmul.f32 %v1420, 1.442695
      %v1452 = vpow.pop %v1451
      %v1453 = vsel %vm584, %v1422, 0.0
      %1454 = vadd.xlane.f32.xlu0 %v1453
      %v1455 = vpop.xlane.xlu0 %1454
      %v1456 = vsel %vm584, %v1424, 0.0
      %1457 = vadd.xlane.f32.xlu0 %v1456
      %v1458 = vpop.xlane.xlu0 %1457
      %v1459 = vsel %vm584, %v1426, 0.0
      %1460 = vadd.xlane.f32.xlu0 %v1459
      %v1461 = vpop.xlane.xlu0 %1460
      %v1462 = vsel %vm584, %v1428, 0.0
      %1463 = vadd.xlane.f32.xlu0 %v1462
      %v1464 = vpop.xlane.xlu0 %1463
      %v1465 = vsel %vm584, %v1430, 0.0
      %1466 = vadd.xlane.f32.xlu0 %v1465
      %v1467 = vpop.xlane.xlu0 %1466
      %v1468 = vsel %vm584, %v1432, 0.0
      %1469 = vadd.xlane.f32.xlu0 %v1468
      %v1470 = vpop.xlane.xlu0 %1469
      %v1471 = vsel %vm584, %v1434, 0.0
      %1472 = vadd.xlane.f32.xlu0 %v1471
      %v1473 = vpop.xlane.xlu0 %1472
      %v1474 = vsel %vm584, %v1436, 0.0
      %1475 = vadd.xlane.f32.xlu0 %v1474
      %v1476 = vpop.xlane.xlu0 %1475
      %v1477 = vsel %vm584, %v1438, 0.0
      %1478 = vadd.xlane.f32.xlu0 %v1477
      %v1479 = vpop.xlane.xlu0 %1478
      %v1480 = vsel %vm584, %v1440, 0.0
      %1481 = vadd.xlane.f32.xlu0 %v1480
      %v1482 = vpop.xlane.xlu0 %1481
      %v1483 = vsel %vm584, %v1442, 0.0
      %1484 = vadd.xlane.f32.xlu0 %v1483
      %v1485 = vpop.xlane.xlu0 %1484
      %v1486 = vsel %vm584, %v1444, 0.0
      %1487 = vadd.xlane.f32.xlu0 %v1486
      %v1488 = vpop.xlane.xlu0 %1487
      %v1489 = vsel %vm584, %v1446, 0.0
      %1490 = vadd.xlane.f32.xlu0 %v1489
      %v1491 = vpop.xlane.xlu0 %1490
      %v1492 = vsel %vm584, %v1448, 0.0
      %1493 = vadd.xlane.f32.xlu0 %v1492
      %v1494 = vpop.xlane.xlu0 %1493
      %v1495 = vsel %vm584, %v1450, 0.0
      %1496 = vadd.xlane.f32.xlu0 %v1495
      %v1497 = vpop.xlane.xlu0 %1496
      %v1498 = vsel %vm584, %v1452, 0.0
      %1499 = vadd.xlane.f32.xlu0 %v1498
      %v1500 = vpop.xlane.xlu0 %1499
      %v1501 = vrcp.pop %v1455
      %v1502 = vrcp.pop %v1458
      %v1503 = vrcp.pop %v1461
      %v1504 = vrcp.pop %v1464
      %v1505 = vrcp.pop %v1467
      %v1506 = vrcp.pop %v1470
      %v1507 = vrcp.pop %v1473
      %v1508 = vrcp.pop %v1476
      %v1509 = vrcp.pop %v1479
      %v1510 = vrcp.pop %v1482
      %v1511 = vrcp.pop %v1485
      %v1512 = vrcp.pop %v1488
      %v1513 = vrcp.pop %v1491
      %v1514 = vrcp.pop %v1494
      %v1515 = vrcp.pop %v1497
      %v1516 = vrcp.pop %v1500
      %v1517 = vmul.f32 %v1422, %v1501
      %v1518 = vmul.f32 %v1424, %v1502
      %v1519 = vmul.f32 %v1426, %v1503
      %v1520 = vmul.f32 %v1428, %v1504
      %v1521 = vmul.f32 %v1430, %v1505
      %v1522 = vmul.f32 %v1432, %v1506
      %v1523 = vmul.f32 %v1434, %v1507
      %v1524 = vmul.f32 %v1436, %v1508
      %v1525 = vmul.f32 %v1438, %v1509
      %v1526 = vmul.f32 %v1440, %v1510
      %v1527 = vmul.f32 %v1442, %v1511
      %v1528 = vmul.f32 %v1444, %v1512
      %v1529 = vmul.f32 %v1446, %v1513
      %v1530 = vmul.f32 %v1448, %v1514
      %v1531 = vmul.f32 %v1450, %v1515
      %v1532 = vmul.f32 %v1452, %v1516
      %1541 = vrot.lane.b32.xlu0 %v261, 120
      %v1542 = vpop.permute.xlu0 %1541
      %1543 = vrot.lane.b32.xlu0 %v262, 120
      %v1544 = vpop.permute.xlu0 %1543
      %1545 = vrot.lane.b32.xlu0 %v263, 120
      %v1546 = vpop.permute.xlu0 %1545
      %1547 = vrot.lane.b32.xlu0 %v264, 120
      %v1548 = vpop.permute.xlu0 %1547
      %1549 = vrot.lane.b32.xlu0 %v265, 120
      %v1550 = vpop.permute.xlu0 %1549
      %1551 = vrot.lane.b32.xlu0 %v266, 120
      %v1552 = vpop.permute.xlu0 %1551
      %1553 = vrot.lane.b32.xlu0 %v267, 120
      %v1554 = vpop.permute.xlu0 %1553
      %1555 = vrot.lane.b32.xlu0 %v268, 120
      %v1556 = vpop.permute.xlu0 %1555
      %v1566 = vsel %vm584, %v1517, 0
      %v1569 = vsel %vm584, %v1518, 0
      %v1572 = vsel %vm584, %v1519, 0
      %v1575 = vsel %vm584, %v1520, 0
      %v1578 = vsel %vm584, %v1521, 0
      %v1581 = vsel %vm584, %v1522, 0
      %v1584 = vsel %vm584, %v1523, 0
      %v1587 = vsel %vm584, %v1524, 0
      %1589 = vmatprep.subr.mxu0 0.0
      %1590 = vmatpush1.msra.mxu0 %v1542
      %1591 = vmatprep.subr.mxu0 0.0
      %1592 = vmatpush1.msra.mxu0 %v1544
      %1593 = vmatprep.subr.mxu0 0.0
      %1594 = vmatpush1.msra.mxu0 %v1546
      %1595 = vmatprep.subr.mxu0 0.0
      %1596 = vmatpush1.msra.mxu0 %v1548
      %1597 = vmatprep.subr.mxu0 0.0
      %1598 = vmatpush1.msra.mxu0 %v1550
      %1599 = vmatprep.subr.mxu0 0.0
      %1600 = vmatpush1.msra.mxu0 %v1552
      %1601 = vmatprep.subr.mxu0 0.0
      %1602 = vmatpush1.msra.mxu0 %v1554
      %1603 = vmatprep.subr.mxu0 0.0
      %1604 = vmatpush1.msra.mxu0 %v1556
      %1605 = vmatprep.subr.mxu0 0.0
      %1606 = vmatpush1.msra.mxu0 0.0
      %1607 = vmatprep.subr.mxu0 0.0
      %1608 = vmatpush1.msra.mxu0 0.0
      %1609 = vmatprep.subr.mxu0 0.0
      %1610 = vmatpush1.msra.mxu0 0.0
      %1611 = vmatprep.subr.mxu0 0.0
      %1612 = vmatpush1.msra.mxu0 0.0
      %1613 = vmatprep.subr.mxu0 0.0
      %1614 = vmatpush1.msra.mxu0 0.0
      %1615 = vmatprep.subr.mxu0 0.0
      %1616 = vmatpush1.msra.mxu0 0.0
      %1617 = vmatprep.subr.mxu0 0.0
      %1618 = vmatpush1.msra.mxu0 0.0
      %1619 = vmatprep.subr.mxu0 0.0
      %1620 = vmatpush1.msra.mxu0 0.0
      %1621 = vmatprep.subr.mxu0 0.0
      %1622 = vmatpush1.msra.mxu0 0.0
      %1623 = vmatprep.subr.mxu0 0.0
      %1624 = vmatpush1.msra.mxu0 0.0
      %1625 = vmatprep.subr.mxu0 0.0
      %1626 = vmatpush1.msra.mxu0 0.0
      %1627 = vmatprep.subr.mxu0 0.0
      %1628 = vmatpush1.msra.mxu0 0.0
      %1629 = vmatprep.subr.mxu0 0.0
      %1630 = vmatpush1.msra.mxu0 0.0
      %1631 = vmatprep.subr.mxu0 0.0
      %1632 = vmatpush1.msra.mxu0 0.0
      %1633 = vmatprep.subr.mxu0 0.0
      %1634 = vmatpush1.msra.mxu0 0.0
      %1635 = vmatprep.subr.mxu0 0.0
      %1636 = vmatpush1.msra.mxu0 0.0
      %1637 = vmatprep.subr.mxu0 0.0
      %1638 = vmatpush1.msra.mxu0 0.0
      %1639 = vmatprep.subr.mxu0 0.0
      %1640 = vmatpush1.msra.mxu0 0.0
      %1641 = vmatprep.subr.mxu0 0.0
      %1642 = vmatpush1.msra.mxu0 0.0
      %1643 = vmatprep.subr.mxu0 0.0
      %1644 = vmatpush1.msra.mxu0 0.0
      %1645 = vmatprep.subr.mxu0 0.0
      %1646 = vmatpush1.msra.mxu0 0.0
      %1647 = vmatprep.subr.mxu0 0.0
      %1648 = vmatpush1.msra.mxu0 0.0
      %1649 = vmatprep.subr.mxu0 0.0
      %1650 = vmatpush1.msra.mxu0 0.0
      %1651 = vmatprep.subr.mxu0 0.0
      %1652 = vmatpush1.msra.mxu0 0.0
      %1653 = vmatprep.mubr.f32.mxu0 0.0
      %1654 = vmatmul.mubr.f32.gmra.mrb[0].mxu0 %v1566
      %v1655 = vpop.f32.mrb[0].mxu0
      %v1656 = vadd.f32 0.0, %v1655
      %v1657 = vpop.f32.mrb[0].mxu0
      %1658 = vmatprep.mubr.f32.mxu0 0.0
      %1659 = vmatmul.mubr.f32.gmra.mrb[0].mxu0 %v1569
      %v1660 = vpop.f32.mrb[0].mxu0
      %v1661 = vadd.f32 0.0, %v1660
      %v1662 = vpop.f32.mrb[0].mxu0
      %1663 = vmatprep.mubr.f32.mxu0 0.0
      %1664 = vmatmul.mubr.f32.gmra.mrb[0].mxu0 %v1572
      %v1665 = vpop.f32.mrb[0].mxu0
      %v1666 = vadd.f32 0.0, %v1665
      %v1667 = vpop.f32.mrb[0].mxu0
      %1668 = vmatprep.mubr.f32.mxu0 0.0
      %1669 = vmatmul.mubr.f32.gmra.mrb[0].mxu0 %v1575
      %v1670 = vpop.f32.mrb[0].mxu0
      %v1671 = vadd.f32 0.0, %v1670
      %v1672 = vpop.f32.mrb[0].mxu0
      %1673 = vmatprep.mubr.f32.mxu0 0.0
      %1674 = vmatmul.mubr.f32.gmra.mrb[0].mxu0 %v1578
      %v1675 = vpop.f32.mrb[0].mxu0
      %v1676 = vadd.f32 0.0, %v1675
      %v1677 = vpop.f32.mrb[0].mxu0
      %1678 = vmatprep.mubr.f32.mxu0 0.0
      %1679 = vmatmul.mubr.f32.gmra.mrb[0].mxu0 %v1581
      %v1680 = vpop.f32.mrb[0].mxu0
      %v1681 = vadd.f32 0.0, %v1680
      %v1682 = vpop.f32.mrb[0].mxu0
      %1683 = vmatprep.mubr.f32.mxu0 0.0
      %1684 = vmatmul.mubr.f32.gmra.mrb[0].mxu0 %v1584
      %v1685 = vpop.f32.mrb[0].mxu0
      %v1686 = vadd.f32 0.0, %v1685
      %v1687 = vpop.f32.mrb[0].mxu0
      %1688 = vmatprep.mubr.f32.mxu0 0.0
      %1689 = vmatmul.mubr.f32.gmra.mrb[0].mxu0 %v1587
      %v1690 = vpop.f32.mrb[0].mxu0
      %v1691 = vadd.f32 0.0, %v1690
      %v1692 = vpop.f32.mrb[0].mxu0
      %1693 = vdwg.mxu0
      %1702 = vrot.lane.b32.xlu0 %v269, 120
      %v1703 = vpop.permute.xlu0 %1702
      %1704 = vrot.lane.b32.xlu0 %v270, 120
      %v1705 = vpop.permute.xlu0 %1704
      %1706 = vrot.lane.b32.xlu0 %v271, 120
      %v1707 = vpop.permute.xlu0 %1706
      %1708 = vrot.lane.b32.xlu0 %v272, 120
      %v1709 = vpop.permute.xlu0 %1708
      %1710 = vrot.lane.b32.xlu0 %v273, 120
      %v1711 = vpop.permute.xlu0 %1710
      %1712 = vrot.lane.b32.xlu0 %v274, 120
      %v1713 = vpop.permute.xlu0 %1712
      %1714 = vrot.lane.b32.xlu0 %v275, 120
      %v1715 = vpop.permute.xlu0 %1714
      %1716 = vrot.lane.b32.xlu0 %v276, 120
      %v1717 = vpop.permute.xlu0 %1716
      %v1727 = vsel %vm584, %v1525, 0
      %v1730 = vsel %vm584, %v1526, 0
      %v1733 = vsel %vm584, %v1527, 0
      %v1736 = vsel %vm584, %v1528, 0
      %v1739 = vsel %vm584, %v1529, 0
      %v1742 = vsel %vm584, %v1530, 0
      %v1745 = vsel %vm584, %v1531, 0
      %v1748 = vsel %vm584, %v1532, 0
      %1750 = vmatprep.subr.mxu0 0.0
      %1751 = vmatpush1.msra.mxu0 %v1703
      %1752 = vmatprep.subr.mxu0 0.0
      %1753 = vmatpush1.msra.mxu0 %v1705
      %1754 = vmatprep.subr.mxu0 0.0
      %1755 = vmatpush1.msra.mxu0 %v1707
      %1756 = vmatprep.subr.mxu0 0.0
      %1757 = vmatpush1.msra.mxu0 %v1709
      %1758 = vmatprep.subr.mxu0 0.0
      %1759 = vmatpush1.msra.mxu0 %v1711
      %1760 = vmatprep.subr.mxu0 0.0
      %1761 = vmatpush1.msra.mxu0 %v1713
      %1762 = vmatprep.subr.mxu0 0.0
      %1763 = vmatpush1.msra.mxu0 %v1715
      %1764 = vmatprep.subr.mxu0 0.0
      %1765 = vmatpush1.msra.mxu0 %v1717
      %1766 = vmatprep.subr.mxu0 0.0
      %1767 = vmatpush1.msra.mxu0 0.0
      %1768 = vmatprep.subr.mxu0 0.0
      %1769 = vmatpush1.msra.mxu0 0.0
      %1770 = vmatprep.subr.mxu0 0.0
      %1771 = vmatpush1.msra.mxu0 0.0
      %1772 = vmatprep.subr.mxu0 0.0
      %1773 = vmatpush1.msra.mxu0 0.0
      %1774 = vmatprep.subr.mxu0 0.0
      %1775 = vmatpush1.msra.mxu0 0.0
      %1776 = vmatprep.subr.mxu0 0.0
      %1777 = vmatpush1.msra.mxu0 0.0
      %1778 = vmatprep.subr.mxu0 0.0
      %1779 = vmatpush1.msra.mxu0 0.0
      %1780 = vmatprep.subr.mxu0 0.0
      %1781 = vmatpush1.msra.mxu0 0.0
      %1782 = vmatprep.subr.mxu0 0.0
      %1783 = vmatpush1.msra.mxu0 0.0
      %1784 = vmatprep.subr.mxu0 0.0
      %1785 = vmatpush1.msra.mxu0 0.0
      %1786 = vmatprep.subr.mxu0 0.0
      %1787 = vmatpush1.msra.mxu0 0.0
      %1788 = vmatprep.subr.mxu0 0.0
      %1789 = vmatpush1.msra.mxu0 0.0
      %1790 = vmatprep.subr.mxu0 0.0
      %1791 = vmatpush1.msra.mxu0 0.0
      %1792 = vmatprep.subr.mxu0 0.0
      %1793 = vmatpush1.msra.mxu0 0.0
      %1794 = vmatprep.subr.mxu0 0.0
      %1795 = vmatpush1.msra.mxu0 0.0
      %1796 = vmatprep.subr.mxu0 0.0
      %1797 = vmatpush1.msra.mxu0 0.0
      %1798 = vmatprep.subr.mxu0 0.0
      %1799 = vmatpush1.msra.mxu0 0.0
      %1800 = vmatprep.subr.mxu0 0.0
      %1801 = vmatpush1.msra.mxu0 0.0
      %1802 = vmatprep.subr.mxu0 0.0
      %1803 = vmatpush1.msra.mxu0 0.0
      %1804 = vmatprep.subr.mxu0 0.0
      %1805 = vmatpush1.msra.mxu0 0.0
      %1806 = vmatprep.subr.mxu0 0.0
      %1807 = vmatpush1.msra.mxu0 0.0
      %1808 = vmatprep.subr.mxu0 0.0
      %1809 = vmatpush1.msra.mxu0 0.0
      %1810 = vmatprep.subr.mxu0 0.0
      %1811 = vmatpush1.msra.mxu0 0.0
      %1812 = vmatprep.subr.mxu0 0.0
      %1813 = vmatpush1.msra.mxu0 0.0
      %1814 = vmatprep.mubr.f32.mxu0 0.0
      %1815 = vmatmul.mubr.f32.gmra.mrb[0].mxu0 %v1727
      %v1816 = vpop.f32.mrb[0].mxu0
      %v1817 = vadd.f32 0.0, %v1816
      %v1818 = vpop.f32.mrb[0].mxu0
      %1819 = vmatprep.mubr.f32.mxu0 0.0
      %1820 = vmatmul.mubr.f32.gmra.mrb[0].mxu0 %v1730
      %v1821 = vpop.f32.mrb[0].mxu0
      %v1822 = vadd.f32 0.0, %v1821
      %v1823 = vpop.f32.mrb[0].mxu0
      %1824 = vmatprep.mubr.f32.mxu0 0.0
      %1825 = vmatmul.mubr.f32.gmra.mrb[0].mxu0 %v1733
      %v1826 = vpop.f32.mrb[0].mxu0
      %v1827 = vadd.f32 0.0, %v1826
      %v1828 = vpop.f32.mrb[0].mxu0
      %1829 = vmatprep.mubr.f32.mxu0 0.0
      %1830 = vmatmul.mubr.f32.gmra.mrb[0].mxu0 %v1736
      %v1831 = vpop.f32.mrb[0].mxu0
      %v1832 = vadd.f32 0.0, %v1831
      %v1833 = vpop.f32.mrb[0].mxu0
      %1834 = vmatprep.mubr.f32.mxu0 0.0
      %1835 = vmatmul.mubr.f32.gmra.mrb[0].mxu0 %v1739
      %v1836 = vpop.f32.mrb[0].mxu0
      %v1837 = vadd.f32 0.0, %v1836
      %v1838 = vpop.f32.mrb[0].mxu0
      %1839 = vmatprep.mubr.f32.mxu0 0.0
      %1840 = vmatmul.mubr.f32.gmra.mrb[0].mxu0 %v1742
      %v1841 = vpop.f32.mrb[0].mxu0
      %v1842 = vadd.f32 0.0, %v1841
      %v1843 = vpop.f32.mrb[0].mxu0
      %1844 = vmatprep.mubr.f32.mxu0 0.0
      %1845 = vmatmul.mubr.f32.gmra.mrb[0].mxu0 %v1745
      %v1846 = vpop.f32.mrb[0].mxu0
      %v1847 = vadd.f32 0.0, %v1846
      %v1848 = vpop.f32.mrb[0].mxu0
      %1849 = vmatprep.mubr.f32.mxu0 0.0
      %1850 = vmatmul.mubr.f32.gmra.mrb[0].mxu0 %v1748
      %v1851 = vpop.f32.mrb[0].mxu0
      %v1852 = vadd.f32 0.0, %v1851
      %v1853 = vpop.f32.mrb[0].mxu0
      %1854 = vdwg.mxu0
      %1855 = vrot.lane.b32.xlu0 %v229, 112
      %v1856 = vpop.permute.xlu0 %1855
      %1857 = vrot.lane.b32.xlu0 %v230, 112
      %v1858 = vpop.permute.xlu0 %1857
      %1859 = vrot.lane.b32.xlu0 %v231, 112
      %v1860 = vpop.permute.xlu0 %1859
      %1861 = vrot.lane.b32.xlu0 %v232, 112
      %v1862 = vpop.permute.xlu0 %1861
      %1863 = vrot.lane.b32.xlu0 %v233, 112
      %v1864 = vpop.permute.xlu0 %1863
      %1865 = vrot.lane.b32.xlu0 %v234, 112
      %v1866 = vpop.permute.xlu0 %1865
      %1867 = vrot.lane.b32.xlu0 %v235, 112
      %v1868 = vpop.permute.xlu0 %1867
      %1869 = vrot.lane.b32.xlu0 %v236, 112
      %v1870 = vpop.permute.xlu0 %1869
      %1871 = vrot.lane.b32.xlu0 %v245, 112
      %v1872 = vpop.permute.xlu0 %1871
      %1873 = vrot.lane.b32.xlu0 %v246, 112
      %v1874 = vpop.permute.xlu0 %1873
      %1875 = vrot.lane.b32.xlu0 %v247, 112
      %v1876 = vpop.permute.xlu0 %1875
      %1877 = vrot.lane.b32.xlu0 %v248, 112
      %v1878 = vpop.permute.xlu0 %1877
      %1879 = vrot.lane.b32.xlu0 %v249, 112
      %v1880 = vpop.permute.xlu0 %1879
      %1881 = vrot.lane.b32.xlu0 %v250, 112
      %v1882 = vpop.permute.xlu0 %1881
      %1883 = vrot.lane.b32.xlu0 %v251, 112
      %v1884 = vpop.permute.xlu0 %1883
      %1885 = vrot.lane.b32.xlu0 %v252, 112
      %v1886 = vpop.permute.xlu0 %1885
      %v1887 = vsel %vm277, %v1856, 0
      %v1889 = vsel %vm277, %v1858, 0
      %v1891 = vsel %vm277, %v1860, 0
      %v1893 = vsel %vm277, %v1862, 0
      %v1895 = vsel %vm277, %v1864, 0
      %v1897 = vsel %vm277, %v1866, 0
      %v1899 = vsel %vm277, %v1868, 0
      %v1901 = vsel %vm277, %v1870, 0
      %v1903 = vsel %vm277, %v1872, 0
      %v1905 = vsel %vm277, %v1874, 0
      %v1907 = vsel %vm277, %v1876, 0
      %v1909 = vsel %vm277, %v1878, 0
      %v1911 = vsel %vm277, %v1880, 0
      %v1913 = vsel %vm277, %v1882, 0
      %v1915 = vsel %vm277, %v1884, 0
      %v1917 = vsel %vm277, %v1886, 0
      %1919 = vmatprep.subr.mxu0 0.0
      %1920 = vmatpush1.xpose.msra.mxu0 %v1903
      %1921 = vmatprep.subr.mxu0 0.0
      %1922 = vmatpush1.xpose.msra.mxu0 %v1905
      %1923 = vmatprep.subr.mxu0 0.0
      %1924 = vmatpush1.xpose.msra.mxu0 %v1907
      %1925 = vmatprep.subr.mxu0 0.0
      %1926 = vmatpush1.xpose.msra.mxu0 %v1909
      %1927 = vmatprep.subr.mxu0 0.0
      %1928 = vmatpush1.xpose.msra.mxu0 %v1911
      %1929 = vmatprep.subr.mxu0 0.0
      %1930 = vmatpush1.xpose.msra.mxu0 %v1913
      %1931 = vmatprep.subr.mxu0 0.0
      %1932 = vmatpush1.xpose.msra.mxu0 %v1915
      %1933 = vmatprep.subr.mxu0 0.0
      %1934 = vmatpush1.xpose.msra.mxu0 %v1917
      %1935 = vmatprep.subr.mxu0 0.0
      %1936 = vmatpush1.xpose.msra.mxu0 0.0
      %1937 = vmatprep.subr.mxu0 0.0
      %1938 = vmatpush1.xpose.msra.mxu0 0.0
      %1939 = vmatprep.subr.mxu0 0.0
      %1940 = vmatpush1.xpose.msra.mxu0 0.0
      %1941 = vmatprep.subr.mxu0 0.0
      %1942 = vmatpush1.xpose.msra.mxu0 0.0
      %1943 = vmatprep.subr.mxu0 0.0
      %1944 = vmatpush1.xpose.msra.mxu0 0.0
      %1945 = vmatprep.subr.mxu0 0.0
      %1946 = vmatpush1.xpose.msra.mxu0 0.0
      %1947 = vmatprep.subr.mxu0 0.0
      %1948 = vmatpush1.xpose.msra.mxu0 0.0
      %1949 = vmatprep.subr.mxu0 0.0
      %1950 = vmatpush1.xpose.msra.mxu0 0.0
      %1951 = vmatprep.subr.mxu0 0.0
      %1952 = vmatpush1.xpose.msra.mxu0 0.0
      %1953 = vmatprep.subr.mxu0 0.0
      %1954 = vmatpush1.xpose.msra.mxu0 0.0
      %1955 = vmatprep.subr.mxu0 0.0
      %1956 = vmatpush1.xpose.msra.mxu0 0.0
      %1957 = vmatprep.subr.mxu0 0.0
      %1958 = vmatpush1.xpose.msra.mxu0 0.0
      %1959 = vmatprep.subr.mxu0 0.0
      %1960 = vmatpush1.xpose.msra.mxu0 0.0
      %1961 = vmatprep.subr.mxu0 0.0
      %1962 = vmatpush1.xpose.msra.mxu0 0.0
      %1963 = vmatprep.subr.mxu0 0.0
      %1964 = vmatpush1.xpose.msra.mxu0 0.0
      %1965 = vmatprep.subr.mxu0 0.0
      %1966 = vmatpush1.xpose.msra.mxu0 0.0
      %1967 = vmatprep.subr.mxu0 0.0
      %1968 = vmatpush1.xpose.msra.mxu0 0.0
      %1969 = vmatprep.subr.mxu0 0.0
      %1970 = vmatpush1.xpose.msra.mxu0 0.0
      %1971 = vmatprep.subr.mxu0 0.0
      %1972 = vmatpush1.xpose.msra.mxu0 0.0
      %1973 = vmatprep.subr.mxu0 0.0
      %1974 = vmatpush1.xpose.msra.mxu0 0.0
      %1975 = vmatprep.subr.mxu0 0.0
      %1976 = vmatpush1.xpose.msra.mxu0 0.0
      %1977 = vmatprep.subr.mxu0 0.0
      %1978 = vmatpush1.xpose.msra.mxu0 0.0
      %1979 = vmatprep.subr.mxu0 0.0
      %1980 = vmatpush1.xpose.msra.mxu0 0.0
      %1981 = vmatprep.subr.mxu0 0.0
      %1982 = vmatpush1.xpose.msra.mxu0 0.0
      %1983 = vmatprep.mubr.f32.mxu0 0.0
      %1984 = vmatmul.mubr.f32.gmra.mrb[0].mxu0 %v1887
      %v1985 = vpop.f32.mrb[0].mxu0
      %v1986 = vadd.f32 0.0, %v1985
      %v1987 = vpop.f32.mrb[0].mxu0
      %1988 = vmatprep.mubr.f32.mxu0 0.0
      %1989 = vmatmul.mubr.f32.gmra.mrb[0].mxu0 %v1889
      %v1990 = vpop.f32.mrb[0].mxu0
      %v1991 = vadd.f32 0.0, %v1990
      %v1992 = vpop.f32.mrb[0].mxu0
      %1993 = vmatprep.mubr.f32.mxu0 0.0
      %1994 = vmatmul.mubr.f32.gmra.mrb[0].mxu0 %v1891
      %v1995 = vpop.f32.mrb[0].mxu0
      %v1996 = vadd.f32 0.0, %v1995
      %v1997 = vpop.f32.mrb[0].mxu0
      %1998 = vmatprep.mubr.f32.mxu0 0.0
      %1999 = vmatmul.mubr.f32.gmra.mrb[0].mxu0 %v1893
      %v2000 = vpop.f32.mrb[0].mxu0
      %v2001 = vadd.f32 0.0, %v2000
      %v2002 = vpop.f32.mrb[0].mxu0
      %2003 = vmatprep.mubr.f32.mxu0 0.0
      %2004 = vmatmul.mubr.f32.gmra.mrb[0].mxu0 %v1895
      %v2005 = vpop.f32.mrb[0].mxu0
      %v2006 = vadd.f32 0.0, %v2005
      %v2007 = vpop.f32.mrb[0].mxu0
      %2008 = vmatprep.mubr.f32.mxu0 0.0
      %2009 = vmatmul.mubr.f32.gmra.mrb[0].mxu0 %v1897
      %v2010 = vpop.f32.mrb[0].mxu0
      %v2011 = vadd.f32 0.0, %v2010
      %v2012 = vpop.f32.mrb[0].mxu0
      %2013 = vmatprep.mubr.f32.mxu0 0.0
      %2014 = vmatmul.mubr.f32.gmra.mrb[0].mxu0 %v1899
      %v2015 = vpop.f32.mrb[0].mxu0
      %v2016 = vadd.f32 0.0, %v2015
      %v2017 = vpop.f32.mrb[0].mxu0
      %2018 = vmatprep.mubr.f32.mxu0 0.0
      %2019 = vmatmul.mubr.f32.gmra.mrb[0].mxu0 %v1901
      %v2020 = vpop.f32.mrb[0].mxu0
      %v2021 = vadd.f32 0.0, %v2020
      %v2022 = vpop.f32.mrb[0].mxu0
      %2023 = vdwg.mxu0
      %2024 = vrot.lane.b32.xlu0 %v237, 112
      %v2025 = vpop.permute.xlu0 %2024
      %2026 = vrot.lane.b32.xlu0 %v238, 112
      %v2027 = vpop.permute.xlu0 %2026
      %2028 = vrot.lane.b32.xlu0 %v239, 112
      %v2029 = vpop.permute.xlu0 %2028
      %2030 = vrot.lane.b32.xlu0 %v240, 112
      %v2031 = vpop.permute.xlu0 %2030
      %2032 = vrot.lane.b32.xlu0 %v241, 112
      %v2033 = vpop.permute.xlu0 %2032
      %2034 = vrot.lane.b32.xlu0 %v242, 112
      %v2035 = vpop.permute.xlu0 %2034
      %2036 = vrot.lane.b32.xlu0 %v243, 112
      %v2037 = vpop.permute.xlu0 %2036
      %2038 = vrot.lane.b32.xlu0 %v244, 112
      %v2039 = vpop.permute.xlu0 %2038
      %2040 = vrot.lane.b32.xlu0 %v253, 112
      %v2041 = vpop.permute.xlu0 %2040
      %2042 = vrot.lane.b32.xlu0 %v254, 112
      %v2043 = vpop.permute.xlu0 %2042
      %2044 = vrot.lane.b32.xlu0 %v255, 112
      %v2045 = vpop.permute.xlu0 %2044
      %2046 = vrot.lane.b32.xlu0 %v256, 112
      %v2047 = vpop.permute.xlu0 %2046
      %2048 = vrot.lane.b32.xlu0 %v257, 112
      %v2049 = vpop.permute.xlu0 %2048
      %2050 = vrot.lane.b32.xlu0 %v258, 112
      %v2051 = vpop.permute.xlu0 %2050
      %2052 = vrot.lane.b32.xlu0 %v259, 112
      %v2053 = vpop.permute.xlu0 %2052
      %2054 = vrot.lane.b32.xlu0 %v260, 112
      %v2055 = vpop.permute.xlu0 %2054
      %v2056 = vsel %vm277, %v2025, 0
      %v2058 = vsel %vm277, %v2027, 0
      %v2060 = vsel %vm277, %v2029, 0
      %v2062 = vsel %vm277, %v2031, 0
      %v2064 = vsel %vm277, %v2033, 0
      %v2066 = vsel %vm277, %v2035, 0
      %v2068 = vsel %vm277, %v2037, 0
      %v2070 = vsel %vm277, %v2039, 0
      %v2072 = vsel %vm277, %v2041, 0
      %v2074 = vsel %vm277, %v2043, 0
      %v2076 = vsel %vm277, %v2045, 0
      %v2078 = vsel %vm277, %v2047, 0
      %v2080 = vsel %vm277, %v2049, 0
      %v2082 = vsel %vm277, %v2051, 0
      %v2084 = vsel %vm277, %v2053, 0
      %v2086 = vsel %vm277, %v2055, 0
      %2088 = vmatprep.subr.mxu0 0.0
      %2089 = vmatpush1.xpose.msra.mxu0 %v2072
      %2090 = vmatprep.subr.mxu0 0.0
      %2091 = vmatpush1.xpose.msra.mxu0 %v2074
      %2092 = vmatprep.subr.mxu0 0.0
      %2093 = vmatpush1.xpose.msra.mxu0 %v2076
      %2094 = vmatprep.subr.mxu0 0.0
      %2095 = vmatpush1.xpose.msra.mxu0 %v2078
      %2096 = vmatprep.subr.mxu0 0.0
      %2097 = vmatpush1.xpose.msra.mxu0 %v2080
      %2098 = vmatprep.subr.mxu0 0.0
      %2099 = vmatpush1.xpose.msra.mxu0 %v2082
      %2100 = vmatprep.subr.mxu0 0.0
      %2101 = vmatpush1.xpose.msra.mxu0 %v2084
      %2102 = vmatprep.subr.mxu0 0.0
      %2103 = vmatpush1.xpose.msra.mxu0 %v2086
      %2104 = vmatprep.subr.mxu0 0.0
      %2105 = vmatpush1.xpose.msra.mxu0 0.0
      %2106 = vmatprep.subr.mxu0 0.0
      %2107 = vmatpush1.xpose.msra.mxu0 0.0
      %2108 = vmatprep.subr.mxu0 0.0
      %2109 = vmatpush1.xpose.msra.mxu0 0.0
      %2110 = vmatprep.subr.mxu0 0.0
      %2111 = vmatpush1.xpose.msra.mxu0 0.0
      %2112 = vmatprep.subr.mxu0 0.0
      %2113 = vmatpush1.xpose.msra.mxu0 0.0
      %2114 = vmatprep.subr.mxu0 0.0
      %2115 = vmatpush1.xpose.msra.mxu0 0.0
      %2116 = vmatprep.subr.mxu0 0.0
      %2117 = vmatpush1.xpose.msra.mxu0 0.0
      %2118 = vmatprep.subr.mxu0 0.0
      %2119 = vmatpush1.xpose.msra.mxu0 0.0
      %2120 = vmatprep.subr.mxu0 0.0
      %2121 = vmatpush1.xpose.msra.mxu0 0.0
      %2122 = vmatprep.subr.mxu0 0.0
      %2123 = vmatpush1.xpose.msra.mxu0 0.0
      %2124 = vmatprep.subr.mxu0 0.0
      %2125 = vmatpush1.xpose.msra.mxu0 0.0
      %2126 = vmatprep.subr.mxu0 0.0
      %2127 = vmatpush1.xpose.msra.mxu0 0.0
      %2128 = vmatprep.subr.mxu0 0.0
      %2129 = vmatpush1.xpose.msra.mxu0 0.0
      %2130 = vmatprep.subr.mxu0 0.0
      %2131 = vmatpush1.xpose.msra.mxu0 0.0
      %2132 = vmatprep.subr.mxu0 0.0
      %2133 = vmatpush1.xpose.msra.mxu0 0.0
      %2134 = vmatprep.subr.mxu0 0.0
      %2135 = vmatpush1.xpose.msra.mxu0 0.0
      %2136 = vmatprep.subr.mxu0 0.0
      %2137 = vmatpush1.xpose.msra.mxu0 0.0
      %2138 = vmatprep.subr.mxu0 0.0
      %2139 = vmatpush1.xpose.msra.mxu0 0.0
      %2140 = vmatprep.subr.mxu0 0.0
      %2141 = vmatpush1.xpose.msra.mxu0 0.0
      %2142 = vmatprep.subr.mxu0 0.0
      %2143 = vmatpush1.xpose.msra.mxu0 0.0
      %2144 = vmatprep.subr.mxu0 0.0
      %2145 = vmatpush1.xpose.msra.mxu0 0.0
      %2146 = vmatprep.subr.mxu0 0.0
      %2147 = vmatpush1.xpose.msra.mxu0 0.0
      %2148 = vmatprep.subr.mxu0 0.0
      %2149 = vmatpush1.xpose.msra.mxu0 0.0
      %2150 = vmatprep.subr.mxu0 0.0
      %2151 = vmatpush1.xpose.msra.mxu0 0.0
      %2152 = vmatprep.mubr.f32.mxu0 0.0
      %2153 = vmatmul.mubr.f32.gmra.mrb[0].mxu0 %v2056
      %v2154 = vpop.f32.mrb[0].mxu0
      %v2155 = vadd.f32 0.0, %v2154
      %v2156 = vpop.f32.mrb[0].mxu0
      %2157 = vmatprep.mubr.f32.mxu0 0.0
      %2158 = vmatmul.mubr.f32.gmra.mrb[0].mxu0 %v2058
      %v2159 = vpop.f32.mrb[0].mxu0
      %v2160 = vadd.f32 0.0, %v2159
      %v2161 = vpop.f32.mrb[0].mxu0
      %2162 = vmatprep.mubr.f32.mxu0 0.0
      %2163 = vmatmul.mubr.f32.gmra.mrb[0].mxu0 %v2060
      %v2164 = vpop.f32.mrb[0].mxu0
      %v2165 = vadd.f32 0.0, %v2164
      %v2166 = vpop.f32.mrb[0].mxu0
      %2167 = vmatprep.mubr.f32.mxu0 0.0
      %2168 = vmatmul.mubr.f32.gmra.mrb[0].mxu0 %v2062
      %v2169 = vpop.f32.mrb[0].mxu0
      %v2170 = vadd.f32 0.0, %v2169
      %v2171 = vpop.f32.mrb[0].mxu0
      %2172 = vmatprep.mubr.f32.mxu0 0.0
      %2173 = vmatmul.mubr.f32.gmra.mrb[0].mxu0 %v2064
      %v2174 = vpop.f32.mrb[0].mxu0
      %v2175 = vadd.f32 0.0, %v2174
      %v2176 = vpop.f32.mrb[0].mxu0
      %2177 = vmatprep.mubr.f32.mxu0 0.0
      %2178 = vmatmul.mubr.f32.gmra.mrb[0].mxu0 %v2066
      %v2179 = vpop.f32.mrb[0].mxu0
      %v2180 = vadd.f32 0.0, %v2179
      %v2181 = vpop.f32.mrb[0].mxu0
      %2182 = vmatprep.mubr.f32.mxu0 0.0
      %2183 = vmatmul.mubr.f32.gmra.mrb[0].mxu0 %v2068
      %v2184 = vpop.f32.mrb[0].mxu0
      %v2185 = vadd.f32 0.0, %v2184
      %v2186 = vpop.f32.mrb[0].mxu0
      %2187 = vmatprep.mubr.f32.mxu0 0.0
      %2188 = vmatmul.mubr.f32.gmra.mrb[0].mxu0 %v2070
      %v2189 = vpop.f32.mrb[0].mxu0
      %v2190 = vadd.f32 0.0, %v2189
      %v2191 = vpop.f32.mrb[0].mxu0
      %2192 = vdwg.mxu0
      %v2193 = vsel %vm584, %v1986, -inf
      %2194 = vmax.xlane.f32.xlu0 %v2193
      %v2195 = vpop.xlane.xlu0 %2194
      %v2196 = vsel %vm584, %v1991, -inf
      %2197 = vmax.xlane.f32.xlu0 %v2196
      %v2198 = vpop.xlane.xlu0 %2197
      %v2199 = vsel %vm584, %v1996, -inf
      %2200 = vmax.xlane.f32.xlu0 %v2199
      %v2201 = vpop.xlane.xlu0 %2200
      %v2202 = vsel %vm584, %v2001, -inf
      %2203 = vmax.xlane.f32.xlu0 %v2202
      %v2204 = vpop.xlane.xlu0 %2203
      %v2205 = vsel %vm584, %v2006, -inf
      %2206 = vmax.xlane.f32.xlu0 %v2205
      %v2207 = vpop.xlane.xlu0 %2206
      %v2208 = vsel %vm584, %v2011, -inf
      %2209 = vmax.xlane.f32.xlu0 %v2208
      %v2210 = vpop.xlane.xlu0 %2209
      %v2211 = vsel %vm584, %v2016, -inf
      %2212 = vmax.xlane.f32.xlu0 %v2211
      %v2213 = vpop.xlane.xlu0 %2212
      %v2214 = vsel %vm584, %v2021, -inf
      %2215 = vmax.xlane.f32.xlu0 %v2214
      %v2216 = vpop.xlane.xlu0 %2215
      %v2217 = vsel %vm584, %v2155, -inf
      %2218 = vmax.xlane.f32.xlu0 %v2217
      %v2219 = vpop.xlane.xlu0 %2218
      %v2220 = vsel %vm584, %v2160, -inf
      %2221 = vmax.xlane.f32.xlu0 %v2220
      %v2222 = vpop.xlane.xlu0 %2221
      %v2223 = vsel %vm584, %v2165, -inf
      %2224 = vmax.xlane.f32.xlu0 %v2223
      %v2225 = vpop.xlane.xlu0 %2224
      %v2226 = vsel %vm584, %v2170, -inf
      %2227 = vmax.xlane.f32.xlu0 %v2226
      %v2228 = vpop.xlane.xlu0 %2227
      %v2229 = vsel %vm584, %v2175, -inf
      %2230 = vmax.xlane.f32.xlu0 %v2229
      %v2231 = vpop.xlane.xlu0 %2230
      %v2232 = vsel %vm584, %v2180, -inf
      %2233 = vmax.xlane.f32.xlu0 %v2232
      %v2234 = vpop.xlane.xlu0 %2233
      %v2235 = vsel %vm584, %v2185, -inf
      %2236 = vmax.xlane.f32.xlu0 %v2235
      %v2237 = vpop.xlane.xlu0 %2236
      %v2238 = vsel %vm584, %v2190, -inf
      %2239 = vmax.xlane.f32.xlu0 %v2238
      %v2240 = vpop.xlane.xlu0 %2239
      %v2241 = vsub.f32 %v1986, %v2195
      %v2242 = vsub.f32 %v1991, %v2198
      %v2243 = vsub.f32 %v1996, %v2201
      %v2244 = vsub.f32 %v2001, %v2204
      %v2245 = vsub.f32 %v2006, %v2207
      %v2246 = vsub.f32 %v2011, %v2210
      %v2247 = vsub.f32 %v2016, %v2213
      %v2248 = vsub.f32 %v2021, %v2216
      %v2249 = vsub.f32 %v2155, %v2219
      %v2250 = vsub.f32 %v2160, %v2222
      %v2251 = vsub.f32 %v2165, %v2225
      %v2252 = vsub.f32 %v2170, %v2228
      %v2253 = vsub.f32 %v2175, %v2231
      %v2254 = vsub.f32 %v2180, %v2234
      %v2255 = vsub.f32 %v2185, %v2237
      %v2256 = vsub.f32 %v2190, %v2240
      %v2257 = vmul.f32 %v2241, 1.442695
      %v2258 = vpow.pop %v2257
      %v2259 = vmul.f32 %v2242, 1.442695
      %v2260 = vpow.pop %v2259
      %v2261 = vmul.f32 %v2243, 1.442695
      %v2262 = vpow.pop %v2261
      %v2263 = vmul.f32 %v2244, 1.442695
      %v2264 = vpow.pop %v2263
      %v2265 = vmul.f32 %v2245, 1.442695
      %v2266 = vpow.pop %v2265
      %v2267 = vmul.f32 %v2246, 1.442695
      %v2268 = vpow.pop %v2267
      %v2269 = vmul.f32 %v2247, 1.442695
      %v2270 = vpow.pop %v2269
      %v2271 = vmul.f32 %v2248, 1.442695
      %v2272 = vpow.pop %v2271
      %v2273 = vmul.f32 %v2249, 1.442695
      %v2274 = vpow.pop %v2273
      %v2275 = vmul.f32 %v2250, 1.442695
      %v2276 = vpow.pop %v2275
      %v2277 = vmul.f32 %v2251, 1.442695
      %v2278 = vpow.pop %v2277
      %v2279 = vmul.f32 %v2252, 1.442695
      %v2280 = vpow.pop %v2279
      %v2281 = vmul.f32 %v2253, 1.442695
      %v2282 = vpow.pop %v2281
      %v2283 = vmul.f32 %v2254, 1.442695
      %v2284 = vpow.pop %v2283
      %v2285 = vmul.f32 %v2255, 1.442695
      %v2286 = vpow.pop %v2285
      %v2287 = vmul.f32 %v2256, 1.442695
      %v2288 = vpow.pop %v2287
      %v2289 = vsel %vm584, %v2258, 0.0
      %2290 = vadd.xlane.f32.xlu0 %v2289
      %v2291 = vpop.xlane.xlu0 %2290
      %v2292 = vsel %vm584, %v2260, 0.0
      %2293 = vadd.xlane.f32.xlu0 %v2292
      %v2294 = vpop.xlane.xlu0 %2293
      %v2295 = vsel %vm584, %v2262, 0.0
      %2296 = vadd.xlane.f32.xlu0 %v2295
      %v2297 = vpop.xlane.xlu0 %2296
      %v2298 = vsel %vm584, %v2264, 0.0
      %2299 = vadd.xlane.f32.xlu0 %v2298
      %v2300 = vpop.xlane.xlu0 %2299
      %v2301 = vsel %vm584, %v2266, 0.0
      %2302 = vadd.xlane.f32.xlu0 %v2301
      %v2303 = vpop.xlane.xlu0 %2302
      %v2304 = vsel %vm584, %v2268, 0.0
      %2305 = vadd.xlane.f32.xlu0 %v2304
      %v2306 = vpop.xlane.xlu0 %2305
      %v2307 = vsel %vm584, %v2270, 0.0
      %2308 = vadd.xlane.f32.xlu0 %v2307
      %v2309 = vpop.xlane.xlu0 %2308
      %v2310 = vsel %vm584, %v2272, 0.0
      %2311 = vadd.xlane.f32.xlu0 %v2310
      %v2312 = vpop.xlane.xlu0 %2311
      %v2313 = vsel %vm584, %v2274, 0.0
      %2314 = vadd.xlane.f32.xlu0 %v2313
      %v2315 = vpop.xlane.xlu0 %2314
      %v2316 = vsel %vm584, %v2276, 0.0
      %2317 = vadd.xlane.f32.xlu0 %v2316
      %v2318 = vpop.xlane.xlu0 %2317
      %v2319 = vsel %vm584, %v2278, 0.0
      %2320 = vadd.xlane.f32.xlu0 %v2319
      %v2321 = vpop.xlane.xlu0 %2320
      %v2322 = vsel %vm584, %v2280, 0.0
      %2323 = vadd.xlane.f32.xlu0 %v2322
      %v2324 = vpop.xlane.xlu0 %2323
      %v2325 = vsel %vm584, %v2282, 0.0
      %2326 = vadd.xlane.f32.xlu0 %v2325
      %v2327 = vpop.xlane.xlu0 %2326
      %v2328 = vsel %vm584, %v2284, 0.0
      %2329 = vadd.xlane.f32.xlu0 %v2328
      %v2330 = vpop.xlane.xlu0 %2329
      %v2331 = vsel %vm584, %v2286, 0.0
      %2332 = vadd.xlane.f32.xlu0 %v2331
      %v2333 = vpop.xlane.xlu0 %2332
      %v2334 = vsel %vm584, %v2288, 0.0
      %2335 = vadd.xlane.f32.xlu0 %v2334
      %v2336 = vpop.xlane.xlu0 %2335
      %v2337 = vrcp.pop %v2291
      %v2338 = vrcp.pop %v2294
      %v2339 = vrcp.pop %v2297
      %v2340 = vrcp.pop %v2300
      %v2341 = vrcp.pop %v2303
      %v2342 = vrcp.pop %v2306
      %v2343 = vrcp.pop %v2309
      %v2344 = vrcp.pop %v2312
      %v2345 = vrcp.pop %v2315
      %v2346 = vrcp.pop %v2318
      %v2347 = vrcp.pop %v2321
      %v2348 = vrcp.pop %v2324
      %v2349 = vrcp.pop %v2327
      %v2350 = vrcp.pop %v2330
      %v2351 = vrcp.pop %v2333
      %v2352 = vrcp.pop %v2336
      %v2353 = vmul.f32 %v2258, %v2337
      %v2354 = vmul.f32 %v2260, %v2338
      %v2355 = vmul.f32 %v2262, %v2339
      %v2356 = vmul.f32 %v2264, %v2340
      %v2357 = vmul.f32 %v2266, %v2341
      %v2358 = vmul.f32 %v2268, %v2342
      %v2359 = vmul.f32 %v2270, %v2343
      %v2360 = vmul.f32 %v2272, %v2344
      %v2361 = vmul.f32 %v2274, %v2345
      %v2362 = vmul.f32 %v2276, %v2346
      %v2363 = vmul.f32 %v2278, %v2347
      %v2364 = vmul.f32 %v2280, %v2348
      %v2365 = vmul.f32 %v2282, %v2349
      %v2366 = vmul.f32 %v2284, %v2350
      %v2367 = vmul.f32 %v2286, %v2351
      %v2368 = vmul.f32 %v2288, %v2352
      %2369 = vrot.lane.b32.xlu0 %v261, 112
      %v2370 = vpop.permute.xlu0 %2369
      %2371 = vrot.lane.b32.xlu0 %v262, 112
      %v2372 = vpop.permute.xlu0 %2371
      %2373 = vrot.lane.b32.xlu0 %v263, 112
      %v2374 = vpop.permute.xlu0 %2373
      %2375 = vrot.lane.b32.xlu0 %v264, 112
      %v2376 = vpop.permute.xlu0 %2375
      %2377 = vrot.lane.b32.xlu0 %v265, 112
      %v2378 = vpop.permute.xlu0 %2377
      %2379 = vrot.lane.b32.xlu0 %v266, 112
      %v2380 = vpop.permute.xlu0 %2379
      %2381 = vrot.lane.b32.xlu0 %v267, 112
      %v2382 = vpop.permute.xlu0 %2381
      %2383 = vrot.lane.b32.xlu0 %v268, 112
      %v2384 = vpop.permute.xlu0 %2383
      %v2394 = vsel %vm584, %v2353, 0
      %v2397 = vsel %vm584, %v2354, 0
      %v2400 = vsel %vm584, %v2355, 0
      %v2403 = vsel %vm584, %v2356, 0
      %v2406 = vsel %vm584, %v2357, 0
      %v2409 = vsel %vm584, %v2358, 0
      %v2412 = vsel %vm584, %v2359, 0
      %v2415 = vsel %vm584, %v2360, 0
      %2417 = vmatprep.subr.mxu0 0.0
      %2418 = vmatpush1.msra.mxu0 %v2370
      %2419 = vmatprep.subr.mxu0 0.0
      %2420 = vmatpush1.msra.mxu0 %v2372
      %2421 = vmatprep.subr.mxu0 0.0
      %2422 = vmatpush1.msra.mxu0 %v2374
      %2423 = vmatprep.subr.mxu0 0.0
      %2424 = vmatpush1.msra.mxu0 %v2376
      %2425 = vmatprep.subr.mxu0 0.0
      %2426 = vmatpush1.msra.mxu0 %v2378
      %2427 = vmatprep.subr.mxu0 0.0
      %2428 = vmatpush1.msra.mxu0 %v2380
      %2429 = vmatprep.subr.mxu0 0.0
      %2430 = vmatpush1.msra.mxu0 %v2382
      %2431 = vmatprep.subr.mxu0 0.0
      %2432 = vmatpush1.msra.mxu0 %v2384
      %2433 = vmatprep.subr.mxu0 0.0
      %2434 = vmatpush1.msra.mxu0 0.0
      %2435 = vmatprep.subr.mxu0 0.0
      %2436 = vmatpush1.msra.mxu0 0.0
      %2437 = vmatprep.subr.mxu0 0.0
      %2438 = vmatpush1.msra.mxu0 0.0
      %2439 = vmatprep.subr.mxu0 0.0
      %2440 = vmatpush1.msra.mxu0 0.0
      %2441 = vmatprep.subr.mxu0 0.0
      %2442 = vmatpush1.msra.mxu0 0.0
      %2443 = vmatprep.subr.mxu0 0.0
      %2444 = vmatpush1.msra.mxu0 0.0
      %2445 = vmatprep.subr.mxu0 0.0
      %2446 = vmatpush1.msra.mxu0 0.0
      %2447 = vmatprep.subr.mxu0 0.0
      %2448 = vmatpush1.msra.mxu0 0.0
      %2449 = vmatprep.subr.mxu0 0.0
      %2450 = vmatpush1.msra.mxu0 0.0
      %2451 = vmatprep.subr.mxu0 0.0
      %2452 = vmatpush1.msra.mxu0 0.0
      %2453 = vmatprep.subr.mxu0 0.0
      %2454 = vmatpush1.msra.mxu0 0.0
      %2455 = vmatprep.subr.mxu0 0.0
      %2456 = vmatpush1.msra.mxu0 0.0
      %2457 = vmatprep.subr.mxu0 0.0
      %2458 = vmatpush1.msra.mxu0 0.0
      %2459 = vmatprep.subr.mxu0 0.0
      %2460 = vmatpush1.msra.mxu0 0.0
      %2461 = vmatprep.subr.mxu0 0.0
      %2462 = vmatpush1.msra.mxu0 0.0
      %2463 = vmatprep.subr.mxu0 0.0
      %2464 = vmatpush1.msra.mxu0 0.0
      %2465 = vmatprep.subr.mxu0 0.0
      %2466 = vmatpush1.msra.mxu0 0.0
      %2467 = vmatprep.subr.mxu0 0.0
      %2468 = vmatpush1.msra.mxu0 0.0
      %2469 = vmatprep.subr.mxu0 0.0
      %2470 = vmatpush1.msra.mxu0 0.0
      %2471 = vmatprep.subr.mxu0 0.0
      %2472 = vmatpush1.msra.mxu0 0.0
      %2473 = vmatprep.subr.mxu0 0.0
      %2474 = vmatpush1.msra.mxu0 0.0
      %2475 = vmatprep.subr.mxu0 0.0
      %2476 = vmatpush1.msra.mxu0 0.0
      %2477 = vmatprep.subr.mxu0 0.0
      %2478 = vmatpush1.msra.mxu0 0.0
      %2479 = vmatprep.subr.mxu0 0.0
      %2480 = vmatpush1.msra.mxu0 0.0
      %2481 = vmatprep.mubr.f32.mxu0 0.0
      %2482 = vmatmul.mubr.f32.gmra.mrb[0].mxu0 %v2394
      %v2483 = vpop.f32.mrb[0].mxu0
      %v2484 = vadd.f32 0.0, %v2483
      %v2485 = vpop.f32.mrb[0].mxu0
      %2486 = vmatprep.mubr.f32.mxu0 0.0
      %2487 = vmatmul.mubr.f32.gmra.mrb[0].mxu0 %v2397
      %v2488 = vpop.f32.mrb[0].mxu0
      %v2489 = vadd.f32 0.0, %v2488
      %v2490 = vpop.f32.mrb[0].mxu0
      %2491 = vmatprep.mubr.f32.mxu0 0.0
      %2492 = vmatmul.mubr.f32.gmra.mrb[0].mxu0 %v2400
      %v2493 = vpop.f32.mrb[0].mxu0
      %v2494 = vadd.f32 0.0, %v2493
      %v2495 = vpop.f32.mrb[0].mxu0
      %2496 = vmatprep.mubr.f32.mxu0 0.0
      %2497 = vmatmul.mubr.f32.gmra.mrb[0].mxu0 %v2403
      %v2498 = vpop.f32.mrb[0].mxu0
      %v2499 = vadd.f32 0.0, %v2498
      %v2500 = vpop.f32.mrb[0].mxu0
      %2501 = vmatprep.mubr.f32.mxu0 0.0
      %2502 = vmatmul.mubr.f32.gmra.mrb[0].mxu0 %v2406
      %v2503 = vpop.f32.mrb[0].mxu0
      %v2504 = vadd.f32 0.0, %v2503
      %v2505 = vpop.f32.mrb[0].mxu0
      %2506 = vmatprep.mubr.f32.mxu0 0.0
      %2507 = vmatmul.mubr.f32.gmra.mrb[0].mxu0 %v2409
      %v2508 = vpop.f32.mrb[0].mxu0
      %v2509 = vadd.f32 0.0, %v2508
      %v2510 = vpop.f32.mrb[0].mxu0
      %2511 = vmatprep.mubr.f32.mxu0 0.0
      %2512 = vmatmul.mubr.f32.gmra.mrb[0].mxu0 %v2412
      %v2513 = vpop.f32.mrb[0].mxu0
      %v2514 = vadd.f32 0.0, %v2513
      %v2515 = vpop.f32.mrb[0].mxu0
      %2516 = vmatprep.mubr.f32.mxu0 0.0
      %2517 = vmatmul.mubr.f32.gmra.mrb[0].mxu0 %v2415
      %v2518 = vpop.f32.mrb[0].mxu0
      %v2519 = vadd.f32 0.0, %v2518
      %v2520 = vpop.f32.mrb[0].mxu0
      %2521 = vdwg.mxu0
      %2522 = vrot.lane.b32.xlu0 %v269, 112
      %v2523 = vpop.permute.xlu0 %2522
      %2524 = vrot.lane.b32.xlu0 %v270, 112
      %v2525 = vpop.permute.xlu0 %2524
      %2526 = vrot.lane.b32.xlu0 %v271, 112
      %v2527 = vpop.permute.xlu0 %2526
      %2528 = vrot.lane.b32.xlu0 %v272, 112
      %v2529 = vpop.permute.xlu0 %2528
      %2530 = vrot.lane.b32.xlu0 %v273, 112
      %v2531 = vpop.permute.xlu0 %2530
      %2532 = vrot.lane.b32.xlu0 %v274, 112
      %v2533 = vpop.permute.xlu0 %2532
      %2534 = vrot.lane.b32.xlu0 %v275, 112
      %v2535 = vpop.permute.xlu0 %2534
      %2536 = vrot.lane.b32.xlu0 %v276, 112
      %v2537 = vpop.permute.xlu0 %2536
      %v2547 = vsel %vm584, %v2361, 0
      %v2550 = vsel %vm584, %v2362, 0
      %v2553 = vsel %vm584, %v2363, 0
      %v2556 = vsel %vm584, %v2364, 0
      %v2559 = vsel %vm584, %v2365, 0
      %v2562 = vsel %vm584, %v2366, 0
      %v2565 = vsel %vm584, %v2367, 0
      %v2568 = vsel %vm584, %v2368, 0
      %2570 = vmatprep.subr.mxu0 0.0
      %2571 = vmatpush1.msra.mxu0 %v2523
      %2572 = vmatprep.subr.mxu0 0.0
      %2573 = vmatpush1.msra.mxu0 %v2525
      %2574 = vmatprep.subr.mxu0 0.0
      %2575 = vmatpush1.msra.mxu0 %v2527
      %2576 = vmatprep.subr.mxu0 0.0
      %2577 = vmatpush1.msra.mxu0 %v2529
      %2578 = vmatprep.subr.mxu0 0.0
      %2579 = vmatpush1.msra.mxu0 %v2531
      %2580 = vmatprep.subr.mxu0 0.0
      %2581 = vmatpush1.msra.mxu0 %v2533
      %2582 = vmatprep.subr.mxu0 0.0
      %2583 = vmatpush1.msra.mxu0 %v2535
      %2584 = vmatprep.subr.mxu0 0.0
      %2585 = vmatpush1.msra.mxu0 %v2537
      %2586 = vmatprep.subr.mxu0 0.0
      %2587 = vmatpush1.msra.mxu0 0.0
      %2588 = vmatprep.subr.mxu0 0.0
      %2589 = vmatpush1.msra.mxu0 0.0
      %2590 = vmatprep.subr.mxu0 0.0
      %2591 = vmatpush1.msra.mxu0 0.0
      %2592 = vmatprep.subr.mxu0 0.0
      %2593 = vmatpush1.msra.mxu0 0.0
      %2594 = vmatprep.subr.mxu0 0.0
      %2595 = vmatpush1.msra.mxu0 0.0
      %2596 = vmatprep.subr.mxu0 0.0
      %2597 = vmatpush1.msra.mxu0 0.0
      %2598 = vmatprep.subr.mxu0 0.0
      %2599 = vmatpush1.msra.mxu0 0.0
      %2600 = vmatprep.subr.mxu0 0.0
      %2601 = vmatpush1.msra.mxu0 0.0
      %2602 = vmatprep.subr.mxu0 0.0
      %2603 = vmatpush1.msra.mxu0 0.0
      %2604 = vmatprep.subr.mxu0 0.0
      %2605 = vmatpush1.msra.mxu0 0.0
      %2606 = vmatprep.subr.mxu0 0.0
      %2607 = vmatpush1.msra.mxu0 0.0
      %2608 = vmatprep.subr.mxu0 0.0
      %2609 = vmatpush1.msra.mxu0 0.0
      %2610 = vmatprep.subr.mxu0 0.0
      %2611 = vmatpush1.msra.mxu0 0.0
      %2612 = vmatprep.subr.mxu0 0.0
      %2613 = vmatpush1.msra.mxu0 0.0
      %2614 = vmatprep.subr.mxu0 0.0
      %2615 = vmatpush1.msra.mxu0 0.0
      %2616 = vmatprep.subr.mxu0 0.0
      %2617 = vmatpush1.msra.mxu0 0.0
      %2618 = vmatprep.subr.mxu0 0.0
      %2619 = vmatpush1.msra.mxu0 0.0
      %2620 = vmatprep.subr.mxu0 0.0
      %2621 = vmatpush1.msra.mxu0 0.0
      %2622 = vmatprep.subr.mxu0 0.0
      %2623 = vmatpush1.msra.mxu0 0.0
      %2624 = vmatprep.subr.mxu0 0.0
      %2625 = vmatpush1.msra.mxu0 0.0
      %2626 = vmatprep.subr.mxu0 0.0
      %2627 = vmatpush1.msra.mxu0 0.0
      %2628 = vmatprep.subr.mxu0 0.0
      %2629 = vmatpush1.msra.mxu0 0.0
      %2630 = vmatprep.subr.mxu0 0.0
      %2631 = vmatpush1.msra.mxu0 0.0
      %2632 = vmatprep.subr.mxu0 0.0
      %2633 = vmatpush1.msra.mxu0 0.0
      %2634 = vmatprep.mubr.f32.mxu0 0.0
      %2635 = vmatmul.mubr.f32.gmra.mrb[0].mxu0 %v2547
      %v2636 = vpop.f32.mrb[0].mxu0
      %v2637 = vadd.f32 0.0, %v2636
      %v2638 = vpop.f32.mrb[0].mxu0
      %2639 = vmatprep.mubr.f32.mxu0 0.0
      %2640 = vmatmul.mubr.f32.gmra.mrb[0].mxu0 %v2550
      %v2641 = vpop.f32.mrb[0].mxu0
      %v2642 = vadd.f32 0.0, %v2641
      %v2643 = vpop.f32.mrb[0].mxu0
      %2644 = vmatprep.mubr.f32.mxu0 0.0
      %2645 = vmatmul.mubr.f32.gmra.mrb[0].mxu0 %v2553
      %v2646 = vpop.f32.mrb[0].mxu0
      %v2647 = vadd.f32 0.0, %v2646
      %v2648 = vpop.f32.mrb[0].mxu0
      %2649 = vmatprep.mubr.f32.mxu0 0.0
      %2650 = vmatmul.mubr.f32.gmra.mrb[0].mxu0 %v2556
      %v2651 = vpop.f32.mrb[0].mxu0
      %v2652 = vadd.f32 0.0, %v2651
      %v2653 = vpop.f32.mrb[0].mxu0
      %2654 = vmatprep.mubr.f32.mxu0 0.0
      %2655 = vmatmul.mubr.f32.gmra.mrb[0].mxu0 %v2559
      %v2656 = vpop.f32.mrb[0].mxu0
      %v2657 = vadd.f32 0.0, %v2656
      %v2658 = vpop.f32.mrb[0].mxu0
      %2659 = vmatprep.mubr.f32.mxu0 0.0
      %2660 = vmatmul.mubr.f32.gmra.mrb[0].mxu0 %v2562
      %v2661 = vpop.f32.mrb[0].mxu0
      %v2662 = vadd.f32 0.0, %v2661
      %v2663 = vpop.f32.mrb[0].mxu0
      %2664 = vmatprep.mubr.f32.mxu0 0.0
      %2665 = vmatmul.mubr.f32.gmra.mrb[0].mxu0 %v2565
      %v2666 = vpop.f32.mrb[0].mxu0
      %v2667 = vadd.f32 0.0, %v2666
      %v2668 = vpop.f32.mrb[0].mxu0
      %2669 = vmatprep.mubr.f32.mxu0 0.0
      %2670 = vmatmul.mubr.f32.gmra.mrb[0].mxu0 %v2568
      %v2671 = vpop.f32.mrb[0].mxu0
      %v2672 = vadd.f32 0.0, %v2671
      %v2673 = vpop.f32.mrb[0].mxu0
      %2674 = vdwg.mxu0
      %2675 = vrot.lane.b32.xlu0 %v229, 104
      %v2676 = vpop.permute.xlu0 %2675
      %2677 = vrot.lane.b32.xlu0 %v230, 104
      %v2678 = vpop.permute.xlu0 %2677
      %2679 = vrot.lane.b32.xlu0 %v231, 104
      %v2680 = vpop.permute.xlu0 %2679
      %2681 = vrot.lane.b32.xlu0 %v232, 104
      %v2682 = vpop.permute.xlu0 %2681
      %2683 = vrot.lane.b32.xlu0 %v233, 104
      %v2684 = vpop.permute.xlu0 %2683
      %2685 = vrot.lane.b32.xlu0 %v234, 104
      %v2686 = vpop.permute.xlu0 %2685
      %2687 = vrot.lane.b32.xlu0 %v235, 104
      %v2688 = vpop.permute.xlu0 %2687
      %2689 = vrot.lane.b32.xlu0 %v236, 104
      %v2690 = vpop.permute.xlu0 %2689
      %2691 = vrot.lane.b32.xlu0 %v245, 104
      %v2692 = vpop.permute.xlu0 %2691
      %2693 = vrot.lane.b32.xlu0 %v246, 104
      %v2694 = vpop.permute.xlu0 %2693
      %2695 = vrot.lane.b32.xlu0 %v247, 104
      %v2696 = vpop.permute.xlu0 %2695
      %2697 = vrot.lane.b32.xlu0 %v248, 104
      %v2698 = vpop.permute.xlu0 %2697
      %2699 = vrot.lane.b32.xlu0 %v249, 104
      %v2700 = vpop.permute.xlu0 %2699
      %2701 = vrot.lane.b32.xlu0 %v250, 104
      %v2702 = vpop.permute.xlu0 %2701
      %2703 = vrot.lane.b32.xlu0 %v251, 104
      %v2704 = vpop.permute.xlu0 %2703
      %2705 = vrot.lane.b32.xlu0 %v252, 104
      %v2706 = vpop.permute.xlu0 %2705
      %v2707 = vsel %vm277, %v2676, 0
      %v2709 = vsel %vm277, %v2678, 0
      %v2711 = vsel %vm277, %v2680, 0
      %v2713 = vsel %vm277, %v2682, 0
      %v2715 = vsel %vm277, %v2684, 0
      %v2717 = vsel %vm277, %v2686, 0
      %v2719 = vsel %vm277, %v2688, 0
      %v2721 = vsel %vm277, %v2690, 0
      %v2723 = vsel %vm277, %v2692, 0
      %v2725 = vsel %vm277, %v2694, 0
      %v2727 = vsel %vm277, %v2696, 0
      %v2729 = vsel %vm277, %v2698, 0
      %v2731 = vsel %vm277, %v2700, 0
      %v2733 = vsel %vm277, %v2702, 0
      %v2735 = vsel %vm277, %v2704, 0
      %v2737 = vsel %vm277, %v2706, 0
      %2739 = vmatprep.subr.mxu0 0.0
      %2740 = vmatpush1.xpose.msra.mxu0 %v2723
      %2741 = vmatprep.subr.mxu0 0.0
      %2742 = vmatpush1.xpose.msra.mxu0 %v2725
      %2743 = vmatprep.subr.mxu0 0.0
      %2744 = vmatpush1.xpose.msra.mxu0 %v2727
      %2745 = vmatprep.subr.mxu0 0.0
      %2746 = vmatpush1.xpose.msra.mxu0 %v2729
      %2747 = vmatprep.subr.mxu0 0.0
      %2748 = vmatpush1.xpose.msra.mxu0 %v2731
      %2749 = vmatprep.subr.mxu0 0.0
      %2750 = vmatpush1.xpose.msra.mxu0 %v2733
      %2751 = vmatprep.subr.mxu0 0.0
      %2752 = vmatpush1.xpose.msra.mxu0 %v2735
      %2753 = vmatprep.subr.mxu0 0.0
      %2754 = vmatpush1.xpose.msra.mxu0 %v2737
      %2755 = vmatprep.subr.mxu0 0.0
      %2756 = vmatpush1.xpose.msra.mxu0 0.0
      %2757 = vmatprep.subr.mxu0 0.0
      %2758 = vmatpush1.xpose.msra.mxu0 0.0
      %2759 = vmatprep.subr.mxu0 0.0
      %2760 = vmatpush1.xpose.msra.mxu0 0.0
      %2761 = vmatprep.subr.mxu0 0.0
      %2762 = vmatpush1.xpose.msra.mxu0 0.0
      %2763 = vmatprep.subr.mxu0 0.0
      %2764 = vmatpush1.xpose.msra.mxu0 0.0
      %2765 = vmatprep.subr.mxu0 0.0
      %2766 = vmatpush1.xpose.msra.mxu0 0.0
      %2767 = vmatprep.subr.mxu0 0.0
      %2768 = vmatpush1.xpose.msra.mxu0 0.0
      %2769 = vmatprep.subr.mxu0 0.0
      %2770 = vmatpush1.xpose.msra.mxu0 0.0
      %2771 = vmatprep.subr.mxu0 0.0
      %2772 = vmatpush1.xpose.msra.mxu0 0.0
      %2773 = vmatprep.subr.mxu0 0.0
      %2774 = vmatpush1.xpose.msra.mxu0 0.0
      %2775 = vmatprep.subr.mxu0 0.0
      %2776 = vmatpush1.xpose.msra.mxu0 0.0
      %2777 = vmatprep.subr.mxu0 0.0
      %2778 = vmatpush1.xpose.msra.mxu0 0.0
      %2779 = vmatprep.subr.mxu0 0.0
      %2780 = vmatpush1.xpose.msra.mxu0 0.0
      %2781 = vmatprep.subr.mxu0 0.0
      %2782 = vmatpush1.xpose.msra.mxu0 0.0
      %2783 = vmatprep.subr.mxu0 0.0
      %2784 = vmatpush1.xpose.msra.mxu0 0.0
      %2785 = vmatprep.subr.mxu0 0.0
      %2786 = vmatpush1.xpose.msra.mxu0 0.0
      %2787 = vmatprep.subr.mxu0 0.0
      %2788 = vmatpush1.xpose.msra.mxu0 0.0
      %2789 = vmatprep.subr.mxu0 0.0
      %2790 = vmatpush1.xpose.msra.mxu0 0.0
      %2791 = vmatprep.subr.mxu0 0.0
      %2792 = vmatpush1.xpose.msra.mxu0 0.0
      %2793 = vmatprep.subr.mxu0 0.0
      %2794 = vmatpush1.xpose.msra.mxu0 0.0
      %2795 = vmatprep.subr.mxu0 0.0
      %2796 = vmatpush1.xpose.msra.mxu0 0.0
      %2797 = vmatprep.subr.mxu0 0.0
      %2798 = vmatpush1.xpose.msra.mxu0 0.0
      %2799 = vmatprep.subr.mxu0 0.0
      %2800 = vmatpush1.xpose.msra.mxu0 0.0
      %2801 = vmatprep.subr.mxu0 0.0
      %2802 = vmatpush1.xpose.msra.mxu0 0.0
      %2803 = vmatprep.mubr.f32.mxu0 0.0
      %2804 = vmatmul.mubr.f32.gmra.mrb[0].mxu0 %v2707
      %v2805 = vpop.f32.mrb[0].mxu0
      %v2806 = vadd.f32 0.0, %v2805
      %v2807 = vpop.f32.mrb[0].mxu0
      %2808 = vmatprep.mubr.f32.mxu0 0.0
      %2809 = vmatmul.mubr.f32.gmra.mrb[0].mxu0 %v2709
      %v2810 = vpop.f32.mrb[0].mxu0
      %v2811 = vadd.f32 0.0, %v2810
      %v2812 = vpop.f32.mrb[0].mxu0
      %2813 = vmatprep.mubr.f32.mxu0 0.0
      %2814 = vmatmul.mubr.f32.gmra.mrb[0].mxu0 %v2711
      %v2815 = vpop.f32.mrb[0].mxu0
      %v2816 = vadd.f32 0.0, %v2815
      %v2817 = vpop.f32.mrb[0].mxu0
      %2818 = vmatprep.mubr.f32.mxu0 0.0
      %2819 = vmatmul.mubr.f32.gmra.mrb[0].mxu0 %v2713
      %v2820 = vpop.f32.mrb[0].mxu0
      %v2821 = vadd.f32 0.0, %v2820
      %v2822 = vpop.f32.mrb[0].mxu0
      %2823 = vmatprep.mubr.f32.mxu0 0.0
      %2824 = vmatmul.mubr.f32.gmra.mrb[0].mxu0 %v2715
      %v2825 = vpop.f32.mrb[0].mxu0
      %v2826 = vadd.f32 0.0, %v2825
      %v2827 = vpop.f32.mrb[0].mxu0
      %2828 = vmatprep.mubr.f32.mxu0 0.0
      %2829 = vmatmul.mubr.f32.gmra.mrb[0].mxu0 %v2717
      %v2830 = vpop.f32.mrb[0].mxu0
      %v2831 = vadd.f32 0.0, %v2830
      %v2832 = vpop.f32.mrb[0].mxu0
      %2833 = vmatprep.mubr.f32.mxu0 0.0
      %2834 = vmatmul.mubr.f32.gmra.mrb[0].mxu0 %v2719
      %v2835 = vpop.f32.mrb[0].mxu0
      %v2836 = vadd.f32 0.0, %v2835
      %v2837 = vpop.f32.mrb[0].mxu0
      %2838 = vmatprep.mubr.f32.mxu0 0.0
      %2839 = vmatmul.mubr.f32.gmra.mrb[0].mxu0 %v2721
      %v2840 = vpop.f32.mrb[0].mxu0
      %v2841 = vadd.f32 0.0, %v2840
      %v2842 = vpop.f32.mrb[0].mxu0
      %2843 = vdwg.mxu0
      %2844 = vrot.lane.b32.xlu0 %v237, 104
      %v2845 = vpop.permute.xlu0 %2844
      %2846 = vrot.lane.b32.xlu0 %v238, 104
      %v2847 = vpop.permute.xlu0 %2846
      %2848 = vrot.lane.b32.xlu0 %v239, 104
      %v2849 = vpop.permute.xlu0 %2848
      %2850 = vrot.lane.b32.xlu0 %v240, 104
      %v2851 = vpop.permute.xlu0 %2850
      %2852 = vrot.lane.b32.xlu0 %v241, 104
      %v2853 = vpop.permute.xlu0 %2852
      %2854 = vrot.lane.b32.xlu0 %v242, 104
      %v2855 = vpop.permute.xlu0 %2854
      %2856 = vrot.lane.b32.xlu0 %v243, 104
      %v2857 = vpop.permute.xlu0 %2856
      %2858 = vrot.lane.b32.xlu0 %v244, 104
      %v2859 = vpop.permute.xlu0 %2858
      %2860 = vrot.lane.b32.xlu0 %v253, 104
      %v2861 = vpop.permute.xlu0 %2860
      %2862 = vrot.lane.b32.xlu0 %v254, 104
      %v2863 = vpop.permute.xlu0 %2862
      %2864 = vrot.lane.b32.xlu0 %v255, 104
      %v2865 = vpop.permute.xlu0 %2864
      %2866 = vrot.lane.b32.xlu0 %v256, 104
      %v2867 = vpop.permute.xlu0 %2866
      %2868 = vrot.lane.b32.xlu0 %v257, 104
      %v2869 = vpop.permute.xlu0 %2868
      %2870 = vrot.lane.b32.xlu0 %v258, 104
      %v2871 = vpop.permute.xlu0 %2870
      %2872 = vrot.lane.b32.xlu0 %v259, 104
      %v2873 = vpop.permute.xlu0 %2872
      %2874 = vrot.lane.b32.xlu0 %v260, 104
      %v2875 = vpop.permute.xlu0 %2874
      %v2876 = vsel %vm277, %v2845, 0
      %v2878 = vsel %vm277, %v2847, 0
      %v2880 = vsel %vm277, %v2849, 0
      %v2882 = vsel %vm277, %v2851, 0
      %v2884 = vsel %vm277, %v2853, 0
      %v2886 = vsel %vm277, %v2855, 0
      %v2888 = vsel %vm277, %v2857, 0
      %v2890 = vsel %vm277, %v2859, 0
      %v2892 = vsel %vm277, %v2861, 0
      %v2894 = vsel %vm277, %v2863, 0
      %v2896 = vsel %vm277, %v2865, 0
      %v2898 = vsel %vm277, %v2867, 0
      %v2900 = vsel %vm277, %v2869, 0
      %v2902 = vsel %vm277, %v2871, 0
      %v2904 = vsel %vm277, %v2873, 0
      %v2906 = vsel %vm277, %v2875, 0
      %2908 = vmatprep.subr.mxu0 0.0
      %2909 = vmatpush1.xpose.msra.mxu0 %v2892
      %2910 = vmatprep.subr.mxu0 0.0
      %2911 = vmatpush1.xpose.msra.mxu0 %v2894
      %2912 = vmatprep.subr.mxu0 0.0
      %2913 = vmatpush1.xpose.msra.mxu0 %v2896
      %2914 = vmatprep.subr.mxu0 0.0
      %2915 = vmatpush1.xpose.msra.mxu0 %v2898
      %2916 = vmatprep.subr.mxu0 0.0
      %2917 = vmatpush1.xpose.msra.mxu0 %v2900
      %2918 = vmatprep.subr.mxu0 0.0
      %2919 = vmatpush1.xpose.msra.mxu0 %v2902
      %2920 = vmatprep.subr.mxu0 0.0
      %2921 = vmatpush1.xpose.msra.mxu0 %v2904
      %2922 = vmatprep.subr.mxu0 0.0
      %2923 = vmatpush1.xpose.msra.mxu0 %v2906
      %2924 = vmatprep.subr.mxu0 0.0
      %2925 = vmatpush1.xpose.msra.mxu0 0.0
      %2926 = vmatprep.subr.mxu0 0.0
      %2927 = vmatpush1.xpose.msra.mxu0 0.0
      %2928 = vmatprep.subr.mxu0 0.0
      %2929 = vmatpush1.xpose.msra.mxu0 0.0
      %2930 = vmatprep.subr.mxu0 0.0
      %2931 = vmatpush1.xpose.msra.mxu0 0.0
      %2932 = vmatprep.subr.mxu0 0.0
      %2933 = vmatpush1.xpose.msra.mxu0 0.0
      %2934 = vmatprep.subr.mxu0 0.0
      %2935 = vmatpush1.xpose.msra.mxu0 0.0
      %2936 = vmatprep.subr.mxu0 0.0
      %2937 = vmatpush1.xpose.msra.mxu0 0.0
      %2938 = vmatprep.subr.mxu0 0.0
      %2939 = vmatpush1.xpose.msra.mxu0 0.0
      %2940 = vmatprep.subr.mxu0 0.0
      %2941 = vmatpush1.xpose.msra.mxu0 0.0
      %2942 = vmatprep.subr.mxu0 0.0
      %2943 = vmatpush1.xpose.msra.mxu0 0.0
      %2944 = vmatprep.subr.mxu0 0.0
      %2945 = vmatpush1.xpose.msra.mxu0 0.0
      %2946 = vmatprep.subr.mxu0 0.0
      %2947 = vmatpush1.xpose.msra.mxu0 0.0
      %2948 = vmatprep.subr.mxu0 0.0
      %2949 = vmatpush1.xpose.msra.mxu0 0.0
      %2950 = vmatprep.subr.mxu0 0.0
      %2951 = vmatpush1.xpose.msra.mxu0 0.0
      %2952 = vmatprep.subr.mxu0 0.0
      %2953 = vmatpush1.xpose.msra.mxu0 0.0
      %2954 = vmatprep.subr.mxu0 0.0
      %2955 = vmatpush1.xpose.msra.mxu0 0.0
      %2956 = vmatprep.subr.mxu0 0.0
      %2957 = vmatpush1.xpose.msra.mxu0 0.0
      %2958 = vmatprep.subr.mxu0 0.0
      %2959 = vmatpush1.xpose.msra.mxu0 0.0
      %2960 = vmatprep.subr.mxu0 0.0
      %2961 = vmatpush1.xpose.msra.mxu0 0.0
      %2962 = vmatprep.subr.mxu0 0.0
      %2963 = vmatpush1.xpose.msra.mxu0 0.0
      %2964 = vmatprep.subr.mxu0 0.0
      %2965 = vmatpush1.xpose.msra.mxu0 0.0
      %2966 = vmatprep.subr.mxu0 0.0
      %2967 = vmatpush1.xpose.msra.mxu0 0.0
      %2968 = vmatprep.subr.mxu0 0.0
      %2969 = vmatpush1.xpose.msra.mxu0 0.0
      %2970 = vmatprep.subr.mxu0 0.0
      %2971 = vmatpush1.xpose.msra.mxu0 0.0
      %2972 = vmatprep.mubr.f32.mxu0 0.0
      %2973 = vmatmul.mubr.f32.gmra.mrb[0].mxu0 %v2876
      %v2974 = vpop.f32.mrb[0].mxu0
      %v2975 = vadd.f32 0.0, %v2974
      %v2976 = vpop.f32.mrb[0].mxu0
      %2977 = vmatprep.mubr.f32.mxu0 0.0
      %2978 = vmatmul.mubr.f32.gmra.mrb[0].mxu0 %v2878
      %v2979 = vpop.f32.mrb[0].mxu0
      %v2980 = vadd.f32 0.0, %v2979
      %v2981 = vpop.f32.mrb[0].mxu0
      %2982 = vmatprep.mubr.f32.mxu0 0.0
      %2983 = vmatmul.mubr.f32.gmra.mrb[0].mxu0 %v2880
      %v2984 = vpop.f32.mrb[0].mxu0
      %v2985 = vadd.f32 0.0, %v2984
      %v2986 = vpop.f32.mrb[0].mxu0
      %2987 = vmatprep.mubr.f32.mxu0 0.0
      %2988 = vmatmul.mubr.f32.gmra.mrb[0].mxu0 %v2882
      %v2989 = vpop.f32.mrb[0].mxu0
      %v2990 = vadd.f32 0.0, %v2989
      %v2991 = vpop.f32.mrb[0].mxu0
      %2992 = vmatprep.mubr.f32.mxu0 0.0
      %2993 = vmatmul.mubr.f32.gmra.mrb[0].mxu0 %v2884
      %v2994 = vpop.f32.mrb[0].mxu0
      %v2995 = vadd.f32 0.0, %v2994
      %v2996 = vpop.f32.mrb[0].mxu0
      %2997 = vmatprep.mubr.f32.mxu0 0.0
      %2998 = vmatmul.mubr.f32.gmra.mrb[0].mxu0 %v2886
      %v2999 = vpop.f32.mrb[0].mxu0
      %v3000 = vadd.f32 0.0, %v2999
      %v3001 = vpop.f32.mrb[0].mxu0
      %3002 = vmatprep.mubr.f32.mxu0 0.0
      %3003 = vmatmul.mubr.f32.gmra.mrb[0].mxu0 %v2888
      %v3004 = vpop.f32.mrb[0].mxu0
      %v3005 = vadd.f32 0.0, %v3004
      %v3006 = vpop.f32.mrb[0].mxu0
      %3007 = vmatprep.mubr.f32.mxu0 0.0
      %3008 = vmatmul.mubr.f32.gmra.mrb[0].mxu0 %v2890
      %v3009 = vpop.f32.mrb[0].mxu0
      %v3010 = vadd.f32 0.0, %v3009
      %v3011 = vpop.f32.mrb[0].mxu0
      %3012 = vdwg.mxu0
      %v3013 = vsel %vm584, %v2806, -inf
      %3014 = vmax.xlane.f32.xlu0 %v3013
      %v3015 = vpop.xlane.xlu0 %3014
      %v3016 = vsel %vm584, %v2811, -inf
      %3017 = vmax.xlane.f32.xlu0 %v3016
      %v3018 = vpop.xlane.xlu0 %3017
      %v3019 = vsel %vm584, %v2816, -inf
      %3020 = vmax.xlane.f32.xlu0 %v3019
      %v3021 = vpop.xlane.xlu0 %3020
      %v3022 = vsel %vm584, %v2821, -inf
      %3023 = vmax.xlane.f32.xlu0 %v3022
      %v3024 = vpop.xlane.xlu0 %3023
      %v3025 = vsel %vm584, %v2826, -inf
      %3026 = vmax.xlane.f32.xlu0 %v3025
      %v3027 = vpop.xlane.xlu0 %3026
      %v3028 = vsel %vm584, %v2831, -inf
      %3029 = vmax.xlane.f32.xlu0 %v3028
      %v3030 = vpop.xlane.xlu0 %3029
      %v3031 = vsel %vm584, %v2836, -inf
      %3032 = vmax.xlane.f32.xlu0 %v3031
      %v3033 = vpop.xlane.xlu0 %3032
      %v3034 = vsel %vm584, %v2841, -inf
      %3035 = vmax.xlane.f32.xlu0 %v3034
      %v3036 = vpop.xlane.xlu0 %3035
      %v3037 = vsel %vm584, %v2975, -inf
      %3038 = vmax.xlane.f32.xlu0 %v3037
      %v3039 = vpop.xlane.xlu0 %3038
      %v3040 = vsel %vm584, %v2980, -inf
      %3041 = vmax.xlane.f32.xlu0 %v3040
      %v3042 = vpop.xlane.xlu0 %3041
      %v3043 = vsel %vm584, %v2985, -inf
      %3044 = vmax.xlane.f32.xlu0 %v3043
      %v3045 = vpop.xlane.xlu0 %3044
      %v3046 = vsel %vm584, %v2990, -inf
      %3047 = vmax.xlane.f32.xlu0 %v3046
      %v3048 = vpop.xlane.xlu0 %3047
      %v3049 = vsel %vm584, %v2995, -inf
      %3050 = vmax.xlane.f32.xlu0 %v3049
      %v3051 = vpop.xlane.xlu0 %3050
      %v3052 = vsel %vm584, %v3000, -inf
      %3053 = vmax.xlane.f32.xlu0 %v3052
      %v3054 = vpop.xlane.xlu0 %3053
      %v3055 = vsel %vm584, %v3005, -inf
      %3056 = vmax.xlane.f32.xlu0 %v3055
      %v3057 = vpop.xlane.xlu0 %3056
      %v3058 = vsel %vm584, %v3010, -inf
      %3059 = vmax.xlane.f32.xlu0 %v3058
      %v3060 = vpop.xlane.xlu0 %3059
      %v3061 = vsub.f32 %v2806, %v3015
      %v3062 = vsub.f32 %v2811, %v3018
      %v3063 = vsub.f32 %v2816, %v3021
      %v3064 = vsub.f32 %v2821, %v3024
      %v3065 = vsub.f32 %v2826, %v3027
      %v3066 = vsub.f32 %v2831, %v3030
      %v3067 = vsub.f32 %v2836, %v3033
      %v3068 = vsub.f32 %v2841, %v3036
      %v3069 = vsub.f32 %v2975, %v3039
      %v3070 = vsub.f32 %v2980, %v3042
      %v3071 = vsub.f32 %v2985, %v3045
      %v3072 = vsub.f32 %v2990, %v3048
      %v3073 = vsub.f32 %v2995, %v3051
      %v3074 = vsub.f32 %v3000, %v3054
      %v3075 = vsub.f32 %v3005, %v3057
      %v3076 = vsub.f32 %v3010, %v3060
      %v3077 = vmul.f32 %v3061, 1.442695
      %v3078 = vpow.pop %v3077
      %v3079 = vmul.f32 %v3062, 1.442695
      %v3080 = vpow.pop %v3079
      %v3081 = vmul.f32 %v3063, 1.442695
      %v3082 = vpow.pop %v3081
      %v3083 = vmul.f32 %v3064, 1.442695
      %v3084 = vpow.pop %v3083
      %v3085 = vmul.f32 %v3065, 1.442695
      %v3086 = vpow.pop %v3085
      %v3087 = vmul.f32 %v3066, 1.442695
      %v3088 = vpow.pop %v3087
      %v3089 = vmul.f32 %v3067, 1.442695
      %v3090 = vpow.pop %v3089
      %v3091 = vmul.f32 %v3068, 1.442695
      %v3092 = vpow.pop %v3091
      %v3093 = vmul.f32 %v3069, 1.442695
      %v3094 = vpow.pop %v3093
      %v3095 = vmul.f32 %v3070, 1.442695
      %v3096 = vpow.pop %v3095
      %v3097 = vmul.f32 %v3071, 1.442695
      %v3098 = vpow.pop %v3097
      %v3099 = vmul.f32 %v3072, 1.442695
      %v3100 = vpow.pop %v3099
      %v3101 = vmul.f32 %v3073, 1.442695
      %v3102 = vpow.pop %v3101
      %v3103 = vmul.f32 %v3074, 1.442695
      %v3104 = vpow.pop %v3103
      %v3105 = vmul.f32 %v3075, 1.442695
      %v3106 = vpow.pop %v3105
      %v3107 = vmul.f32 %v3076, 1.442695
      %v3108 = vpow.pop %v3107
      %v3109 = vsel %vm584, %v3078, 0.0
      %3110 = vadd.xlane.f32.xlu0 %v3109
      %v3111 = vpop.xlane.xlu0 %3110
      %v3112 = vsel %vm584, %v3080, 0.0
      %3113 = vadd.xlane.f32.xlu0 %v3112
      %v3114 = vpop.xlane.xlu0 %3113
      %v3115 = vsel %vm584, %v3082, 0.0
      %3116 = vadd.xlane.f32.xlu0 %v3115
      %v3117 = vpop.xlane.xlu0 %3116
      %v3118 = vsel %vm584, %v3084, 0.0
      %3119 = vadd.xlane.f32.xlu0 %v3118
      %v3120 = vpop.xlane.xlu0 %3119
      %v3121 = vsel %vm584, %v3086, 0.0
      %3122 = vadd.xlane.f32.xlu0 %v3121
      %v3123 = vpop.xlane.xlu0 %3122
      %v3124 = vsel %vm584, %v3088, 0.0
      %3125 = vadd.xlane.f32.xlu0 %v3124
      %v3126 = vpop.xlane.xlu0 %3125
      %v3127 = vsel %vm584, %v3090, 0.0
      %3128 = vadd.xlane.f32.xlu0 %v3127
      %v3129 = vpop.xlane.xlu0 %3128
      %v3130 = vsel %vm584, %v3092, 0.0
      %3131 = vadd.xlane.f32.xlu0 %v3130
      %v3132 = vpop.xlane.xlu0 %3131
      %v3133 = vsel %vm584, %v3094, 0.0
      %3134 = vadd.xlane.f32.xlu0 %v3133
      %v3135 = vpop.xlane.xlu0 %3134
      %v3136 = vsel %vm584, %v3096, 0.0
      %3137 = vadd.xlane.f32.xlu0 %v3136
      %v3138 = vpop.xlane.xlu0 %3137
      %v3139 = vsel %vm584, %v3098, 0.0
      %3140 = vadd.xlane.f32.xlu0 %v3139
      %v3141 = vpop.xlane.xlu0 %3140
      %v3142 = vsel %vm584, %v3100, 0.0
      %3143 = vadd.xlane.f32.xlu0 %v3142
      %v3144 = vpop.xlane.xlu0 %3143
      %v3145 = vsel %vm584, %v3102, 0.0
      %3146 = vadd.xlane.f32.xlu0 %v3145
      %v3147 = vpop.xlane.xlu0 %3146
      %v3148 = vsel %vm584, %v3104, 0.0
      %3149 = vadd.xlane.f32.xlu0 %v3148
      %v3150 = vpop.xlane.xlu0 %3149
      %v3151 = vsel %vm584, %v3106, 0.0
      %3152 = vadd.xlane.f32.xlu0 %v3151
      %v3153 = vpop.xlane.xlu0 %3152
      %v3154 = vsel %vm584, %v3108, 0.0
      %3155 = vadd.xlane.f32.xlu0 %v3154
      %v3156 = vpop.xlane.xlu0 %3155
      %v3157 = vrcp.pop %v3111
      %v3158 = vrcp.pop %v3114
      %v3159 = vrcp.pop %v3117
      %v3160 = vrcp.pop %v3120
      %v3161 = vrcp.pop %v3123
      %v3162 = vrcp.pop %v3126
      %v3163 = vrcp.pop %v3129
      %v3164 = vrcp.pop %v3132
      %v3165 = vrcp.pop %v3135
      %v3166 = vrcp.pop %v3138
      %v3167 = vrcp.pop %v3141
      %v3168 = vrcp.pop %v3144
      %v3169 = vrcp.pop %v3147
      %v3170 = vrcp.pop %v3150
      %v3171 = vrcp.pop %v3153
      %v3172 = vrcp.pop %v3156
      %v3173 = vmul.f32 %v3078, %v3157
      %v3174 = vmul.f32 %v3080, %v3158
      %v3175 = vmul.f32 %v3082, %v3159
      %v3176 = vmul.f32 %v3084, %v3160
      %v3177 = vmul.f32 %v3086, %v3161
      %v3178 = vmul.f32 %v3088, %v3162
      %v3179 = vmul.f32 %v3090, %v3163
      %v3180 = vmul.f32 %v3092, %v3164
      %v3181 = vmul.f32 %v3094, %v3165
      %v3182 = vmul.f32 %v3096, %v3166
      %v3183 = vmul.f32 %v3098, %v3167
      %v3184 = vmul.f32 %v3100, %v3168
      %v3185 = vmul.f32 %v3102, %v3169
      %v3186 = vmul.f32 %v3104, %v3170
      %v3187 = vmul.f32 %v3106, %v3171
      %v3188 = vmul.f32 %v3108, %v3172
      %3189 = vrot.lane.b32.xlu0 %v261, 104
      %v3190 = vpop.permute.xlu0 %3189
      %3191 = vrot.lane.b32.xlu0 %v262, 104
      %v3192 = vpop.permute.xlu0 %3191
      %3193 = vrot.lane.b32.xlu0 %v263, 104
      %v3194 = vpop.permute.xlu0 %3193
      %3195 = vrot.lane.b32.xlu0 %v264, 104
      %v3196 = vpop.permute.xlu0 %3195
      %3197 = vrot.lane.b32.xlu0 %v265, 104
      %v3198 = vpop.permute.xlu0 %3197
      %3199 = vrot.lane.b32.xlu0 %v266, 104
      %v3200 = vpop.permute.xlu0 %3199
      %3201 = vrot.lane.b32.xlu0 %v267, 104
      %v3202 = vpop.permute.xlu0 %3201
      %3203 = vrot.lane.b32.xlu0 %v268, 104
      %v3204 = vpop.permute.xlu0 %3203
      %v3214 = vsel %vm584, %v3173, 0
      %v3217 = vsel %vm584, %v3174, 0
      %v3220 = vsel %vm584, %v3175, 0
      %v3223 = vsel %vm584, %v3176, 0
      %v3226 = vsel %vm584, %v3177, 0
      %v3229 = vsel %vm584, %v3178, 0
      %v3232 = vsel %vm584, %v3179, 0
      %v3235 = vsel %vm584, %v3180, 0
      %3237 = vmatprep.subr.mxu0 0.0
      %3238 = vmatpush1.msra.mxu0 %v3190
      %3239 = vmatprep.subr.mxu0 0.0
      %3240 = vmatpush1.msra.mxu0 %v3192
      %3241 = vmatprep.subr.mxu0 0.0
      %3242 = vmatpush1.msra.mxu0 %v3194
      %3243 = vmatprep.subr.mxu0 0.0
      %3244 = vmatpush1.msra.mxu0 %v3196
      %3245 = vmatprep.subr.mxu0 0.0
      %3246 = vmatpush1.msra.mxu0 %v3198
      %3247 = vmatprep.subr.mxu0 0.0
      %3248 = vmatpush1.msra.mxu0 %v3200
      %3249 = vmatprep.subr.mxu0 0.0
      %3250 = vmatpush1.msra.mxu0 %v3202
      %3251 = vmatprep.subr.mxu0 0.0
      %3252 = vmatpush1.msra.mxu0 %v3204
      %3253 = vmatprep.subr.mxu0 0.0
      %3254 = vmatpush1.msra.mxu0 0.0
      %3255 = vmatprep.subr.mxu0 0.0
      %3256 = vmatpush1.msra.mxu0 0.0
      %3257 = vmatprep.subr.mxu0 0.0
      %3258 = vmatpush1.msra.mxu0 0.0
      %3259 = vmatprep.subr.mxu0 0.0
      %3260 = vmatpush1.msra.mxu0 0.0
      %3261 = vmatprep.subr.mxu0 0.0
      %3262 = vmatpush1.msra.mxu0 0.0
      %3263 = vmatprep.subr.mxu0 0.0
      %3264 = vmatpush1.msra.mxu0 0.0
      %3265 = vmatprep.subr.mxu0 0.0
      %3266 = vmatpush1.msra.mxu0 0.0
      %3267 = vmatprep.subr.mxu0 0.0
      %3268 = vmatpush1.msra.mxu0 0.0
      %3269 = vmatprep.subr.mxu0 0.0
      %3270 = vmatpush1.msra.mxu0 0.0
      %3271 = vmatprep.subr.mxu0 0.0
      %3272 = vmatpush1.msra.mxu0 0.0
      %3273 = vmatprep.subr.mxu0 0.0
      %3274 = vmatpush1.msra.mxu0 0.0
      %3275 = vmatprep.subr.mxu0 0.0
      %3276 = vmatpush1.msra.mxu0 0.0
      %3277 = vmatprep.subr.mxu0 0.0
      %3278 = vmatpush1.msra.mxu0 0.0
      %3279 = vmatprep.subr.mxu0 0.0
      %3280 = vmatpush1.msra.mxu0 0.0
      %3281 = vmatprep.subr.mxu0 0.0
      %3282 = vmatpush1.msra.mxu0 0.0
      %3283 = vmatprep.subr.mxu0 0.0
      %3284 = vmatpush1.msra.mxu0 0.0
      %3285 = vmatprep.subr.mxu0 0.0
      %3286 = vmatpush1.msra.mxu0 0.0
      %3287 = vmatprep.subr.mxu0 0.0
      %3288 = vmatpush1.msra.mxu0 0.0
      %3289 = vmatprep.subr.mxu0 0.0
      %3290 = vmatpush1.msra.mxu0 0.0
      %3291 = vmatprep.subr.mxu0 0.0
      %3292 = vmatpush1.msra.mxu0 0.0
      %3293 = vmatprep.subr.mxu0 0.0
      %3294 = vmatpush1.msra.mxu0 0.0
      %3295 = vmatprep.subr.mxu0 0.0
      %3296 = vmatpush1.msra.mxu0 0.0
      %3297 = vmatprep.subr.mxu0 0.0
      %3298 = vmatpush1.msra.mxu0 0.0
      %3299 = vmatprep.subr.mxu0 0.0
      %3300 = vmatpush1.msra.mxu0 0.0
      %3301 = vmatprep.mubr.f32.mxu0 0.0
      %3302 = vmatmul.mubr.f32.gmra.mrb[0].mxu0 %v3214
      %v3303 = vpop.f32.mrb[0].mxu0
      %v3304 = vadd.f32 0.0, %v3303
      %v3305 = vpop.f32.mrb[0].mxu0
      %3306 = vmatprep.mubr.f32.mxu0 0.0
      %3307 = vmatmul.mubr.f32.gmra.mrb[0].mxu0 %v3217
      %v3308 = vpop.f32.mrb[0].mxu0
      %v3309 = vadd.f32 0.0, %v3308
      %v3310 = vpop.f32.mrb[0].mxu0
      %3311 = vmatprep.mubr.f32.mxu0 0.0
      %3312 = vmatmul.mubr.f32.gmra.mrb[0].mxu0 %v3220
      %v3313 = vpop.f32.mrb[0].mxu0
      %v3314 = vadd.f32 0.0, %v3313
      %v3315 = vpop.f32.mrb[0].mxu0
      %3316 = vmatprep.mubr.f32.mxu0 0.0
      %3317 = vmatmul.mubr.f32.gmra.mrb[0].mxu0 %v3223
      %v3318 = vpop.f32.mrb[0].mxu0
      %v3319 = vadd.f32 0.0, %v3318
      %v3320 = vpop.f32.mrb[0].mxu0
      %3321 = vmatprep.mubr.f32.mxu0 0.0
      %3322 = vmatmul.mubr.f32.gmra.mrb[0].mxu0 %v3226
      %v3323 = vpop.f32.mrb[0].mxu0
      %v3324 = vadd.f32 0.0, %v3323
      %v3325 = vpop.f32.mrb[0].mxu0
      %3326 = vmatprep.mubr.f32.mxu0 0.0
      %3327 = vmatmul.mubr.f32.gmra.mrb[0].mxu0 %v3229
      %v3328 = vpop.f32.mrb[0].mxu0
      %v3329 = vadd.f32 0.0, %v3328
      %v3330 = vpop.f32.mrb[0].mxu0
      %3331 = vmatprep.mubr.f32.mxu0 0.0
      %3332 = vmatmul.mubr.f32.gmra.mrb[0].mxu0 %v3232
      %v3333 = vpop.f32.mrb[0].mxu0
      %v3334 = vadd.f32 0.0, %v3333
      %v3335 = vpop.f32.mrb[0].mxu0
      %3336 = vmatprep.mubr.f32.mxu0 0.0
      %3337 = vmatmul.mubr.f32.gmra.mrb[0].mxu0 %v3235
      %v3338 = vpop.f32.mrb[0].mxu0
      %v3339 = vadd.f32 0.0, %v3338
      %v3340 = vpop.f32.mrb[0].mxu0
      %3341 = vdwg.mxu0
      %3342 = vrot.lane.b32.xlu0 %v269, 104
      %v3343 = vpop.permute.xlu0 %3342
      %3344 = vrot.lane.b32.xlu0 %v270, 104
      %v3345 = vpop.permute.xlu0 %3344
      %3346 = vrot.lane.b32.xlu0 %v271, 104
      %v3347 = vpop.permute.xlu0 %3346
      %3348 = vrot.lane.b32.xlu0 %v272, 104
      %v3349 = vpop.permute.xlu0 %3348
      %3350 = vrot.lane.b32.xlu0 %v273, 104
      %v3351 = vpop.permute.xlu0 %3350
      %3352 = vrot.lane.b32.xlu0 %v274, 104
      %v3353 = vpop.permute.xlu0 %3352
      %3354 = vrot.lane.b32.xlu0 %v275, 104
      %v3355 = vpop.permute.xlu0 %3354
      %3356 = vrot.lane.b32.xlu0 %v276, 104
      %v3357 = vpop.permute.xlu0 %3356
      %v3367 = vsel %vm584, %v3181, 0
      %v3370 = vsel %vm584, %v3182, 0
      %v3373 = vsel %vm584, %v3183, 0
      %v3376 = vsel %vm584, %v3184, 0
      %v3379 = vsel %vm584, %v3185, 0
      %v3382 = vsel %vm584, %v3186, 0
      %v3385 = vsel %vm584, %v3187, 0
      %v3388 = vsel %vm584, %v3188, 0
      %3390 = vmatprep.subr.mxu0 0.0
      %3391 = vmatpush1.msra.mxu0 %v3343
      %3392 = vmatprep.subr.mxu0 0.0
      %3393 = vmatpush1.msra.mxu0 %v3345
      %3394 = vmatprep.subr.mxu0 0.0
      %3395 = vmatpush1.msra.mxu0 %v3347
      %3396 = vmatprep.subr.mxu0 0.0
      %3397 = vmatpush1.msra.mxu0 %v3349
      %3398 = vmatprep.subr.mxu0 0.0
      %3399 = vmatpush1.msra.mxu0 %v3351
      %3400 = vmatprep.subr.mxu0 0.0
      %3401 = vmatpush1.msra.mxu0 %v3353
      %3402 = vmatprep.subr.mxu0 0.0
      %3403 = vmatpush1.msra.mxu0 %v3355
      %3404 = vmatprep.subr.mxu0 0.0
      %3405 = vmatpush1.msra.mxu0 %v3357
      %3406 = vmatprep.subr.mxu0 0.0
      %3407 = vmatpush1.msra.mxu0 0.0
      %3408 = vmatprep.subr.mxu0 0.0
      %3409 = vmatpush1.msra.mxu0 0.0
      %3410 = vmatprep.subr.mxu0 0.0
      %3411 = vmatpush1.msra.mxu0 0.0
      %3412 = vmatprep.subr.mxu0 0.0
      %3413 = vmatpush1.msra.mxu0 0.0
      %3414 = vmatprep.subr.mxu0 0.0
      %3415 = vmatpush1.msra.mxu0 0.0
      %3416 = vmatprep.subr.mxu0 0.0
      %3417 = vmatpush1.msra.mxu0 0.0
      %3418 = vmatprep.subr.mxu0 0.0
      %3419 = vmatpush1.msra.mxu0 0.0
      %3420 = vmatprep.subr.mxu0 0.0
      %3421 = vmatpush1.msra.mxu0 0.0
      %3422 = vmatprep.subr.mxu0 0.0
      %3423 = vmatpush1.msra.mxu0 0.0
      %3424 = vmatprep.subr.mxu0 0.0
      %3425 = vmatpush1.msra.mxu0 0.0
      %3426 = vmatprep.subr.mxu0 0.0
      %3427 = vmatpush1.msra.mxu0 0.0
      %3428 = vmatprep.subr.mxu0 0.0
      %3429 = vmatpush1.msra.mxu0 0.0
      %3430 = vmatprep.subr.mxu0 0.0
      %3431 = vmatpush1.msra.mxu0 0.0
      %3432 = vmatprep.subr.mxu0 0.0
      %3433 = vmatpush1.msra.mxu0 0.0
      %3434 = vmatprep.subr.mxu0 0.0
      %3435 = vmatpush1.msra.mxu0 0.0
      %3436 = vmatprep.subr.mxu0 0.0
      %3437 = vmatpush1.msra.mxu0 0.0
      %3438 = vmatprep.subr.mxu0 0.0
      %3439 = vmatpush1.msra.mxu0 0.0
      %3440 = vmatprep.subr.mxu0 0.0
      %3441 = vmatpush1.msra.mxu0 0.0
      %3442 = vmatprep.subr.mxu0 0.0
      %3443 = vmatpush1.msra.mxu0 0.0
      %3444 = vmatprep.subr.mxu0 0.0
      %3445 = vmatpush1.msra.mxu0 0.0
      %3446 = vmatprep.subr.mxu0 0.0
      %3447 = vmatpush1.msra.mxu0 0.0
      %3448 = vmatprep.subr.mxu0 0.0
      %3449 = vmatpush1.msra.mxu0 0.0
      %3450 = vmatprep.subr.mxu0 0.0
      %3451 = vmatpush1.msra.mxu0 0.0
      %3452 = vmatprep.subr.mxu0 0.0
      %3453 = vmatpush1.msra.mxu0 0.0
      %3454 = vmatprep.mubr.f32.mxu0 0.0
      %3455 = vmatmul.mubr.f32.gmra.mrb[0].mxu0 %v3367
      %v3456 = vpop.f32.mrb[0].mxu0
      %v3457 = vadd.f32 0.0, %v3456
      %v3458 = vpop.f32.mrb[0].mxu0
      %3459 = vmatprep.mubr.f32.mxu0 0.0
      %3460 = vmatmul.mubr.f32.gmra.mrb[0].mxu0 %v3370
      %v3461 = vpop.f32.mrb[0].mxu0
      %v3462 = vadd.f32 0.0, %v3461
      %v3463 = vpop.f32.mrb[0].mxu0
      %3464 = vmatprep.mubr.f32.mxu0 0.0
      %3465 = vmatmul.mubr.f32.gmra.mrb[0].mxu0 %v3373
      %v3466 = vpop.f32.mrb[0].mxu0
      %v3467 = vadd.f32 0.0, %v3466
      %v3468 = vpop.f32.mrb[0].mxu0
      %3469 = vmatprep.mubr.f32.mxu0 0.0
      %3470 = vmatmul.mubr.f32.gmra.mrb[0].mxu0 %v3376
      %v3471 = vpop.f32.mrb[0].mxu0
      %v3472 = vadd.f32 0.0, %v3471
      %v3473 = vpop.f32.mrb[0].mxu0
      %3474 = vmatprep.mubr.f32.mxu0 0.0
      %3475 = vmatmul.mubr.f32.gmra.mrb[0].mxu0 %v3379
      %v3476 = vpop.f32.mrb[0].mxu0
      %v3477 = vadd.f32 0.0, %v3476
      %v3478 = vpop.f32.mrb[0].mxu0
      %3479 = vmatprep.mubr.f32.mxu0 0.0
      %3480 = vmatmul.mubr.f32.gmra.mrb[0].mxu0 %v3382
      %v3481 = vpop.f32.mrb[0].mxu0
      %v3482 = vadd.f32 0.0, %v3481
      %v3483 = vpop.f32.mrb[0].mxu0
      %3484 = vmatprep.mubr.f32.mxu0 0.0
      %3485 = vmatmul.mubr.f32.gmra.mrb[0].mxu0 %v3385
      %v3486 = vpop.f32.mrb[0].mxu0
      %v3487 = vadd.f32 0.0, %v3486
      %v3488 = vpop.f32.mrb[0].mxu0
      %3489 = vmatprep.mubr.f32.mxu0 0.0
      %3490 = vmatmul.mubr.f32.gmra.mrb[0].mxu0 %v3388
      %v3491 = vpop.f32.mrb[0].mxu0
      %v3492 = vadd.f32 0.0, %v3491
      %v3493 = vpop.f32.mrb[0].mxu0
      %3494 = vdwg.mxu0
      %3511 = vrot.lane.b32.xlu0 %v1656, 8
      %v3512 = vpop.permute.xlu0 %3511
      %3513 = vrot.lane.b32.xlu0 %v1661, 8
      %v3514 = vpop.permute.xlu0 %3513
      %3515 = vrot.lane.b32.xlu0 %v1666, 8
      %v3516 = vpop.permute.xlu0 %3515
      %3517 = vrot.lane.b32.xlu0 %v1671, 8
      %v3518 = vpop.permute.xlu0 %3517
      %3519 = vrot.lane.b32.xlu0 %v1676, 8
      %v3520 = vpop.permute.xlu0 %3519
      %3521 = vrot.lane.b32.xlu0 %v1681, 8
      %v3522 = vpop.permute.xlu0 %3521
      %3523 = vrot.lane.b32.xlu0 %v1686, 8
      %v3524 = vpop.permute.xlu0 %3523
      %3525 = vrot.lane.b32.xlu0 %v1691, 8
      %v3526 = vpop.permute.xlu0 %3525
      %3527 = vrot.lane.b32.xlu0 %v1817, 8
      %v3528 = vpop.permute.xlu0 %3527
      %3529 = vrot.lane.b32.xlu0 %v1822, 8
      %v3530 = vpop.permute.xlu0 %3529
      %3531 = vrot.lane.b32.xlu0 %v1827, 8
      %v3532 = vpop.permute.xlu0 %3531
      %3533 = vrot.lane.b32.xlu0 %v1832, 8
      %v3534 = vpop.permute.xlu0 %3533
      %3535 = vrot.lane.b32.xlu0 %v1837, 8
      %v3536 = vpop.permute.xlu0 %3535
      %3537 = vrot.lane.b32.xlu0 %v1842, 8
      %v3538 = vpop.permute.xlu0 %3537
      %3539 = vrot.lane.b32.xlu0 %v1847, 8
      %v3540 = vpop.permute.xlu0 %3539
      %3541 = vrot.lane.b32.xlu0 %v1852, 8
      %v3542 = vpop.permute.xlu0 %3541
      %3575 = vrot.lane.b32.xlu0 %v2484, 16
      %v3576 = vpop.permute.xlu0 %3575
      %3577 = vrot.lane.b32.xlu0 %v2489, 16
      %v3578 = vpop.permute.xlu0 %3577
      %3579 = vrot.lane.b32.xlu0 %v2494, 16
      %v3580 = vpop.permute.xlu0 %3579
      %3581 = vrot.lane.b32.xlu0 %v2499, 16
      %v3582 = vpop.permute.xlu0 %3581
      %3583 = vrot.lane.b32.xlu0 %v2504, 16
      %v3584 = vpop.permute.xlu0 %3583
      %3585 = vrot.lane.b32.xlu0 %v2509, 16
      %v3586 = vpop.permute.xlu0 %3585
      %3587 = vrot.lane.b32.xlu0 %v2514, 16
      %v3588 = vpop.permute.xlu0 %3587
      %3589 = vrot.lane.b32.xlu0 %v2519, 16
      %v3590 = vpop.permute.xlu0 %3589
      %3591 = vrot.lane.b32.xlu0 %v2637, 16
      %v3592 = vpop.permute.xlu0 %3591
      %3593 = vrot.lane.b32.xlu0 %v2642, 16
      %v3594 = vpop.permute.xlu0 %3593
      %3595 = vrot.lane.b32.xlu0 %v2647, 16
      %v3596 = vpop.permute.xlu0 %3595
      %3597 = vrot.lane.b32.xlu0 %v2652, 16
      %v3598 = vpop.permute.xlu0 %3597
      %3599 = vrot.lane.b32.xlu0 %v2657, 16
      %v3600 = vpop.permute.xlu0 %3599
      %3601 = vrot.lane.b32.xlu0 %v2662, 16
      %v3602 = vpop.permute.xlu0 %3601
      %3603 = vrot.lane.b32.xlu0 %v2667, 16
      %v3604 = vpop.permute.xlu0 %3603
      %3605 = vrot.lane.b32.xlu0 %v2672, 16
      %v3606 = vpop.permute.xlu0 %3605
      %3639 = vrot.lane.b32.xlu0 %v3304, 24
      %v3640 = vpop.permute.xlu0 %3639
      %3641 = vrot.lane.b32.xlu0 %v3309, 24
      %v3642 = vpop.permute.xlu0 %3641
      %3643 = vrot.lane.b32.xlu0 %v3314, 24
      %v3644 = vpop.permute.xlu0 %3643
      %3645 = vrot.lane.b32.xlu0 %v3319, 24
      %v3646 = vpop.permute.xlu0 %3645
      %3647 = vrot.lane.b32.xlu0 %v3324, 24
      %v3648 = vpop.permute.xlu0 %3647
      %3649 = vrot.lane.b32.xlu0 %v3329, 24
      %v3650 = vpop.permute.xlu0 %3649
      %3651 = vrot.lane.b32.xlu0 %v3334, 24
      %v3652 = vpop.permute.xlu0 %3651
      %3653 = vrot.lane.b32.xlu0 %v3339, 24
      %v3654 = vpop.permute.xlu0 %3653
      %3655 = vrot.lane.b32.xlu0 %v3457, 24
      %v3656 = vpop.permute.xlu0 %3655
      %3657 = vrot.lane.b32.xlu0 %v3462, 24
      %v3658 = vpop.permute.xlu0 %3657
      %3659 = vrot.lane.b32.xlu0 %v3467, 24
      %v3660 = vpop.permute.xlu0 %3659
      %3661 = vrot.lane.b32.xlu0 %v3472, 24
      %v3662 = vpop.permute.xlu0 %3661
      %3663 = vrot.lane.b32.xlu0 %v3477, 24
      %v3664 = vpop.permute.xlu0 %3663
      %3665 = vrot.lane.b32.xlu0 %v3482, 24
      %v3666 = vpop.permute.xlu0 %3665
      %3667 = vrot.lane.b32.xlu0 %v3487, 24
      %v3668 = vpop.permute.xlu0 %3667
      %3669 = vrot.lane.b32.xlu0 %v3492, 24
      %v3670 = vpop.permute.xlu0 %3669
      %v3687 = vsel %vm277, %v852, %v3512
      %v3688 = vsel %vm277, %v857, %v3514
      %v3689 = vsel %vm277, %v862, %v3516
      %v3690 = vsel %vm277, %v867, %v3518
      %v3691 = vsel %vm277, %v872, %v3520
      %v3692 = vsel %vm277, %v877, %v3522
      %v3693 = vsel %vm277, %v882, %v3524
      %v3694 = vsel %vm277, %v887, %v3526
      %v3695 = vsel %vm277, %v981, %v3528
      %v3696 = vsel %vm277, %v986, %v3530
      %v3697 = vsel %vm277, %v991, %v3532
      %v3698 = vsel %vm277, %v996, %v3534
      %v3699 = vsel %vm277, %v1001, %v3536
      %v3700 = vsel %vm277, %v1006, %v3538
      %v3701 = vsel %vm277, %v1011, %v3540
      %v3702 = vsel %vm277, %v1016, %v3542
      %vm3703 = vcmask 130048
      %v3704 = vsel %vm3703, %v3687, %v3576
      %v3705 = vsel %vm3703, %v3688, %v3578
      %v3706 = vsel %vm3703, %v3689, %v3580
      %v3707 = vsel %vm3703, %v3690, %v3582
      %v3708 = vsel %vm3703, %v3691, %v3584
      %v3709 = vsel %vm3703, %v3692, %v3586
      %v3710 = vsel %vm3703, %v3693, %v3588
      %v3711 = vsel %vm3703, %v3694, %v3590
      %v3712 = vsel %vm3703, %v3695, %v3592
      %v3713 = vsel %vm3703, %v3696, %v3594
      %v3714 = vsel %vm3703, %v3697, %v3596
      %v3715 = vsel %vm3703, %v3698, %v3598
      %v3716 = vsel %vm3703, %v3699, %v3600
      %v3717 = vsel %vm3703, %v3700, %v3602
      %v3718 = vsel %vm3703, %v3701, %v3604
      %v3719 = vsel %vm3703, %v3702, %v3606
      %vm3720 = vcmask 195584
      %v3721 = vsel %vm3720, %v3704, %v3640
      %v3722 = vsel %vm3720, %v3705, %v3642
      %v3723 = vsel %vm3720, %v3706, %v3644
      %v3724 = vsel %vm3720, %v3707, %v3646
      %v3725 = vsel %vm3720, %v3708, %v3648
      %v3726 = vsel %vm3720, %v3709, %v3650
      %v3727 = vsel %vm3720, %v3710, %v3652
      %v3728 = vsel %vm3720, %v3711, %v3654
      %v3729 = vsel %vm3720, %v3712, %v3656
      %v3730 = vsel %vm3720, %v3713, %v3658
      %v3731 = vsel %vm3720, %v3714, %v3660
      %v3732 = vsel %vm3720, %v3715, %v3662
      %v3733 = vsel %vm3720, %v3716, %v3664
      %v3734 = vsel %vm3720, %v3717, %v3666
      %v3735 = vsel %vm3720, %v3718, %v3668
      %v3736 = vsel %vm3720, %v3719, %v3670
      %vm3737 = vcmask 261120
      %3738 = vst.msk [vmem:[%s227] sm:$0xff] %vm3737, %v3721
      %3739 = vst.msk [vmem:[%s227 + $0x8] sm:$0xff] %vm3737, %v3722
      %3740 = vst.msk [vmem:[%s227 + $0x10] sm:$0xff] %vm3737, %v3723
      %3741 = vst.msk [vmem:[%s227 + $0x18] sm:$0xff] %vm3737, %v3724
      %3742 = vst.msk [vmem:[%s227 + $0x20] sm:$0xff] %vm3737, %v3725
      %3743 = vst.msk [vmem:[%s227 + $0x28] sm:$0xff] %vm3737, %v3726
      %3744 = vst.msk [vmem:[%s227 + $0x30] sm:$0xff] %vm3737, %v3727
      %3745 = vst.msk [vmem:[%s227 + $0x38] sm:$0xff] %vm3737, %v3728
      %3746 = vst.msk [vmem:[%s227 + $0x40] sm:$0xff] %vm3737, %v3729
      %3747 = vst.msk [vmem:[%s227 + $0x48] sm:$0xff] %vm3737, %v3730
      %3748 = vst.msk [vmem:[%s227 + $0x50] sm:$0xff] %vm3737, %v3731
      %3749 = vst.msk [vmem:[%s227 + $0x58] sm:$0xff] %vm3737, %v3732
      %3750 = vst.msk [vmem:[%s227 + $0x60] sm:$0xff] %vm3737, %v3733
      %3751 = vst.msk [vmem:[%s227 + $0x68] sm:$0xff] %vm3737, %v3734
      %3752 = vst.msk [vmem:[%s227 + $0x70] sm:$0xff] %vm3737, %v3735
      %3753 = vst.msk [vmem:[%s227 + $0x78] sm:$0xff] %vm3737, %v3736
      %s3754 = smul.u32 2, %s14
      %p3755 = scmp.lt.s32.totalorder %s3754, 3
      %s3756 = scalar_select %p3755, %s3754, 3
      %s3757 = smul.addr %s3756, 8
      %s3758 = smul.addr %s3757, 8
      %s3759 = scalar_lea.vmem %s3, %s3758
      // Predicated region
      $region33: #{multi_headed_attention.4} parent=31 // pred_check
        %p3760 = pneg %p110
      $region34: #{multi_headed_attention.4} parent=31 // pred_check_branch
        %3762 = sbr.rel (%p3760) target = $region36
      $region35: #{multi_headed_attention.4} parent=31 // pred_region
        %s3763 = smul.u32 2, %s14
      $region36: #{multi_headed_attention.4} parent=31 // pred_fallthru
        _
    $region32: #{multi_headed_attention.4} parent=5 // pred_fallthru
      _
    %p3764 = scmp.le.s32.totalorder 2, %s9
    // Predicated region
    $region37: #{multi_headed_attention.4} parent=5 // pred_check
      %p3765 = pneg %p3764
    $region38: #{multi_headed_attention.4} parent=5 // pred_check_branch
      %3767 = sbr.rel (%p3765) target = $region40
    $region39: #{multi_headed_attention.4} parent=5 // pred_region
      %s3768 = ssub.s32 %s9, 2
      // Predicated region
      $region41: #{multi_headed_attention.4} parent=39 // pred_check
        %p3769 = pneg %p116
      $region42: #{multi_headed_attention.4} parent=39 // pred_check_branch
        %3771 = sbr.rel (%p3769) target = $region44
      $region43: #{multi_headed_attention.4} parent=39 // pred_region
        %s3772 = smul.u32 2, %s15
        %p3773 = scmp.lt.s32.totalorder %s3772, 3
        %s3774 = scalar_select %p3773, %s3772, 3
        %s3775 = smul.addr %s3774, 8
        %s3776 = smul.addr %s3775, 8
        %s3777 = scalar_lea.vmem %s3, %s3776
      $region44: #{multi_headed_attention.4} parent=39 // pred_fallthru
        _
    $region40: #{multi_headed_attention.4} parent=5 // pred_fallthru
      _
  $region6: #{multi_headed_attention.4} parent=0 // loop_footer
    %s13 = sadd.s32 1, %s9
  $region7: #{multi_headed_attention.4} parent=0 // loop_footer_branch
    %8 = sbr.rel target = $region3
  $region8: #{multi_headed_attention.4} parent=0 // loop_exit
    _

</llo_original>
